<compile_context>
chip_gen: v6e
topology: v6e:2x2x1
jax: 0.10.0
libtpu: 0.0.40
codegen_flags: <defaults>
</compile_context>

<pallas_src>
import math

import jax
import jax.numpy as jnp
from jax import lax
from jax.experimental import pallas as pl
from jax.experimental.pallas import tpu as pltpu


def _round_up8(c):
    return (c + 7) // 8 * 8


# ----------------------------------------------------------------------------
# Fused Decode forward: one Pallas kernel for deconv1+relu / conv2+relu / conv3+relu
# ----------------------------------------------------------------------------
def decode_forward(x_nchw, params):
    N, Cin, H, W = x_nchw.shape
    Co = params["w1"].shape[1]                 # out_c of every layer
    Ho, Wo = 2 * H, 2 * W                      # spatial size after the deconv
    Wd, Hd = Wo + 2, Ho + 2                    # padded row stride / row count
    span = Ho * Wd                             # flat per-layer output (+2 junk lanes/row)
    sbuf = Hd * Wd + 2                         # scratch lanes (+2: tap slices overrun)
    CinP, CoP = _round_up8(Cin), _round_up8(Co)
    GROUP = math.gcd(H, 8)                     # input rows per dilation matmul
    GW = GROUP * W
    GD = 2 * GROUP * Wd

    # ---- tiny weight repack: (co, kh, kw, ci) -> (co, 9*ci_padded) ------------
    def pack(w_co_kh_kw_ci, cpad):
        co = w_co_kh_kw_ci.shape[0]
        ci = w_co_kh_kw_ci.shape[3]
        w = jnp.pad(w_co_kh_kw_ci, ((0, 0), (0, 0), (0, 0), (0, cpad - ci)))
        return w.reshape(co, 9 * cpad).astype(jnp.float32)

    # ConvTranspose2d == conv of the 2x-dilated, (1,2)-padded input with the
    # spatially flipped kernel and (ci, co) swapped.
    w1m = pack(jnp.flip(params["w1"], (2, 3)).transpose(1, 2, 3, 0), CinP)
    w2m = pack(params["w2"].transpose(0, 2, 3, 1), CoP)
    w3m = pack(params["w3"].transpose(0, 2, 3, 1), CoP)
    b1 = params["b1"].reshape(Co, 1).astype(jnp.float32)
    b2 = params["b2"].reshape(Co, 1).astype(jnp.float32)
    b3 = params["b3"].reshape(Co, 1).astype(jnp.float32)

    # 1.0 on the Wo valid lanes of each length-Wd row, 0.0 on the 2 junk lanes.
    colmask = jnp.tile(jnp.arange(Wd) < Wo, Ho).astype(jnp.float32).reshape(1, span)
    x_flat = x_nchw.reshape(N, Cin, H * W).astype(jnp.float32)   # free reshape

    def kernel(x_ref, w1_ref, b1_ref, w2_ref, b2_ref, w3_ref, b3_ref, mask_ref,
               out_ref, xd_ref, h1_ref, h2_ref):
        # Scratch persists across grid steps: padding / unwritten tails must be 0.
        xd_ref[...] = jnp.zeros_like(xd_ref)
        h1_ref[...] = jnp.zeros_like(h1_ref)
        h2_ref[...] = jnp.zeros_like(h2_ref)

        # ---- in-kernel stride-2 dilation of x (ConvTranspose -> plain conv) --
        # scat[r*W + n, r*2*Wd + 2*n + 1] = 1 places x[m, n] at the odd-row /
        # odd-col interior of the zero-dilated, zero-padded (Hd, Wd) image.
        pieces = []
        for r in range(GROUP):
            n_i = lax.broadcasted_iota(jnp.int32, (W, GD), 0)
            c_i = lax.broadcasted_iota(jnp.int32, (W, GD), 1)
            pieces.append(
                (c_i == r * (2 * Wd) + 2 * n_i + 1).astype(jnp.float32))
        scat = jnp.concatenate(pieces, axis=0)                 # (GROUP*W, GD)
        for g in range(H // GROUP):
            rows = x_ref[0, :, g * GW:(g + 1) * GW]            # (Cin, GROUP*W)
            xd_ref[:Cin, Wd + g * GD: Wd + (g + 1) * GD] = jnp.dot(
                rows, scat, preferred_element_type=jnp.float32)

        mask = mask_ref[...]                                   # (1, span)

        def conv3x3_relu(src_ref, w_ref, b_ref):
            # src_ref: (cin_pad, sbuf) flat view of a zero-padded (cin_pad, Hd, Wd)
            # image. 9 taps = contiguous lane-shifted slices -> one K=9*cin matmul.
            patches = jnp.concatenate(
                [src_ref[:, kh * Wd + kw: kh * Wd + kw + span]
                 for kh in range(3) for kw in range(3)], axis=0)
            acc = jnp.dot(w_ref[...], patches,
                          preferred_element_type=jnp.float32)  # (Co, span)
            return jnp.maximum(acc + b_ref[...], 0.0)

        # deconv1 (as conv on the dilated input) -> padded layer-2 input buffer
        h1_ref[:Co, Wd + 1: Wd + 1 + span] = (
            conv3x3_relu(xd_ref, w1_ref, b1_ref) * mask)
        # deconv2 -> padded layer-3 input buffer
        h2_ref[:Co, Wd + 1: Wd + 1 + span] = (
            conv3x3_relu(h1_ref, w2_ref, b2_ref) * mask)
        # deconv3 -> output (the 2 junk lanes per row are sliced off outside)
        out_ref[0, :, :] = conv3x3_relu(h2_ref, w3_ref, b3_ref)

    out_flat = pl.pallas_call(
        kernel,
        out_shape=jax.ShapeDtypeStruct((N, Co, span), jnp.float32),
        grid=(N,),
        in_specs=[
            pl.BlockSpec((1, Cin, H * W), lambda n: (n, 0, 0)),
            pl.BlockSpec((Co, 9 * CinP), lambda n: (0, 0)),
            pl.BlockSpec((Co, 1), lambda n: (0, 0)),
            pl.BlockSpec((Co, 9 * CoP), lambda n: (0, 0)),
            pl.BlockSpec((Co, 1), lambda n: (0, 0)),
            pl.BlockSpec((Co, 9 * CoP), lambda n: (0, 0)),
            pl.BlockSpec((Co, 1), lambda n: (0, 0)),
            pl.BlockSpec((1, span), lambda n: (0, 0)),
        ],
        out_specs=pl.BlockSpec((1, Co, span), lambda n: (n, 0, 0)),
        scratch_shapes=[
            pltpu.VMEM((CinP, sbuf), jnp.float32),   # dilated deconv input
            pltpu.VMEM((CoP, sbuf), jnp.float32),    # layer-1 output (padded)
            pltpu.VMEM((CoP, sbuf), jnp.float32),    # layer-2 output (padded)
        ],
        compiler_params=pltpu.CompilerParams(
            dimension_semantics=("parallel",)),
    )(x_flat, w1m, b1, w2m, b2, w3m, b3, colmask)

    # Free reshape + drop the 2 junk lanes per row -> dense NCHW output.
    return out_flat.reshape(N, Co, Ho, Wd)[:, :, :, :Wo]


# ----------------------------------------------------------------------------
# Pure-JAX reference (lax convs) for correctness checking
# ----------------------------------------------------------------------------
def decode_reference(x_nchw, params):
    dn = ("NCHW", "OIHW", "NCHW")
    hp = lax.Precision.HIGHEST

    w1_conv = jnp.flip(params["w1"], (2, 3)).transpose(1, 0, 2, 3)
    h = lax.conv_general_dilated(x_nchw, w1_conv, (1, 1), ((1, 2), (1, 2)),
                                 lhs_dilation=(2, 2), dimension_numbers=dn,
                                 precision=hp)
    h = jax.nn.relu(h + params["b1"][None, :, None, None])

    h = lax.conv_general_dilated(h, params["w2"], (1, 1), ((1, 1), (1, 1)),
                                 dimension_numbers=dn, precision=hp)
    h = jax.nn.relu(h + params["b2"][None, :, None, None])

    h = lax.conv_general_dilated(h, params["w3"], (1, 1), ((1, 1), (1, 1)),
                                 dimension_numbers=dn, precision=hp)
    h = jax.nn.relu(h + params["b3"][None, :, None, None])
    return h


# ----------------------------------------------------------------------------
if __name__ == "__main__":
    in_c, out_c = 4, 8
    N, H, W = 2, 16, 16

    key = jax.random.PRNGKey(0)
    k1, k2, k3, k4, k5, k6, kx = jax.random.split(key, 7)
    params = {
        # ConvTranspose2d weight: (in_c, out_c, kH, kW)
        "w1": 0.1 * jax.random.normal(k1, (in_c, out_c, 3, 3), jnp.float32),
        "b1": 0.1 * jax.random.normal(k2, (out_c,), jnp.float32),
        # Conv2d weights: (out_c, in_c=out_c, kH, kW)
        "w2": 0.1 * jax.random.normal(k3, (out_c, out_c, 3, 3), jnp.float32),
        "b2": 0.1 * jax.random.normal(k4, (out_c,), jnp.float32),
        "w3": 0.1 * jax.random.normal(k5, (out_c, out_c, 3, 3), jnp.float32),
        "b3": 0.1 * jax.random.normal(k6, (out_c,), jnp.float32),
    }
    x = jax.random.normal(kx, (N, in_c, H, W), jnp.float32)

    fwd = jax.jit(decode_forward)
    out = jax.block_until_ready(fwd(x, params))
    assert out.shape == (N, out_c, 2 * H, 2 * W), out.shape

    ref = jax.block_until_ready(decode_reference(x, params))
    err = float(jnp.max(jnp.abs(out - ref)))
    assert jnp.allclose(out, ref, rtol=1e-3, atol=1e-3), err

    print("KERNEL_OK")
</pallas_src>

<mosaic_0001>
module attributes {stable_mosaic.version = 11 : i64} {
  func.func @kernel(%arg0: i32, %arg1: memref<1x4x256xf32, #tpu.memory_space<vmem>>, %arg2: memref<8x72xf32, #tpu.memory_space<vmem>>, %arg3: memref<8x1xf32, #tpu.memory_space<vmem>>, %arg4: memref<8x72xf32, #tpu.memory_space<vmem>>, %arg5: memref<8x1xf32, #tpu.memory_space<vmem>>, %arg6: memref<8x72xf32, #tpu.memory_space<vmem>>, %arg7: memref<8x1xf32, #tpu.memory_space<vmem>>, %arg8: memref<1x1088xf32, #tpu.memory_space<vmem>>, %arg9: memref<1x8x1088xf32, #tpu.memory_space<vmem>>, %arg10: memref<8x1158xf32, #tpu.memory_space<vmem>>, %arg11: memref<8x1158xf32, #tpu.memory_space<vmem>>, %arg12: memref<8x1158xf32, #tpu.memory_space<vmem>>) attributes {dimension_semantics = [#tpu.dimension_semantics<parallel>], iteration_bounds = array<i64: 2>, scalar_prefetch = 0 : i64, scratch_operands = 3 : i64, tpu.core_type = #tpu.core_type<tc>, window_params = [{transform_indices = @transform_0, window_bounds = array<i64: 1, 4, 256>}, {pipeline_mode = #tpu.pipeline_mode<synchronous>, transform_indices = @transform_1, window_bounds = array<i64: 8, 72>}, {pipeline_mode = #tpu.pipeline_mode<synchronous>, transform_indices = @transform_2, window_bounds = array<i64: 8, 1>}, {pipeline_mode = #tpu.pipeline_mode<synchronous>, transform_indices = @transform_3, window_bounds = array<i64: 8, 72>}, {pipeline_mode = #tpu.pipeline_mode<synchronous>, transform_indices = @transform_4, window_bounds = array<i64: 8, 1>}, {pipeline_mode = #tpu.pipeline_mode<synchronous>, transform_indices = @transform_5, window_bounds = array<i64: 8, 72>}, {pipeline_mode = #tpu.pipeline_mode<synchronous>, transform_indices = @transform_6, window_bounds = array<i64: 8, 1>}, {pipeline_mode = #tpu.pipeline_mode<synchronous>, transform_indices = @transform_7, window_bounds = array<i64: 1, 1088>}, {transform_indices = @transform_8, window_bounds = array<i64: 1, 8, 1088>}]} {
    %cst = arith.constant 0.000000e+00 : f32
    %0 = vector.broadcast %cst : f32 to vector<8x1158xf32>
    %c0 = arith.constant 0 : index
    %c0_0 = arith.constant 0 : index
    %1 = vector.load %arg10[%c0, %c0_0] : memref<8x1158xf32, #tpu.memory_space<vmem>>, vector<8x1158xf32>
    tpu.vector_store %arg10[%c0, %c0_0], %0 {strides = array<i32>} : memref<8x1158xf32, #tpu.memory_space<vmem>>, vector<8x1158xf32>,
    %cst_1 = arith.constant 0.000000e+00 : f32
    %2 = vector.broadcast %cst_1 : f32 to vector<8x1158xf32>
    %c0_2 = arith.constant 0 : index
    %c0_3 = arith.constant 0 : index
    %3 = vector.load %arg11[%c0_2, %c0_3] : memref<8x1158xf32, #tpu.memory_space<vmem>>, vector<8x1158xf32>
    tpu.vector_store %arg11[%c0_2, %c0_3], %2 {strides = array<i32>} : memref<8x1158xf32, #tpu.memory_space<vmem>>, vector<8x1158xf32>,
    %cst_4 = arith.constant 0.000000e+00 : f32
    %4 = vector.broadcast %cst_4 : f32 to vector<8x1158xf32>
    %c0_5 = arith.constant 0 : index
    %c0_6 = arith.constant 0 : index
    %5 = vector.load %arg12[%c0_5, %c0_6] : memref<8x1158xf32, #tpu.memory_space<vmem>>, vector<8x1158xf32>
    tpu.vector_store %arg12[%c0_5, %c0_6], %4 {strides = array<i32>} : memref<8x1158xf32, #tpu.memory_space<vmem>>, vector<8x1158xf32>,
    %6 = tpu.iota {dimensions = array<i32: 0>} : vector<16x544xi32>
    %7 = tpu.iota {dimensions = array<i32: 1>} : vector<16x544xi32>
    %c2_i32 = arith.constant 2 : i32
    %8 = vector.broadcast %c2_i32 : i32 to vector<16x544xi32>
    %9 = arith.muli %8, %6 : vector<16x544xi32>
    %c0_i32 = arith.constant 0 : i32
    %10 = vector.broadcast %c0_i32 : i32 to vector<16x544xi32>
    %11 = arith.addi %10, %9 : vector<16x544xi32>
    %c1_i32 = arith.constant 1 : i32
    %12 = vector.broadcast %c1_i32 : i32 to vector<16x544xi32>
    %13 = arith.addi %11, %12 : vector<16x544xi32>
    %14 = arith.cmpi eq, %7, %13 : vector<16x544xi32>
    %15 = arith.extui %14 : vector<16x544xi1> to vector<16x544xi32>
    %16 = arith.sitofp %15 : vector<16x544xi32> to vector<16x544xf32>
    %17 = tpu.iota {dimensions = array<i32: 0>} : vector<16x544xi32>
    %18 = tpu.iota {dimensions = array<i32: 1>} : vector<16x544xi32>
    %c2_i32_7 = arith.constant 2 : i32
    %19 = vector.broadcast %c2_i32_7 : i32 to vector<16x544xi32>
    %20 = arith.muli %19, %17 : vector<16x544xi32>
    %c68_i32 = arith.constant 68 : i32
    %21 = vector.broadcast %c68_i32 : i32 to vector<16x544xi32>
    %22 = arith.addi %21, %20 : vector<16x544xi32>
    %c1_i32_8 = arith.constant 1 : i32
    %23 = vector.broadcast %c1_i32_8 : i32 to vector<16x544xi32>
    %24 = arith.addi %22, %23 : vector<16x544xi32>
    %25 = arith.cmpi eq, %18, %24 : vector<16x544xi32>
    %26 = arith.extui %25 : vector<16x544xi1> to vector<16x544xi32>
    %27 = arith.sitofp %26 : vector<16x544xi32> to vector<16x544xf32>
    %28 = tpu.iota {dimensions = array<i32: 0>} : vector<16x544xi32>
    %29 = tpu.iota {dimensions = array<i32: 1>} : vector<16x544xi32>
    %c2_i32_9 = arith.constant 2 : i32
    %30 = vector.broadcast %c2_i32_9 : i32 to vector<16x544xi32>
    %31 = arith.muli %30, %28 : vector<16x544xi32>
    %c136_i32 = arith.constant 136 : i32
    %32 = vector.broadcast %c136_i32 : i32 to vector<16x544xi32>
    %33 = arith.addi %32, %31 : vector<16x544xi32>
    %c1_i32_10 = arith.constant 1 : i32
    %34 = vector.broadcast %c1_i32_10 : i32 to vector<16x544xi32>
    %35 = arith.addi %33, %34 : vector<16x544xi32>
    %36 = arith.cmpi eq, %29, %35 : vector<16x544xi32>
    %37 = arith.extui %36 : vector<16x544xi1> to vector<16x544xi32>
    %38 = arith.sitofp %37 : vector<16x544xi32> to vector<16x544xf32>
    %39 = tpu.iota {dimensions = array<i32: 0>} : vector<16x544xi32>
    %40 = tpu.iota {dimensions = array<i32: 1>} : vector<16x544xi32>
    %c2_i32_11 = arith.constant 2 : i32
    %41 = vector.broadcast %c2_i32_11 : i32 to vector<16x544xi32>
    %42 = arith.muli %41, %39 : vector<16x544xi32>
    %c204_i32 = arith.constant 204 : i32
    %43 = vector.broadcast %c204_i32 : i32 to vector<16x544xi32>
    %44 = arith.addi %43, %42 : vector<16x544xi32>
    %c1_i32_12 = arith.constant 1 : i32
    %45 = vector.broadcast %c1_i32_12 : i32 to vector<16x544xi32>
    %46 = arith.addi %44, %45 : vector<16x544xi32>
    %47 = arith.cmpi eq, %40, %46 : vector<16x544xi32>
    %48 = arith.extui %47 : vector<16x544xi1> to vector<16x544xi32>
    %49 = arith.sitofp %48 : vector<16x544xi32> to vector<16x544xf32>
    %50 = tpu.iota {dimensions = array<i32: 0>} : vector<16x544xi32>
    %51 = tpu.iota {dimensions = array<i32: 1>} : vector<16x544xi32>
    %c2_i32_13 = arith.constant 2 : i32
    %52 = vector.broadcast %c2_i32_13 : i32 to vector<16x544xi32>
    %53 = arith.muli %52, %50 : vector<16x544xi32>
    %c272_i32 = arith.constant 272 : i32
    %54 = vector.broadcast %c272_i32 : i32 to vector<16x544xi32>
    %55 = arith.addi %54, %53 : vector<16x544xi32>
    %c1_i32_14 = arith.constant 1 : i32
    %56 = vector.broadcast %c1_i32_14 : i32 to vector<16x544xi32>
    %57 = arith.addi %55, %56 : vector<16x544xi32>
    %58 = arith.cmpi eq, %51, %57 : vector<16x544xi32>
    %59 = arith.extui %58 : vector<16x544xi1> to vector<16x544xi32>
    %60 = arith.sitofp %59 : vector<16x544xi32> to vector<16x544xf32>
    %61 = tpu.iota {dimensions = array<i32: 0>} : vector<16x544xi32>
    %62 = tpu.iota {dimensions = array<i32: 1>} : vector<16x544xi32>
    %c2_i32_15 = arith.constant 2 : i32
    %63 = vector.broadcast %c2_i32_15 : i32 to vector<16x544xi32>
    %64 = arith.muli %63, %61 : vector<16x544xi32>
    %c340_i32 = arith.constant 340 : i32
    %65 = vector.broadcast %c340_i32 : i32 to vector<16x544xi32>
    %66 = arith.addi %65, %64 : vector<16x544xi32>
    %c1_i32_16 = arith.constant 1 : i32
    %67 = vector.broadcast %c1_i32_16 : i32 to vector<16x544xi32>
    %68 = arith.addi %66, %67 : vector<16x544xi32>
    %69 = arith.cmpi eq, %62, %68 : vector<16x544xi32>
    %70 = arith.extui %69 : vector<16x544xi1> to vector<16x544xi32>
    %71 = arith.sitofp %70 : vector<16x544xi32> to vector<16x544xf32>
    %72 = tpu.iota {dimensions = array<i32: 0>} : vector<16x544xi32>
    %73 = tpu.iota {dimensions = array<i32: 1>} : vector<16x544xi32>
    %c2_i32_17 = arith.constant 2 : i32
    %74 = vector.broadcast %c2_i32_17 : i32 to vector<16x544xi32>
    %75 = arith.muli %74, %72 : vector<16x544xi32>
    %c408_i32 = arith.constant 408 : i32
    %76 = vector.broadcast %c408_i32 : i32 to vector<16x544xi32>
    %77 = arith.addi %76, %75 : vector<16x544xi32>
    %c1_i32_18 = arith.constant 1 : i32
    %78 = vector.broadcast %c1_i32_18 : i32 to vector<16x544xi32>
    %79 = arith.addi %77, %78 : vector<16x544xi32>
    %80 = arith.cmpi eq, %73, %79 : vector<16x544xi32>
    %81 = arith.extui %80 : vector<16x544xi1> to vector<16x544xi32>
    %82 = arith.sitofp %81 : vector<16x544xi32> to vector<16x544xf32>
    %83 = tpu.iota {dimensions = array<i32: 0>} : vector<16x544xi32>
    %84 = tpu.iota {dimensions = array<i32: 1>} : vector<16x544xi32>
    %c2_i32_19 = arith.constant 2 : i32
    %85 = vector.broadcast %c2_i32_19 : i32 to vector<16x544xi32>
    %86 = arith.muli %85, %83 : vector<16x544xi32>
    %c476_i32 = arith.constant 476 : i32
    %87 = vector.broadcast %c476_i32 : i32 to vector<16x544xi32>
    %88 = arith.addi %87, %86 : vector<16x544xi32>
    %c1_i32_20 = arith.constant 1 : i32
    %89 = vector.broadcast %c1_i32_20 : i32 to vector<16x544xi32>
    %90 = arith.addi %88, %89 : vector<16x544xi32>
    %91 = arith.cmpi eq, %84, %90 : vector<16x544xi32>
    %92 = arith.extui %91 : vector<16x544xi1> to vector<16x544xi32>
    %93 = arith.sitofp %92 : vector<16x544xi32> to vector<16x544xf32>
    %94 = tpu.concatenate %16, %27, %38, %49, %60, %71, %82, %93 in 0 : vector<16x544xf32>, vector<16x544xf32>, vector<16x544xf32>, vector<16x544xf32>, vector<16x544xf32>, vector<16x544xf32>, vector<16x544xf32>, vector<16x544xf32> -> vector<128x544xf32>
    %c0_21 = arith.constant 0 : index
    %c0_22 = arith.constant 0 : index
    %c0_23 = arith.constant 0 : index
    %95 = vector.load %arg1[%c0_21, %c0_22, %c0_23] : memref<1x4x256xf32, #tpu.memory_space<vmem>>, vector<1x4x128xf32>
    %96 = vector.shape_cast %95 : vector<1x4x128xf32> to vector<4x128xf32>
    %cst_24 = arith.constant dense<0.000000e+00> : vector<4x544xf32>
    %97 = tpu.matmul %96, %94, %cst_24 {dimension_numbers = #tpu.dot_dimension_numbers<[1], [0], [0], [1], [0, 0, 1, 1], [], []>} : vector<4x128xf32>, vector<128x544xf32>, vector<4x544xf32> -> vector<4x544xf32>
    %c0_25 = arith.constant 0 : index
    %c34 = arith.constant 34 : index
    %98 = vector.load %arg10[%c0_25, %c34] : memref<8x1158xf32, #tpu.memory_space<vmem>>, vector<4x544xf32>
    tpu.vector_store %arg10[%c0_25, %c34], %97 {strides = array<i32>} : memref<8x1158xf32, #tpu.memory_space<vmem>>, vector<4x544xf32>,
    %c0_26 = arith.constant 0 : index
    %c0_27 = arith.constant 0 : index
    %c128 = arith.constant 128 : index
    %99 = vector.load %arg1[%c0_26, %c0_27, %c128] : memref<1x4x256xf32, #tpu.memory_space<vmem>>, vector<1x4x128xf32>
    %100 = vector.shape_cast %99 : vector<1x4x128xf32> to vector<4x128xf32>
    %cst_28 = arith.constant dense<0.000000e+00> : vector<4x544xf32>
    %101 = tpu.matmul %100, %94, %cst_28 {dimension_numbers = #tpu.dot_dimension_numbers<[1], [0], [0], [1], [0, 0, 1, 1], [], []>} : vector<4x128xf32>, vector<128x544xf32>, vector<4x544xf32> -> vector<4x544xf32>
    %c0_29 = arith.constant 0 : index
    %c578 = arith.constant 578 : index
    %102 = vector.load %arg10[%c0_29, %c578] : memref<8x1158xf32, #tpu.memory_space<vmem>>, vector<4x544xf32>
    tpu.vector_store %arg10[%c0_29, %c578], %101 {strides = array<i32>} : memref<8x1158xf32, #tpu.memory_space<vmem>>, vector<4x544xf32>,
    %c0_30 = arith.constant 0 : index
    %c0_31 = arith.constant 0 : index
    %103 = vector.load %arg8[%c0_30, %c0_31] : memref<1x1088xf32, #tpu.memory_space<vmem>>, vector<1x1088xf32>
    %c0_32 = arith.constant 0 : index
    %c0_33 = arith.constant 0 : index
    %104 = vector.load %arg10[%c0_32, %c0_33] : memref<8x1158xf32, #tpu.memory_space<vmem>>, vector<8x1088xf32>
    %c0_34 = arith.constant 0 : index
    %c1 = arith.constant 1 : index
    %105 = vector.load %arg10[%c0_34, %c1] : memref<8x1158xf32, #tpu.memory_space<vmem>>, vector<8x1088xf32>
    %c0_35 = arith.constant 0 : index
    %c2 = arith.constant 2 : index
    %106 = vector.load %arg10[%c0_35, %c2] : memref<8x1158xf32, #tpu.memory_space<vmem>>, vector<8x1088xf32>
    %c0_36 = arith.constant 0 : index
    %c34_37 = arith.constant 34 : index
    %107 = vector.load %arg10[%c0_36, %c34_37] : memref<8x1158xf32, #tpu.memory_space<vmem>>, vector<8x1088xf32>
    %c0_38 = arith.constant 0 : index
    %c35 = arith.constant 35 : index
    %108 = vector.load %arg10[%c0_38, %c35] : memref<8x1158xf32, #tpu.memory_space<vmem>>, vector<8x1088xf32>
    %c0_39 = arith.constant 0 : index
    %c36 = arith.constant 36 : index
    %109 = vector.load %arg10[%c0_39, %c36] : memref<8x1158xf32, #tpu.memory_space<vmem>>, vector<8x1088xf32>
    %c0_40 = arith.constant 0 : index
    %c68 = arith.constant 68 : index
    %110 = vector.load %arg10[%c0_40, %c68] : memref<8x1158xf32, #tpu.memory_space<vmem>>, vector<8x1088xf32>
    %c0_41 = arith.constant 0 : index
    %c69 = arith.constant 69 : index
    %111 = vector.load %arg10[%c0_41, %c69] : memref<8x1158xf32, #tpu.memory_space<vmem>>, vector<8x1088xf32>
    %c0_42 = arith.constant 0 : index
    %c70 = arith.constant 70 : index
    %112 = vector.load %arg10[%c0_42, %c70] : memref<8x1158xf32, #tpu.memory_space<vmem>>, vector<8x1088xf32>
    %113 = tpu.concatenate %104, %105, %106, %107, %108, %109, %110, %111, %112 in 0 : vector<8x1088xf32>, vector<8x1088xf32>, vector<8x1088xf32>, vector<8x1088xf32>, vector<8x1088xf32>, vector<8x1088xf32>, vector<8x1088xf32>, vector<8x1088xf32>, vector<8x1088xf32> -> vector<72x1088xf32>
    %c0_43 = arith.constant 0 : index
    %c0_44 = arith.constant 0 : index
    %114 = vector.load %arg2[%c0_43, %c0_44] : memref<8x72xf32, #tpu.memory_space<vmem>>, vector<8x72xf32>
    %cst_45 = arith.constant dense<0.000000e+00> : vector<8x1088xf32>
    %115 = tpu.matmul %114, %113, %cst_45 {dimension_numbers = #tpu.dot_dimension_numbers<[1], [0], [0], [1], [0, 0, 1, 1], [], []>} : vector<8x72xf32>, vector<72x1088xf32>, vector<8x1088xf32> -> vector<8x1088xf32>
    %c0_46 = arith.constant 0 : index
    %c0_47 = arith.constant 0 : index
    %116 = vector.load %arg3[%c0_46, %c0_47] : memref<8x1xf32, #tpu.memory_space<vmem>>, vector<8x1xf32>
    %117 = vector.broadcast %116 : vector<8x1xf32> to vector<8x1088xf32>
    %118 = arith.addf %115, %117 : vector<8x1088xf32>
    %cst_48 = arith.constant 0.000000e+00 : f32
    %119 = vector.broadcast %cst_48 : f32 to vector<8x1088xf32>
    %120 = arith.maximumf %118, %119 : vector<8x1088xf32>
    %121 = vector.broadcast %103 : vector<1x1088xf32> to vector<8x1088xf32>
    %122 = arith.mulf %120, %121 : vector<8x1088xf32>
    %c0_49 = arith.constant 0 : index
    %c35_50 = arith.constant 35 : index
    %123 = vector.load %arg11[%c0_49, %c35_50] : memref<8x1158xf32, #tpu.memory_space<vmem>>, vector<8x1088xf32>
    tpu.vector_store %arg11[%c0_49, %c35_50], %122 {strides = array<i32>} : memref<8x1158xf32, #tpu.memory_space<vmem>>, vector<8x1088xf32>,
    %c0_51 = arith.constant 0 : index
    %c0_52 = arith.constant 0 : index
    %124 = vector.load %arg11[%c0_51, %c0_52] : memref<8x1158xf32, #tpu.memory_space<vmem>>, vector<8x1088xf32>
    %c0_53 = arith.constant 0 : index
    %c1_54 = arith.constant 1 : index
    %125 = vector.load %arg11[%c0_53, %c1_54] : memref<8x1158xf32, #tpu.memory_space<vmem>>, vector<8x1088xf32>
    %c0_55 = arith.constant 0 : index
    %c2_56 = arith.constant 2 : index
    %126 = vector.load %arg11[%c0_55, %c2_56] : memref<8x1158xf32, #tpu.memory_space<vmem>>, vector<8x1088xf32>
    %c0_57 = arith.constant 0 : index
    %c34_58 = arith.constant 34 : index
    %127 = vector.load %arg11[%c0_57, %c34_58] : memref<8x1158xf32, #tpu.memory_space<vmem>>, vector<8x1088xf32>
    %c0_59 = arith.constant 0 : index
    %c35_60 = arith.constant 35 : index
    %128 = vector.load %arg11[%c0_59, %c35_60] : memref<8x1158xf32, #tpu.memory_space<vmem>>, vector<8x1088xf32>
    %c0_61 = arith.constant 0 : index
    %c36_62 = arith.constant 36 : index
    %129 = vector.load %arg11[%c0_61, %c36_62] : memref<8x1158xf32, #tpu.memory_space<vmem>>, vector<8x1088xf32>
    %c0_63 = arith.constant 0 : index
    %c68_64 = arith.constant 68 : index
    %130 = vector.load %arg11[%c0_63, %c68_64] : memref<8x1158xf32, #tpu.memory_space<vmem>>, vector<8x1088xf32>
    %c0_65 = arith.constant 0 : index
    %c69_66 = arith.constant 69 : index
    %131 = vector.load %arg11[%c0_65, %c69_66] : memref<8x1158xf32, #tpu.memory_space<vmem>>, vector<8x1088xf32>
    %c0_67 = arith.constant 0 : index
    %c70_68 = arith.constant 70 : index
    %132 = vector.load %arg11[%c0_67, %c70_68] : memref<8x1158xf32, #tpu.memory_space<vmem>>, vector<8x1088xf32>
    %133 = tpu.concatenate %124, %125, %126, %127, %128, %129, %130, %131, %132 in 0 : vector<8x1088xf32>, vector<8x1088xf32>, vector<8x1088xf32>, vector<8x1088xf32>, vector<8x1088xf32>, vector<8x1088xf32>, vector<8x1088xf32>, vector<8x1088xf32>, vector<8x1088xf32> -> vector<72x1088xf32>
    %c0_69 = arith.constant 0 : index
    %c0_70 = arith.constant 0 : index
    %134 = vector.load %arg4[%c0_69, %c0_70] : memref<8x72xf32, #tpu.memory_space<vmem>>, vector<8x72xf32>
    %cst_71 = arith.constant dense<0.000000e+00> : vector<8x1088xf32>
    %135 = tpu.matmul %134, %133, %cst_71 {dimension_numbers = #tpu.dot_dimension_numbers<[1], [0], [0], [1], [0, 0, 1, 1], [], []>} : vector<8x72xf32>, vector<72x1088xf32>, vector<8x1088xf32> -> vector<8x1088xf32>
    %c0_72 = arith.constant 0 : index
    %c0_73 = arith.constant 0 : index
    %136 = vector.load %arg5[%c0_72, %c0_73] : memref<8x1xf32, #tpu.memory_space<vmem>>, vector<8x1xf32>
    %137 = vector.broadcast %136 : vector<8x1xf32> to vector<8x1088xf32>
    %138 = arith.addf %135, %137 : vector<8x1088xf32>
    %cst_74 = arith.constant 0.000000e+00 : f32
    %139 = vector.broadcast %cst_74 : f32 to vector<8x1088xf32>
    %140 = arith.maximumf %138, %139 : vector<8x1088xf32>
    %141 = vector.broadcast %103 : vector<1x1088xf32> to vector<8x1088xf32>
    %142 = arith.mulf %140, %141 : vector<8x1088xf32>
    %c0_75 = arith.constant 0 : index
    %c35_76 = arith.constant 35 : index
    %143 = vector.load %arg12[%c0_75, %c35_76] : memref<8x1158xf32, #tpu.memory_space<vmem>>, vector<8x1088xf32>
    tpu.vector_store %arg12[%c0_75, %c35_76], %142 {strides = array<i32>} : memref<8x1158xf32, #tpu.memory_space<vmem>>, vector<8x1088xf32>,
    %c0_77 = arith.constant 0 : index
    %c0_78 = arith.constant 0 : index
    %144 = vector.load %arg12[%c0_77, %c0_78] : memref<8x1158xf32, #tpu.memory_space<vmem>>, vector<8x1088xf32>
    %c0_79 = arith.constant 0 : index
    %c1_80 = arith.constant 1 : index
    %145 = vector.load %arg12[%c0_79, %c1_80] : memref<8x1158xf32, #tpu.memory_space<vmem>>, vector<8x1088xf32>
    %c0_81 = arith.constant 0 : index
    %c2_82 = arith.constant 2 : index
    %146 = vector.load %arg12[%c0_81, %c2_82] : memref<8x1158xf32, #tpu.memory_space<vmem>>, vector<8x1088xf32>
    %c0_83 = arith.constant 0 : index
    %c34_84 = arith.constant 34 : index
    %147 = vector.load %arg12[%c0_83, %c34_84] : memref<8x1158xf32, #tpu.memory_space<vmem>>, vector<8x1088xf32>
    %c0_85 = arith.constant 0 : index
    %c35_86 = arith.constant 35 : index
    %148 = vector.load %arg12[%c0_85, %c35_86] : memref<8x1158xf32, #tpu.memory_space<vmem>>, vector<8x1088xf32>
    %c0_87 = arith.constant 0 : index
    %c36_88 = arith.constant 36 : index
    %149 = vector.load %arg12[%c0_87, %c36_88] : memref<8x1158xf32, #tpu.memory_space<vmem>>, vector<8x1088xf32>
    %c0_89 = arith.constant 0 : index
    %c68_90 = arith.constant 68 : index
    %150 = vector.load %arg12[%c0_89, %c68_90] : memref<8x1158xf32, #tpu.memory_space<vmem>>, vector<8x1088xf32>
    %c0_91 = arith.constant 0 : index
    %c69_92 = arith.constant 69 : index
    %151 = vector.load %arg12[%c0_91, %c69_92] : memref<8x1158xf32, #tpu.memory_space<vmem>>, vector<8x1088xf32>
    %c0_93 = arith.constant 0 : index
    %c70_94 = arith.constant 70 : index
    %152 = vector.load %arg12[%c0_93, %c70_94] : memref<8x1158xf32, #tpu.memory_space<vmem>>, vector<8x1088xf32>
    %153 = tpu.concatenate %144, %145, %146, %147, %148, %149, %150, %151, %152 in 0 : vector<8x1088xf32>, vector<8x1088xf32>, vector<8x1088xf32>, vector<8x1088xf32>, vector<8x1088xf32>, vector<8x1088xf32>, vector<8x1088xf32>, vector<8x1088xf32>, vector<8x1088xf32> -> vector<72x1088xf32>
    %c0_95 = arith.constant 0 : index
    %c0_96 = arith.constant 0 : index
    %154 = vector.load %arg6[%c0_95, %c0_96] : memref<8x72xf32, #tpu.memory_space<vmem>>, vector<8x72xf32>
    %cst_97 = arith.constant dense<0.000000e+00> : vector<8x1088xf32>
    %155 = tpu.matmul %154, %153, %cst_97 {dimension_numbers = #tpu.dot_dimension_numbers<[1], [0], [0], [1], [0, 0, 1, 1], [], []>} : vector<8x72xf32>, vector<72x1088xf32>, vector<8x1088xf32> -> vector<8x1088xf32>
    %c0_98 = arith.constant 0 : index
    %c0_99 = arith.constant 0 : index
    %156 = vector.load %arg7[%c0_98, %c0_99] : memref<8x1xf32, #tpu.memory_space<vmem>>, vector<8x1xf32>
    %157 = vector.broadcast %156 : vector<8x1xf32> to vector<8x1088xf32>
    %158 = arith.addf %155, %157 : vector<8x1088xf32>
    %cst_100 = arith.constant 0.000000e+00 : f32
    %159 = vector.broadcast %cst_100 : f32 to vector<8x1088xf32>
    %160 = arith.maximumf %158, %159 : vector<8x1088xf32>
    %c0_101 = arith.constant 0 : index
    %c0_102 = arith.constant 0 : index
    %c0_103 = arith.constant 0 : index
    %161 = vector.load %arg9[%c0_101, %c0_102, %c0_103] : memref<1x8x1088xf32, #tpu.memory_space<vmem>>, vector<1x8x1088xf32>
    %162 = vector.shape_cast %161 : vector<1x8x1088xf32> to vector<8x1088xf32>
    %163 = vector.shape_cast %160 : vector<8x1088xf32> to vector<1x8x1088xf32>
    tpu.vector_store %arg9[%c0_101, %c0_102, %c0_103], %163 {strides = array<i32>} : memref<1x8x1088xf32, #tpu.memory_space<vmem>>, vector<1x8x1088xf32>,
    return
  }
  func.func @transform_0(%arg0: i32) -> (i32, i32, i32) {
    %c0_i32 = arith.constant 0 : i32
    %c0_i32_0 = arith.constant 0 : i32
    %c0_i32_1 = arith.constant 0 : i32
    return %arg0, %c0_i32, %c0_i32_0 : i32, i32, i32
  }
  func.func @transform_1(%arg0: i32) -> (i32, i32) {
    %c0_i32 = arith.constant 0 : i32
    %c0_i32_0 = arith.constant 0 : i32
    %c0_i32_1 = arith.constant 0 : i32
    return %c0_i32, %c0_i32_0 : i32, i32
  }
  func.func @transform_2(%arg0: i32) -> (i32, i32) {
    %c0_i32 = arith.constant 0 : i32
    %c0_i32_0 = arith.constant 0 : i32
    %c0_i32_1 = arith.constant 0 : i32
    return %c0_i32, %c0_i32_0 : i32, i32
  }
  func.func @transform_3(%arg0: i32) -> (i32, i32) {
    %c0_i32 = arith.constant 0 : i32
    %c0_i32_0 = arith.constant 0 : i32
    %c0_i32_1 = arith.constant 0 : i32
    return %c0_i32, %c0_i32_0 : i32, i32
  }
  func.func @transform_4(%arg0: i32) -> (i32, i32) {
    %c0_i32 = arith.constant 0 : i32
    %c0_i32_0 = arith.constant 0 : i32
    %c0_i32_1 = arith.constant 0 : i32
    return %c0_i32, %c0_i32_0 : i32, i32
  }
  func.func @transform_5(%arg0: i32) -> (i32, i32) {
    %c0_i32 = arith.constant 0 : i32
    %c0_i32_0 = arith.constant 0 : i32
    %c0_i32_1 = arith.constant 0 : i32
    return %c0_i32, %c0_i32_0 : i32, i32
  }
  func.func @transform_6(%arg0: i32) -> (i32, i32) {
    %c0_i32 = arith.constant 0 : i32
    %c0_i32_0 = arith.constant 0 : i32
    %c0_i32_1 = arith.constant 0 : i32
    return %c0_i32, %c0_i32_0 : i32, i32
  }
  func.func @transform_7(%arg0: i32) -> (i32, i32) {
    %c0_i32 = arith.constant 0 : i32
    %c0_i32_0 = arith.constant 0 : i32
    %c0_i32_1 = arith.constant 0 : i32
    return %c0_i32, %c0_i32_0 : i32, i32
  }
  func.func @transform_8(%arg0: i32) -> (i32, i32, i32) {
    %c0_i32 = arith.constant 0 : i32
    %c0_i32_0 = arith.constant 0 : i32
    %c0_i32_1 = arith.constant 0 : i32
    return %arg0, %c0_i32, %c0_i32_0 : i32, i32, i32
  }
}

</mosaic_0001>

<llo_original>
// kernel: decode_forward.1
$region0: #{decode_forward.1}
  #allocation0 [shape = 'u32[]', space=smem, size = 0x4, offset = 0x4, fixed_abs, tag = 'smem constant byte address 0x4 - core index']
  #allocation1 [shape = 'u32[144,128]{1,0:T(1,128)}', space=vmem, size = 0x12000, scoped, tag = 'internal scratch']
  #allocation2 [shape = 'f32[8,1158]{1,0:T(8,128)}', space=vmem, size = 0xa000, scoped, tag = 'scratch operand']
  #allocation3 [shape = 'f32[8,1158]{1,0:T(8,128)}', space=vmem, size = 0xa000, scoped, tag = 'scratch operand']
  #allocation4 [shape = 'f32[8,1158]{1,0:T(8,128)}', space=vmem, size = 0xa000, scoped, tag = 'scratch operand']
  %s0 = inlined_call_operand.vmem [shape: f32[2,4,256], index: 0, kind: input, shape index: {}]
  %s1 = inlined_call_operand.vmem [shape: f32[8,72], index: 1, kind: input, shape index: {}]
  %s2 = inlined_call_operand.vmem [shape: f32[8,1], index: 2, kind: input, shape index: {}]
  %s3 = inlined_call_operand.vmem [shape: f32[8,72], index: 3, kind: input, shape index: {}]
  %s4 = inlined_call_operand.vmem [shape: f32[8,1], index: 4, kind: input, shape index: {}]
  %s5 = inlined_call_operand.vmem [shape: f32[8,72], index: 5, kind: input, shape index: {}]
  %s6 = inlined_call_operand.vmem [shape: f32[8,1], index: 6, kind: input, shape index: {}]
  %s7 = inlined_call_operand.vmem [shape: f32[1,1088], index: 7, kind: input, shape index: {}]
  %s8 = inlined_call_operand.vmem [shape: f32[2,8,1088], index: 8, kind: output, shape index: {}]
  %s9 = sld [smem:[#allocation0]]
  $region65: #{decode_forward.1} parent=0
    _
  %s11 = ssub.s32 1, %s9
  %s12 = scalar_select 0, %s11, %s9
  loop: start=0, step=1, limit=4
  $region2: #{decode_forward.1} parent=0 // loop_pre_header
    _
  $region3: #{decode_forward.1} parent=0 // loop_header
    %s14 = sphi 0, %s18
    %p15 = scmp.ge.s32.totalorder %s14, 4
    %s24 = sphi 0, %s26
    %s27 = sphi 0, %s24
    %s28 = sphi 0, %s27
    %s44 = sphi 0, %s28
    %s48 = sphi 0, %s48
    %s50 = sphi 0, %s48
    %s51 = sphi 0, %s50
    %s65 = sphi 0, %s51
    %s69 = sphi 0, %s69
    %s71 = sphi 0, %s69
    %s72 = sphi 0, %s71
    %s86 = sphi 0, %s72
    %s90 = sphi 0, %s90
    %s92 = sphi 0, %s90
    %s93 = sphi 0, %s92
    %s107 = sphi 0, %s93
    %s111 = sphi 0, %s111
    %s113 = sphi 0, %s111
    %s114 = sphi 0, %s113
    %s128 = sphi 0, %s114
    %s132 = sphi 0, %s132
    %s134 = sphi 0, %s132
    %s135 = sphi 0, %s134
    %s149 = sphi 0, %s135
    %s153 = sphi 0, %s153
    %s155 = sphi 0, %s153
    %s156 = sphi 0, %s155
    %s170 = sphi 0, %s156
    %s174 = sphi 0, %s174
    %s176 = sphi 0, %s174
    %s177 = sphi 0, %s176
    %s191 = sphi 0, %s177
    %s197 = sphi 0, %s199
    %s200 = sphi 0, %s197
    %s201 = sphi 0, %s200
    %s217 = sphi 0, %s201
  $region4: #{decode_forward.1} parent=0 // loop_header_branch
    %17 = sbr.rel (%p15) target = $region8
  $region5: #{decode_forward.1} parent=0 // loop_body
    %s19 = ssub.s32 %s14, 1
    %s20 = ssub.s32 %s14, 2
    %s21 = sadd.s32 %s14, 1
    %s22 = ssub.s32 %s14, %s21
    %p23 = scmp.eq.s32.totalorder %s22, 0
    %s25 = sadd.s32 %s24, 1
    %s26 = scalar_select %p23, %s24, %s25
    %p29 = pneg %p23
    %p30 = scmp.eq.s32.totalorder %s14, 1
    %p31 = por %p29, %p30
    %p32 = scmp.ne.s32.totalorder %s24, %s27
    %p33 = scmp.eq.s32.totalorder %s14, 0
    %p34 = por %p32, %p33
    %p35 = scmp.ne.s32.totalorder %s24, %s27
    %p36 = scmp.eq.s32.totalorder %s19, 1
    %p37 = por %p35, %p36
    %p38 = scmp.ne.s32.totalorder %s27, %s28
    %p39 = scmp.eq.s32.totalorder %s19, 0
    %p40 = por %p38, %p39
    %p41 = scmp.ne.s32.totalorder %s27, %s28
    %p42 = scmp.eq.s32.totalorder %s20, 1
    %p43 = por %p41, %p42
    %p45 = scmp.ne.s32.totalorder %s28, %s44
    %p46 = scmp.eq.s32.totalorder %s20, 0
    %p47 = por %p45, %p46
    %s49 = sadd.s32 %s48, 1
    %p52 = scmp.eq.s32.totalorder %s14, 1
    %p53 = scmp.ne.s32.totalorder %s48, %s50
    %p54 = scmp.eq.s32.totalorder %s14, 0
    %p55 = por %p53, %p54
    %p56 = scmp.ne.s32.totalorder %s48, %s50
    %p57 = scmp.eq.s32.totalorder %s19, 1
    %p58 = por %p56, %p57
    %p59 = scmp.ne.s32.totalorder %s50, %s51
    %p60 = scmp.eq.s32.totalorder %s19, 0
    %p61 = por %p59, %p60
    %p62 = scmp.ne.s32.totalorder %s50, %s51
    %p63 = scmp.eq.s32.totalorder %s20, 1
    %p64 = por %p62, %p63
    %p66 = scmp.ne.s32.totalorder %s51, %s65
    %p67 = scmp.eq.s32.totalorder %s20, 0
    %p68 = por %p66, %p67
    %s70 = sadd.s32 %s69, 1
    %p73 = scmp.eq.s32.totalorder %s14, 1
    %p74 = scmp.ne.s32.totalorder %s69, %s71
    %p75 = scmp.eq.s32.totalorder %s14, 0
    %p76 = por %p74, %p75
    %p77 = scmp.ne.s32.totalorder %s69, %s71
    %p78 = scmp.eq.s32.totalorder %s19, 1
    %p79 = por %p77, %p78
    %p80 = scmp.ne.s32.totalorder %s71, %s72
    %p81 = scmp.eq.s32.totalorder %s19, 0
    %p82 = por %p80, %p81
    %p83 = scmp.ne.s32.totalorder %s71, %s72
    %p84 = scmp.eq.s32.totalorder %s20, 1
    %p85 = por %p83, %p84
    %p87 = scmp.ne.s32.totalorder %s72, %s86
    %p88 = scmp.eq.s32.totalorder %s20, 0
    %p89 = por %p87, %p88
    %s91 = sadd.s32 %s90, 1
    %p94 = scmp.eq.s32.totalorder %s14, 1
    %p95 = scmp.ne.s32.totalorder %s90, %s92
    %p96 = scmp.eq.s32.totalorder %s14, 0
    %p97 = por %p95, %p96
    %p98 = scmp.ne.s32.totalorder %s90, %s92
    %p99 = scmp.eq.s32.totalorder %s19, 1
    %p100 = por %p98, %p99
    %p101 = scmp.ne.s32.totalorder %s92, %s93
    %p102 = scmp.eq.s32.totalorder %s19, 0
    %p103 = por %p101, %p102
    %p104 = scmp.ne.s32.totalorder %s92, %s93
    %p105 = scmp.eq.s32.totalorder %s20, 1
    %p106 = por %p104, %p105
    %p108 = scmp.ne.s32.totalorder %s93, %s107
    %p109 = scmp.eq.s32.totalorder %s20, 0
    %p110 = por %p108, %p109
    %s112 = sadd.s32 %s111, 1
    %p115 = scmp.eq.s32.totalorder %s14, 1
    %p116 = scmp.ne.s32.totalorder %s111, %s113
    %p117 = scmp.eq.s32.totalorder %s14, 0
    %p118 = por %p116, %p117
    %p119 = scmp.ne.s32.totalorder %s111, %s113
    %p120 = scmp.eq.s32.totalorder %s19, 1
    %p121 = por %p119, %p120
    %p122 = scmp.ne.s32.totalorder %s113, %s114
    %p123 = scmp.eq.s32.totalorder %s19, 0
    %p124 = por %p122, %p123
    %p125 = scmp.ne.s32.totalorder %s113, %s114
    %p126 = scmp.eq.s32.totalorder %s20, 1
    %p127 = por %p125, %p126
    %p129 = scmp.ne.s32.totalorder %s114, %s128
    %p130 = scmp.eq.s32.totalorder %s20, 0
    %p131 = por %p129, %p130
    %s133 = sadd.s32 %s132, 1
    %p136 = scmp.eq.s32.totalorder %s14, 1
    %p137 = scmp.ne.s32.totalorder %s132, %s134
    %p138 = scmp.eq.s32.totalorder %s14, 0
    %p139 = por %p137, %p138
    %p140 = scmp.ne.s32.totalorder %s132, %s134
    %p141 = scmp.eq.s32.totalorder %s19, 1
    %p142 = por %p140, %p141
    %p143 = scmp.ne.s32.totalorder %s134, %s135
    %p144 = scmp.eq.s32.totalorder %s19, 0
    %p145 = por %p143, %p144
    %p146 = scmp.ne.s32.totalorder %s134, %s135
    %p147 = scmp.eq.s32.totalorder %s20, 1
    %p148 = por %p146, %p147
    %p150 = scmp.ne.s32.totalorder %s135, %s149
    %p151 = scmp.eq.s32.totalorder %s20, 0
    %p152 = por %p150, %p151
    %s154 = sadd.s32 %s153, 1
    %p157 = scmp.eq.s32.totalorder %s14, 1
    %p158 = scmp.ne.s32.totalorder %s153, %s155
    %p159 = scmp.eq.s32.totalorder %s14, 0
    %p160 = por %p158, %p159
    %p161 = scmp.ne.s32.totalorder %s153, %s155
    %p162 = scmp.eq.s32.totalorder %s19, 1
    %p163 = por %p161, %p162
    %p164 = scmp.ne.s32.totalorder %s155, %s156
    %p165 = scmp.eq.s32.totalorder %s19, 0
    %p166 = por %p164, %p165
    %p167 = scmp.ne.s32.totalorder %s155, %s156
    %p168 = scmp.eq.s32.totalorder %s20, 1
    %p169 = por %p167, %p168
    %p171 = scmp.ne.s32.totalorder %s156, %s170
    %p172 = scmp.eq.s32.totalorder %s20, 0
    %p173 = por %p171, %p172
    %s175 = sadd.s32 %s174, 1
    %p178 = scmp.eq.s32.totalorder %s14, 1
    %p179 = scmp.ne.s32.totalorder %s174, %s176
    %p180 = scmp.eq.s32.totalorder %s14, 0
    %p181 = por %p179, %p180
    %p182 = scmp.ne.s32.totalorder %s174, %s176
    %p183 = scmp.eq.s32.totalorder %s19, 1
    %p184 = por %p182, %p183
    %p185 = scmp.ne.s32.totalorder %s176, %s177
    %p186 = scmp.eq.s32.totalorder %s19, 0
    %p187 = por %p185, %p186
    %p188 = scmp.ne.s32.totalorder %s176, %s177
    %p189 = scmp.eq.s32.totalorder %s20, 1
    %p190 = por %p188, %p189
    %p192 = scmp.ne.s32.totalorder %s177, %s191
    %p193 = scmp.eq.s32.totalorder %s20, 0
    %p194 = por %p192, %p193
    %s195 = ssub.s32 %s14, %s21
    %p196 = scmp.eq.s32.totalorder %s195, 0
    %s198 = sadd.s32 %s197, 1
    %s199 = scalar_select %p196, %s197, %s198
    %p202 = pneg %p196
    %p203 = scmp.eq.s32.totalorder %s14, 1
    %p204 = por %p202, %p203
    %p205 = scmp.ne.s32.totalorder %s197, %s200
    %p206 = scmp.eq.s32.totalorder %s14, 0
    %p207 = por %p205, %p206
    %p208 = scmp.ne.s32.totalorder %s197, %s200
    %p209 = scmp.eq.s32.totalorder %s19, 1
    %p210 = por %p208, %p209
    %p211 = scmp.ne.s32.totalorder %s200, %s201
    %p212 = scmp.eq.s32.totalorder %s19, 0
    %p213 = por %p211, %p212
    %p214 = scmp.ne.s32.totalorder %s200, %s201
    %p215 = scmp.eq.s32.totalorder %s20, 1
    %p216 = por %p214, %p215
    %p218 = scmp.ne.s32.totalorder %s201, %s217
    %p219 = scmp.eq.s32.totalorder %s20, 0
    %p220 = por %p218, %p219
    %p221 = scmp.le.s32.totalorder 1, %s14
    %p222 = scmp.lt.s32.totalorder %s14, 3
    %p223 = pnand %p221, %p222
    %p224 = pneg %p223
    // Predicated region
    $region9: #{decode_forward.1} parent=5 // pred_check
      _
    $region10: #{decode_forward.1} parent=5 // pred_check_branch
      %226 = sbr.rel (%p223) target = $region12
    $region11: #{decode_forward.1} parent=5 // pred_region
      %s227 = ssub.s32 %s14, 1
      // Predicated region
      $region13: #{decode_forward.1} parent=11 // pred_check
        %p228 = pneg %p61
      $region14: #{decode_forward.1} parent=11 // pred_check_branch
        %230 = sbr.rel (%p228) target = $region16
      $region15: #{decode_forward.1} parent=11 // pred_region
        _
      $region16: #{decode_forward.1} parent=11 // pred_fallthru
        _
      // Predicated region
      $region17: #{decode_forward.1} parent=11 // pred_check
        %p231 = pneg %p82
      $region18: #{decode_forward.1} parent=11 // pred_check_branch
        %233 = sbr.rel (%p231) target = $region20
      $region19: #{decode_forward.1} parent=11 // pred_region
        _
      $region20: #{decode_forward.1} parent=11 // pred_fallthru
        _
      // Predicated region
      $region21: #{decode_forward.1} parent=11 // pred_check
        %p234 = pneg %p103
      $region22: #{decode_forward.1} parent=11 // pred_check_branch
        %236 = sbr.rel (%p234) target = $region24
      $region23: #{decode_forward.1} parent=11 // pred_region
        _
      $region24: #{decode_forward.1} parent=11 // pred_fallthru
        _
      // Predicated region
      $region25: #{decode_forward.1} parent=11 // pred_check
        %p237 = pneg %p124
      $region26: #{decode_forward.1} parent=11 // pred_check_branch
        %239 = sbr.rel (%p237) target = $region28
      $region27: #{decode_forward.1} parent=11 // pred_region
        _
      $region28: #{decode_forward.1} parent=11 // pred_fallthru
        _
      // Predicated region
      $region29: #{decode_forward.1} parent=11 // pred_check
        %p240 = pneg %p145
      $region30: #{decode_forward.1} parent=11 // pred_check_branch
        %242 = sbr.rel (%p240) target = $region32
      $region31: #{decode_forward.1} parent=11 // pred_region
        _
      $region32: #{decode_forward.1} parent=11 // pred_fallthru
        _
      // Predicated region
      $region33: #{decode_forward.1} parent=11 // pred_check
        %p243 = pneg %p166
      $region34: #{decode_forward.1} parent=11 // pred_check_branch
        %245 = sbr.rel (%p243) target = $region36
      $region35: #{decode_forward.1} parent=11 // pred_region
        _
      $region36: #{decode_forward.1} parent=11 // pred_fallthru
        _
      // Predicated region
      $region37: #{decode_forward.1} parent=11 // pred_check
        %p246 = pneg %p187
      $region38: #{decode_forward.1} parent=11 // pred_check_branch
        %248 = sbr.rel (%p246) target = $region40
      $region39: #{decode_forward.1} parent=11 // pred_region
        _
      $region40: #{decode_forward.1} parent=11 // pred_fallthru
        _
    $region12: #{decode_forward.1} parent=5 // pred_fallthru
      _
    %p249 = scmp.lt.s32.totalorder %s14, 2
    // Predicated region
    $region41: #{decode_forward.1} parent=5 // pred_check
      %p250 = pneg %p249
    $region42: #{decode_forward.1} parent=5 // pred_check_branch
      %252 = sbr.rel (%p250) target = $region44
    $region43: #{decode_forward.1} parent=5 // pred_region
      // Predicated region
      $region45: #{decode_forward.1} parent=43 // pred_check
        %p253 = pneg %p34
      $region46: #{decode_forward.1} parent=43 // pred_check_branch
        %255 = sbr.rel (%p253) target = $region48
      $region47: #{decode_forward.1} parent=43 // pred_region
        %p256 = scmp.lt.s32.totalorder %s14, 1
        %s257 = scalar_select %p256, %s14, 1
        %s258 = smul.addr %s257, 2
        %s259 = smul.addr %s258, 4
        %s260 = scalar_lea.vmem %s0, %s259
      $region48: #{decode_forward.1} parent=43 // pred_fallthru
        _
    $region44: #{decode_forward.1} parent=5 // pred_fallthru
      _
    %p261 = scmp.le.s32.totalorder 1, %s14
    %p262 = scmp.lt.s32.totalorder %s14, 3
    %p263 = pnand %p261, %p262
    %p264 = pneg %p263
    // Predicated region
    $region49: #{decode_forward.1} parent=5 // pred_check
      _
    $region50: #{decode_forward.1} parent=5 // pred_check_branch
      %266 = sbr.rel (%p263) target = $region52
    $region51: #{decode_forward.1} parent=5 // pred_region
      %s267 = ssub.s32 %s14, 1
      %p268 = scmp.lt.s32.totalorder %s19, 1
      %s269 = scalar_select %p268, %s19, 1
      %s270 = smul.addr %s269, 2
      %s271 = smul.addr %s270, 4
      %s272 = scalar_lea.vmem %s0, %s271
      %p273 = pneg %p40
      %p274 = pneg %p37
      %p275 = pneg %p61
      %p276 = pneg %p58
      %p277 = pneg %p82
      %p278 = pneg %p79
      %p279 = pneg %p103
      %p280 = pneg %p100
      %p281 = pneg %p124
      %p282 = pneg %p121
      %p283 = pneg %p145
      %p284 = pneg %p142
      %p285 = pneg %p166
      %p286 = pneg %p163
      %p287 = pneg %p187
      %p288 = pneg %p184
      %p289 = pneg %p213
      %p290 = pneg %p210
      %p291 = scmp.lt.s32.totalorder %s19, 1
      %s292 = scalar_select %p291, %s19, 1
      %s293 = smul.addr %s292, 9
      %s294 = smul.addr %s293, 8
      %s295 = scalar_lea.vmem %s8, %s294
      %p296 = scmp.lt.s32.totalorder %s19, 1
      %s297 = scalar_select %p296, %s19, 1
      %s298 = smul.addr %s297, 2
      %s299 = smul.addr %s298, 4
      %s300 = scalar_lea.vmem %s0, %s299
      %p301 = scmp.lt.s32.totalorder %s19, 1
      %s302 = scalar_select %p301, %s19, 1
      %s303 = smul.addr %s302, 9
      %s304 = smul.addr %s303, 8
      %s305 = scalar_lea.vmem %s8, %s304
      %306 = vst [vmem:[#allocation2] sm:$0xff] 0.0
      %307 = vst [vmem:[#allocation2 + $0x8] sm:$0xff] 0.0
      %308 = vst [vmem:[#allocation2 + $0x10] sm:$0xff] 0.0
      %309 = vst [vmem:[#allocation2 + $0x18] sm:$0xff] 0.0
      %310 = vst [vmem:[#allocation2 + $0x20] sm:$0xff] 0.0
      %311 = vst [vmem:[#allocation2 + $0x28] sm:$0xff] 0.0
      %312 = vst [vmem:[#allocation2 + $0x30] sm:$0xff] 0.0
      %313 = vst [vmem:[#allocation2 + $0x38] sm:$0xff] 0.0
      %314 = vst [vmem:[#allocation2 + $0x40] sm:$0xff] 0.0
      %vm315 = vcmask 48128
      %316 = vst.msk [vmem:[#allocation2 + $0x48] sm:$0xff] %vm315, 0.0
      %317 = vst [vmem:[#allocation3] sm:$0xff] 0.0
      %318 = vst [vmem:[#allocation3 + $0x8] sm:$0xff] 0.0
      %319 = vst [vmem:[#allocation3 + $0x10] sm:$0xff] 0.0
      %320 = vst [vmem:[#allocation3 + $0x18] sm:$0xff] 0.0
      %321 = vst [vmem:[#allocation3 + $0x20] sm:$0xff] 0.0
      %322 = vst [vmem:[#allocation3 + $0x28] sm:$0xff] 0.0
      %323 = vst [vmem:[#allocation3 + $0x30] sm:$0xff] 0.0
      %324 = vst [vmem:[#allocation3 + $0x38] sm:$0xff] 0.0
      %325 = vst [vmem:[#allocation3 + $0x40] sm:$0xff] 0.0
      %326 = vst.msk [vmem:[#allocation3 + $0x48] sm:$0xff] %vm315, 0.0
      %327 = vst [vmem:[#allocation4] sm:$0xff] 0.0
      %328 = vst [vmem:[#allocation4 + $0x8] sm:$0xff] 0.0
      %329 = vst [vmem:[#allocation4 + $0x10] sm:$0xff] 0.0
      %330 = vst [vmem:[#allocation4 + $0x18] sm:$0xff] 0.0
      %331 = vst [vmem:[#allocation4 + $0x20] sm:$0xff] 0.0
      %332 = vst [vmem:[#allocation4 + $0x28] sm:$0xff] 0.0
      %333 = vst [vmem:[#allocation4 + $0x30] sm:$0xff] 0.0
      %334 = vst [vmem:[#allocation4 + $0x38] sm:$0xff] 0.0
      %335 = vst [vmem:[#allocation4 + $0x40] sm:$0xff] 0.0
      %336 = vst.msk [vmem:[#allocation4 + $0x48] sm:$0xff] %vm315, 0.0
      %v337 = vlaneseq
      %v338 = vshrl.u32 %v337, 7
      %v339 = vadd.s32 %v338, 8
      %v340 = vlaneseq
      %v341 = vand.u32 %v340, 127
      %v342 = vadd.s32 %v341, 128
      %v343 = vadd.s32 %v341, 256
      %v344 = vadd.s32 %v341, 384
      %v345 = vadd.s32 %v341, 512
      %v346 = vmul.u32 %v338, 2
      %v347 = vmul.u32 %v339, 2
      %v348 = vadd.s32 %v346, 1
      %v349 = vadd.s32 %v347, 1
      %vm350 = vcmp.eq.s32.totalorder %v341, %v348
      %vm351 = vcmp.eq.s32.totalorder %v342, %v348
      %vm352 = vcmp.eq.s32.totalorder %v343, %v348
      %vm353 = vcmp.eq.s32.totalorder %v344, %v348
      %vm354 = vcmp.eq.s32.totalorder %v345, %v348
      %vm355 = vcmp.eq.s32.totalorder %v341, %v349
      %vm356 = vcmp.eq.s32.totalorder %v342, %v349
      %vm357 = vcmp.eq.s32.totalorder %v343, %v349
      %vm358 = vcmp.eq.s32.totalorder %v344, %v349
      %vm359 = vcmp.eq.s32.totalorder %v345, %v349
      %v360 = vsel %vm350, 1, 0
      %v361 = vsel %vm351, 1, 0
      %v362 = vsel %vm352, 1, 0
      %v363 = vsel %vm353, 1, 0
      %v364 = vsel %vm354, 1, 0
      %v365 = vsel %vm355, 1, 0
      %v366 = vsel %vm356, 1, 0
      %v367 = vsel %vm357, 1, 0
      %v368 = vsel %vm358, 1, 0
      %v369 = vsel %vm359, 1, 0
      %v370 = vcvt.s32.f32 %v360
      %v371 = vcvt.s32.f32 %v361
      %v372 = vcvt.s32.f32 %v362
      %v373 = vcvt.s32.f32 %v363
      %v374 = vcvt.s32.f32 %v364
      %v375 = vcvt.s32.f32 %v365
      %v376 = vcvt.s32.f32 %v366
      %v377 = vcvt.s32.f32 %v367
      %v378 = vcvt.s32.f32 %v368
      %v379 = vcvt.s32.f32 %v369
      %v380 = vadd.s32 %v346, 68
      %v381 = vadd.s32 %v347, 68
      %v382 = vadd.s32 %v380, 1
      %v383 = vadd.s32 %v381, 1
      %vm384 = vcmp.eq.s32.totalorder %v341, %v382
      %vm385 = vcmp.eq.s32.totalorder %v342, %v382
      %vm386 = vcmp.eq.s32.totalorder %v343, %v382
      %vm387 = vcmp.eq.s32.totalorder %v344, %v382
      %vm388 = vcmp.eq.s32.totalorder %v345, %v382
      %vm389 = vcmp.eq.s32.totalorder %v341, %v383
      %vm390 = vcmp.eq.s32.totalorder %v342, %v383
      %vm391 = vcmp.eq.s32.totalorder %v343, %v383
      %vm392 = vcmp.eq.s32.totalorder %v344, %v383
      %vm393 = vcmp.eq.s32.totalorder %v345, %v383
      %v394 = vsel %vm384, 1, 0
      %v395 = vsel %vm385, 1, 0
      %v396 = vsel %vm386, 1, 0
      %v397 = vsel %vm387, 1, 0
      %v398 = vsel %vm388, 1, 0
      %v399 = vsel %vm389, 1, 0
      %v400 = vsel %vm390, 1, 0
      %v401 = vsel %vm391, 1, 0
      %v402 = vsel %vm392, 1, 0
      %v403 = vsel %vm393, 1, 0
      %v404 = vcvt.s32.f32 %v394
      %v405 = vcvt.s32.f32 %v395
      %v406 = vcvt.s32.f32 %v396
      %v407 = vcvt.s32.f32 %v397
      %v408 = vcvt.s32.f32 %v398
      %v409 = vcvt.s32.f32 %v399
      %v410 = vcvt.s32.f32 %v400
      %v411 = vcvt.s32.f32 %v401
      %v412 = vcvt.s32.f32 %v402
      %v413 = vcvt.s32.f32 %v403
      %v414 = vadd.s32 %v346, 136
      %v415 = vadd.s32 %v347, 136
      %v416 = vadd.s32 %v414, 1
      %v417 = vadd.s32 %v415, 1
      %vm418 = vcmp.eq.s32.totalorder %v341, %v416
      %vm419 = vcmp.eq.s32.totalorder %v342, %v416
      %vm420 = vcmp.eq.s32.totalorder %v343, %v416
      %vm421 = vcmp.eq.s32.totalorder %v344, %v416
      %vm422 = vcmp.eq.s32.totalorder %v345, %v416
      %vm423 = vcmp.eq.s32.totalorder %v341, %v417
      %vm424 = vcmp.eq.s32.totalorder %v342, %v417
      %vm425 = vcmp.eq.s32.totalorder %v343, %v417
      %vm426 = vcmp.eq.s32.totalorder %v344, %v417
      %vm427 = vcmp.eq.s32.totalorder %v345, %v417
      %v428 = vsel %vm418, 1, 0
      %v429 = vsel %vm419, 1, 0
      %v430 = vsel %vm420, 1, 0
      %v431 = vsel %vm421, 1, 0
      %v432 = vsel %vm422, 1, 0
      %v433 = vsel %vm423, 1, 0
      %v434 = vsel %vm424, 1, 0
      %v435 = vsel %vm425, 1, 0
      %v436 = vsel %vm426, 1, 0
      %v437 = vsel %vm427, 1, 0
      %v438 = vcvt.s32.f32 %v428
      %v439 = vcvt.s32.f32 %v429
      %v440 = vcvt.s32.f32 %v430
      %v441 = vcvt.s32.f32 %v431
      %v442 = vcvt.s32.f32 %v432
      %v443 = vcvt.s32.f32 %v433
      %v444 = vcvt.s32.f32 %v434
      %v445 = vcvt.s32.f32 %v435
      %v446 = vcvt.s32.f32 %v436
      %v447 = vcvt.s32.f32 %v437
      %v448 = vadd.s32 %v346, 204
      %v449 = vadd.s32 %v347, 204
      %v450 = vadd.s32 %v448, 1
      %v451 = vadd.s32 %v449, 1
      %vm452 = vcmp.eq.s32.totalorder %v341, %v450
      %vm453 = vcmp.eq.s32.totalorder %v342, %v450
      %vm454 = vcmp.eq.s32.totalorder %v343, %v450
      %vm455 = vcmp.eq.s32.totalorder %v344, %v450
      %vm456 = vcmp.eq.s32.totalorder %v345, %v450
      %vm457 = vcmp.eq.s32.totalorder %v341, %v451
      %vm458 = vcmp.eq.s32.totalorder %v342, %v451
      %vm459 = vcmp.eq.s32.totalorder %v343, %v451
      %vm460 = vcmp.eq.s32.totalorder %v344, %v451
      %vm461 = vcmp.eq.s32.totalorder %v345, %v451
      %v462 = vsel %vm452, 1, 0
      %v463 = vsel %vm453, 1, 0
      %v464 = vsel %vm454, 1, 0
      %v465 = vsel %vm455, 1, 0
      %v466 = vsel %vm456, 1, 0
      %v467 = vsel %vm457, 1, 0
      %v468 = vsel %vm458, 1, 0
      %v469 = vsel %vm459, 1, 0
      %v470 = vsel %vm460, 1, 0
      %v471 = vsel %vm461, 1, 0
      %v472 = vcvt.s32.f32 %v462
      %v473 = vcvt.s32.f32 %v463
      %v474 = vcvt.s32.f32 %v464
      %v475 = vcvt.s32.f32 %v465
      %v476 = vcvt.s32.f32 %v466
      %v477 = vcvt.s32.f32 %v467
      %v478 = vcvt.s32.f32 %v468
      %v479 = vcvt.s32.f32 %v469
      %v480 = vcvt.s32.f32 %v470
      %v481 = vcvt.s32.f32 %v471
      %v482 = vadd.s32 %v346, 272
      %v483 = vadd.s32 %v347, 272
      %v484 = vadd.s32 %v482, 1
      %v485 = vadd.s32 %v483, 1
      %vm486 = vcmp.eq.s32.totalorder %v341, %v484
      %vm487 = vcmp.eq.s32.totalorder %v342, %v484
      %vm488 = vcmp.eq.s32.totalorder %v343, %v484
      %vm489 = vcmp.eq.s32.totalorder %v344, %v484
      %vm490 = vcmp.eq.s32.totalorder %v345, %v484
      %vm491 = vcmp.eq.s32.totalorder %v341, %v485
      %vm492 = vcmp.eq.s32.totalorder %v342, %v485
      %vm493 = vcmp.eq.s32.totalorder %v343, %v485
      %vm494 = vcmp.eq.s32.totalorder %v344, %v485
      %vm495 = vcmp.eq.s32.totalorder %v345, %v485
      %v496 = vsel %vm486, 1, 0
      %v497 = vsel %vm487, 1, 0
      %v498 = vsel %vm488, 1, 0
      %v499 = vsel %vm489, 1, 0
      %v500 = vsel %vm490, 1, 0
      %v501 = vsel %vm491, 1, 0
      %v502 = vsel %vm492, 1, 0
      %v503 = vsel %vm493, 1, 0
      %v504 = vsel %vm494, 1, 0
      %v505 = vsel %vm495, 1, 0
      %v506 = vcvt.s32.f32 %v496
      %v507 = vcvt.s32.f32 %v497
      %v508 = vcvt.s32.f32 %v498
      %v509 = vcvt.s32.f32 %v499
      %v510 = vcvt.s32.f32 %v500
      %v511 = vcvt.s32.f32 %v501
      %v512 = vcvt.s32.f32 %v502
      %v513 = vcvt.s32.f32 %v503
      %v514 = vcvt.s32.f32 %v504
      %v515 = vcvt.s32.f32 %v505
      %v516 = vadd.s32 %v346, 340
      %v517 = vadd.s32 %v347, 340
      %v518 = vadd.s32 %v516, 1
      %v519 = vadd.s32 %v517, 1
      %vm520 = vcmp.eq.s32.totalorder %v341, %v518
      %vm521 = vcmp.eq.s32.totalorder %v342, %v518
      %vm522 = vcmp.eq.s32.totalorder %v343, %v518
      %vm523 = vcmp.eq.s32.totalorder %v344, %v518
      %vm524 = vcmp.eq.s32.totalorder %v345, %v518
      %vm525 = vcmp.eq.s32.totalorder %v341, %v519
      %vm526 = vcmp.eq.s32.totalorder %v342, %v519
      %vm527 = vcmp.eq.s32.totalorder %v343, %v519
      %vm528 = vcmp.eq.s32.totalorder %v344, %v519
      %vm529 = vcmp.eq.s32.totalorder %v345, %v519
      %v530 = vsel %vm520, 1, 0
      %v531 = vsel %vm521, 1, 0
      %v532 = vsel %vm522, 1, 0
      %v533 = vsel %vm523, 1, 0
      %v534 = vsel %vm524, 1, 0
      %v535 = vsel %vm525, 1, 0
      %v536 = vsel %vm526, 1, 0
      %v537 = vsel %vm527, 1, 0
      %v538 = vsel %vm528, 1, 0
      %v539 = vsel %vm529, 1, 0
      %v540 = vcvt.s32.f32 %v530
      %v541 = vcvt.s32.f32 %v531
      %v542 = vcvt.s32.f32 %v532
      %v543 = vcvt.s32.f32 %v533
      %v544 = vcvt.s32.f32 %v534
      %v545 = vcvt.s32.f32 %v535
      %v546 = vcvt.s32.f32 %v536
      %v547 = vcvt.s32.f32 %v537
      %v548 = vcvt.s32.f32 %v538
      %v549 = vcvt.s32.f32 %v539
      %v550 = vadd.s32 %v346, 408
      %v551 = vadd.s32 %v347, 408
      %v552 = vadd.s32 %v550, 1
      %v553 = vadd.s32 %v551, 1
      %vm554 = vcmp.eq.s32.totalorder %v341, %v552
      %vm555 = vcmp.eq.s32.totalorder %v342, %v552
      %vm556 = vcmp.eq.s32.totalorder %v343, %v552
      %vm557 = vcmp.eq.s32.totalorder %v344, %v552
      %vm558 = vcmp.eq.s32.totalorder %v345, %v552
      %vm559 = vcmp.eq.s32.totalorder %v341, %v553
      %vm560 = vcmp.eq.s32.totalorder %v342, %v553
      %vm561 = vcmp.eq.s32.totalorder %v343, %v553
      %vm562 = vcmp.eq.s32.totalorder %v344, %v553
      %vm563 = vcmp.eq.s32.totalorder %v345, %v553
      %v564 = vsel %vm554, 1, 0
      %v565 = vsel %vm555, 1, 0
      %v566 = vsel %vm556, 1, 0
      %v567 = vsel %vm557, 1, 0
      %v568 = vsel %vm558, 1, 0
      %v569 = vsel %vm559, 1, 0
      %v570 = vsel %vm560, 1, 0
      %v571 = vsel %vm561, 1, 0
      %v572 = vsel %vm562, 1, 0
      %v573 = vsel %vm563, 1, 0
      %v574 = vcvt.s32.f32 %v564
      %v575 = vcvt.s32.f32 %v565
      %v576 = vcvt.s32.f32 %v566
      %v577 = vcvt.s32.f32 %v567
      %v578 = vcvt.s32.f32 %v568
      %v579 = vcvt.s32.f32 %v569
      %v580 = vcvt.s32.f32 %v570
      %v581 = vcvt.s32.f32 %v571
      %v582 = vcvt.s32.f32 %v572
      %v583 = vcvt.s32.f32 %v573
      %v584 = vadd.s32 %v346, 476
      %v585 = vadd.s32 %v347, 476
      %v586 = vadd.s32 %v584, 1
      %v587 = vadd.s32 %v585, 1
      %vm588 = vcmp.eq.s32.totalorder %v341, %v586
      %vm589 = vcmp.eq.s32.totalorder %v342, %v586
      %vm590 = vcmp.eq.s32.totalorder %v343, %v586
      %vm591 = vcmp.eq.s32.totalorder %v344, %v586
      %vm592 = vcmp.eq.s32.totalorder %v345, %v586
      %vm593 = vcmp.eq.s32.totalorder %v341, %v587
      %vm594 = vcmp.eq.s32.totalorder %v342, %v587
      %vm595 = vcmp.eq.s32.totalorder %v343, %v587
      %vm596 = vcmp.eq.s32.totalorder %v344, %v587
      %vm597 = vcmp.eq.s32.totalorder %v345, %v587
      %v598 = vsel %vm588, 1, 0
      %v599 = vsel %vm589, 1, 0
      %v600 = vsel %vm590, 1, 0
      %v601 = vsel %vm591, 1, 0
      %v602 = vsel %vm592, 1, 0
      %v603 = vsel %vm593, 1, 0
      %v604 = vsel %vm594, 1, 0
      %v605 = vsel %vm595, 1, 0
      %v606 = vsel %vm596, 1, 0
      %v607 = vsel %vm597, 1, 0
      %v608 = vcvt.s32.f32 %v598
      %v609 = vcvt.s32.f32 %v599
      %v610 = vcvt.s32.f32 %v600
      %v611 = vcvt.s32.f32 %v601
      %v612 = vcvt.s32.f32 %v602
      %v613 = vcvt.s32.f32 %v603
      %v614 = vcvt.s32.f32 %v604
      %v615 = vcvt.s32.f32 %v605
      %v616 = vcvt.s32.f32 %v606
      %v617 = vcvt.s32.f32 %v607
      %v618 = vld [vmem:[%s300] sm:$0xf]
      %619 = vmatprep.subr.mxu0 %v614
      %620 = vmatpush1.msra.mxu0 %v613
      %621 = vmatprep.subr.mxu0 %v609
      %622 = vmatpush1.msra.mxu0 %v608
      %623 = vmatprep.subr.mxu0 %v580
      %624 = vmatpush1.msra.mxu0 %v579
      %625 = vmatprep.subr.mxu0 %v575
      %626 = vmatpush1.msra.mxu0 %v574
      %627 = vmatprep.subr.mxu0 %v546
      %628 = vmatpush1.msra.mxu0 %v545
      %629 = vmatprep.subr.mxu0 %v541
      %630 = vmatpush1.msra.mxu0 %v540
      %631 = vmatprep.subr.mxu0 %v512
      %632 = vmatpush1.msra.mxu0 %v511
      %633 = vmatprep.subr.mxu0 %v507
      %634 = vmatpush1.msra.mxu0 %v506
      %635 = vmatprep.subr.mxu0 %v478
      %636 = vmatpush1.msra.mxu0 %v477
      %637 = vmatprep.subr.mxu0 %v473
      %638 = vmatpush1.msra.mxu0 %v472
      %639 = vmatprep.subr.mxu0 %v444
      %640 = vmatpush1.msra.mxu0 %v443
      %641 = vmatprep.subr.mxu0 %v439
      %642 = vmatpush1.msra.mxu0 %v438
      %643 = vmatprep.subr.mxu0 %v410
      %644 = vmatpush1.msra.mxu0 %v409
      %645 = vmatprep.subr.mxu0 %v405
      %646 = vmatpush1.msra.mxu0 %v404
      %647 = vmatprep.subr.mxu0 %v376
      %648 = vmatpush1.msra.mxu0 %v375
      %649 = vmatprep.subr.mxu0 %v371
      %650 = vmatpush1.msra.mxu0 %v370
      %651 = vmatprep.subr.mxu0 0.0
      %652 = vmatpush2.msra.mxu0 0.0
      %653 = vmatprep.subr.mxu0 0.0
      %654 = vmatpush2.msra.mxu0 0.0
      %655 = vmatprep.subr.mxu0 0.0
      %656 = vmatpush2.msra.mxu0 0.0
      %657 = vmatprep.subr.mxu0 0.0
      %658 = vmatpush2.msra.mxu0 0.0
      %659 = vmatprep.subr.mxu0 0.0
      %660 = vmatpush2.msra.mxu0 0.0
      %661 = vmatprep.subr.mxu0 0.0
      %662 = vmatpush2.msra.mxu0 0.0
      %663 = vmatprep.subr.mxu0 0.0
      %664 = vmatpush2.msra.mxu0 0.0
      %665 = vmatprep.subr.mxu0 0.0
      %666 = vmatpush2.msra.mxu0 0.0
      %667 = vmatprep.subr.mxu0 0.0
      %668 = vmatpush2.msra.mxu0 0.0
      %669 = vmatprep.subr.mxu0 0.0
      %670 = vmatpush2.msra.mxu0 0.0
      %671 = vmatprep.subr.mxu0 0.0
      %672 = vmatpush2.msra.mxu0 0.0
      %673 = vmatprep.subr.mxu0 0.0
      %674 = vmatpush2.msra.mxu0 0.0
      %675 = vmatprep.subr.mxu0 0.0
      %676 = vmatpush2.msra.mxu0 0.0
      %677 = vmatprep.subr.mxu0 0.0
      %678 = vmatpush2.msra.mxu0 0.0
      %679 = vmatprep.subr.mxu0 0.0
      %680 = vmatpush2.msra.mxu0 0.0
      %681 = vmatprep.subr.mxu0 0.0
      %682 = vmatpush2.msra.mxu0 0.0
      %683 = vmatprep.mubr.f32.mxu0 0.0
      %684 = vmatmul.mubr.f32.gmra.mxu0 %v618
      %v685 = vpop.f32.mrf.mxu0
      %v686 = vadd.f32 0.0, %v685
      %v687 = vpop.f32.mrf.mxu0
      %v688 = vadd.f32 0.0, %v687
      %689 = vdwg.mxu0
      %690 = vmatprep.subr.mxu0 %v616
      %691 = vmatpush1.msra.mxu0 %v615
      %692 = vmatprep.subr.mxu0 %v611
      %693 = vmatpush1.msra.mxu0 %v610
      %694 = vmatprep.subr.mxu0 %v582
      %695 = vmatpush1.msra.mxu0 %v581
      %696 = vmatprep.subr.mxu0 %v577
      %697 = vmatpush1.msra.mxu0 %v576
      %698 = vmatprep.subr.mxu0 %v548
      %699 = vmatpush1.msra.mxu0 %v547
      %700 = vmatprep.subr.mxu0 %v543
      %701 = vmatpush1.msra.mxu0 %v542
      %702 = vmatprep.subr.mxu0 %v514
      %703 = vmatpush1.msra.mxu0 %v513
      %704 = vmatprep.subr.mxu0 %v509
      %705 = vmatpush1.msra.mxu0 %v508
      %706 = vmatprep.subr.mxu0 %v480
      %707 = vmatpush1.msra.mxu0 %v479
      %708 = vmatprep.subr.mxu0 %v475
      %709 = vmatpush1.msra.mxu0 %v474
      %710 = vmatprep.subr.mxu0 %v446
      %711 = vmatpush1.msra.mxu0 %v445
      %712 = vmatprep.subr.mxu0 %v441
      %713 = vmatpush1.msra.mxu0 %v440
      %714 = vmatprep.subr.mxu0 %v412
      %715 = vmatpush1.msra.mxu0 %v411
      %716 = vmatprep.subr.mxu0 %v407
      %717 = vmatpush1.msra.mxu0 %v406
      %718 = vmatprep.subr.mxu0 %v378
      %719 = vmatpush1.msra.mxu0 %v377
      %720 = vmatprep.subr.mxu0 %v373
      %721 = vmatpush1.msra.mxu0 %v372
      %722 = vmatprep.subr.mxu0 0.0
      %723 = vmatpush2.msra.mxu0 0.0
      %724 = vmatprep.subr.mxu0 0.0
      %725 = vmatpush2.msra.mxu0 0.0
      %726 = vmatprep.subr.mxu0 0.0
      %727 = vmatpush2.msra.mxu0 0.0
      %728 = vmatprep.subr.mxu0 0.0
      %729 = vmatpush2.msra.mxu0 0.0
      %730 = vmatprep.subr.mxu0 0.0
      %731 = vmatpush2.msra.mxu0 0.0
      %732 = vmatprep.subr.mxu0 0.0
      %733 = vmatpush2.msra.mxu0 0.0
      %734 = vmatprep.subr.mxu0 0.0
      %735 = vmatpush2.msra.mxu0 0.0
      %736 = vmatprep.subr.mxu0 0.0
      %737 = vmatpush2.msra.mxu0 0.0
      %738 = vmatprep.subr.mxu0 0.0
      %739 = vmatpush2.msra.mxu0 0.0
      %740 = vmatprep.subr.mxu0 0.0
      %741 = vmatpush2.msra.mxu0 0.0
      %742 = vmatprep.subr.mxu0 0.0
      %743 = vmatpush2.msra.mxu0 0.0
      %744 = vmatprep.subr.mxu0 0.0
      %745 = vmatpush2.msra.mxu0 0.0
      %746 = vmatprep.subr.mxu0 0.0
      %747 = vmatpush2.msra.mxu0 0.0
      %748 = vmatprep.subr.mxu0 0.0
      %749 = vmatpush2.msra.mxu0 0.0
      %750 = vmatprep.subr.mxu0 0.0
      %751 = vmatpush2.msra.mxu0 0.0
      %752 = vmatprep.subr.mxu0 0.0
      %753 = vmatpush2.msra.mxu0 0.0
      %754 = vmatprep.mubr.f32.mxu0 0.0
      %755 = vmatmul.mubr.f32.gmra.mxu0 %v618
      %v756 = vpop.f32.mrf.mxu0
      %v757 = vadd.f32 0.0, %v756
      %v758 = vpop.f32.mrf.mxu0
      %v759 = vadd.f32 0.0, %v758
      %760 = vdwg.mxu0
      %761 = vmatprep.subr.mxu0 0.0
      %762 = vmatpush1.msra.mxu0 %v617
      %763 = vmatprep.subr.mxu0 0.0
      %764 = vmatpush1.msra.mxu0 %v612
      %765 = vmatprep.subr.mxu0 0.0
      %766 = vmatpush1.msra.mxu0 %v583
      %767 = vmatprep.subr.mxu0 0.0
      %768 = vmatpush1.msra.mxu0 %v578
      %769 = vmatprep.subr.mxu0 0.0
      %770 = vmatpush1.msra.mxu0 %v549
      %771 = vmatprep.subr.mxu0 0.0
      %772 = vmatpush1.msra.mxu0 %v544
      %773 = vmatprep.subr.mxu0 0.0
      %774 = vmatpush1.msra.mxu0 %v515
      %775 = vmatprep.subr.mxu0 0.0
      %776 = vmatpush1.msra.mxu0 %v510
      %777 = vmatprep.subr.mxu0 0.0
      %778 = vmatpush1.msra.mxu0 %v481
      %779 = vmatprep.subr.mxu0 0.0
      %780 = vmatpush1.msra.mxu0 %v476
      %781 = vmatprep.subr.mxu0 0.0
      %782 = vmatpush1.msra.mxu0 %v447
      %783 = vmatprep.subr.mxu0 0.0
      %784 = vmatpush1.msra.mxu0 %v442
      %785 = vmatprep.subr.mxu0 0.0
      %786 = vmatpush1.msra.mxu0 %v413
      %787 = vmatprep.subr.mxu0 0.0
      %788 = vmatpush1.msra.mxu0 %v408
      %789 = vmatprep.subr.mxu0 0.0
      %790 = vmatpush1.msra.mxu0 %v379
      %791 = vmatprep.subr.mxu0 0.0
      %792 = vmatpush1.msra.mxu0 %v374
      %793 = vmatprep.subr.mxu0 0.0
      %794 = vmatpush2.msra.mxu0 0.0
      %795 = vmatprep.subr.mxu0 0.0
      %796 = vmatpush2.msra.mxu0 0.0
      %797 = vmatprep.subr.mxu0 0.0
      %798 = vmatpush2.msra.mxu0 0.0
      %799 = vmatprep.subr.mxu0 0.0
      %800 = vmatpush2.msra.mxu0 0.0
      %801 = vmatprep.subr.mxu0 0.0
      %802 = vmatpush2.msra.mxu0 0.0
      %803 = vmatprep.subr.mxu0 0.0
      %804 = vmatpush2.msra.mxu0 0.0
      %805 = vmatprep.subr.mxu0 0.0
      %806 = vmatpush2.msra.mxu0 0.0
      %807 = vmatprep.subr.mxu0 0.0
      %808 = vmatpush2.msra.mxu0 0.0
      %809 = vmatprep.subr.mxu0 0.0
      %810 = vmatpush2.msra.mxu0 0.0
      %811 = vmatprep.subr.mxu0 0.0
      %812 = vmatpush2.msra.mxu0 0.0
      %813 = vmatprep.subr.mxu0 0.0
      %814 = vmatpush2.msra.mxu0 0.0
      %815 = vmatprep.subr.mxu0 0.0
      %816 = vmatpush2.msra.mxu0 0.0
      %817 = vmatprep.subr.mxu0 0.0
      %818 = vmatpush2.msra.mxu0 0.0
      %819 = vmatprep.subr.mxu0 0.0
      %820 = vmatpush2.msra.mxu0 0.0
      %821 = vmatprep.subr.mxu0 0.0
      %822 = vmatpush2.msra.mxu0 0.0
      %823 = vmatprep.subr.mxu0 0.0
      %824 = vmatpush2.msra.mxu0 0.0
      %825 = vmatprep.mubr.f32.mxu0 0.0
      %826 = vmatmul.mubr.f32.gmra.mxu0 %v618
      %v827 = vpop.f32.mrf.mxu0
      %v828 = vadd.f32 0.0, %v827
      %v829 = vpop.f32.mrf.mxu0
      %830 = vdwg.mxu0
      %836 = vrot.lane.b32.xlu0 %v686, 34
      %v837 = vpop.permute.xlu0 %836
      %838 = vrot.lane.b32.xlu0 %v688, 34
      %v839 = vpop.permute.xlu0 %838
      %840 = vrot.lane.b32.xlu0 %v757, 34
      %v841 = vpop.permute.xlu0 %840
      %842 = vrot.lane.b32.xlu0 %v759, 34
      %v843 = vpop.permute.xlu0 %842
      %844 = vrot.lane.b32.xlu0 %v828, 34
      %v845 = vpop.permute.xlu0 %844
      %vm846 = vcmask 277504
      %v847 = vsel %vm846, %v837, %v839
      %v848 = vsel %vm846, %v839, %v841
      %v849 = vsel %vm846, %v841, %v843
      %v850 = vsel %vm846, %v843, %v845
      %vm856 = vcmask 1043728
      %857 = vst.msk [vmem:[#allocation2] sm:$0xf] %vm856, %v837
      %858 = vst [vmem:[#allocation2 + $0x8] sm:$0xf] %v847
      %859 = vst [vmem:[#allocation2 + $0x10] sm:$0xf] %v848
      %860 = vst [vmem:[#allocation2 + $0x18] sm:$0xf] %v849
      %vm861 = vcmask 535552
      %862 = vst.msk [vmem:[#allocation2 + $0x20] sm:$0xf] %vm861, %v850
      %v863 = vld [vmem:[%s300 + $0x4] sm:$0xf]
      %864 = vmatprep.subr.mxu0 %v614
      %865 = vmatpush1.msra.mxu0 %v613
      %866 = vmatprep.subr.mxu0 %v609
      %867 = vmatpush1.msra.mxu0 %v608
      %868 = vmatprep.subr.mxu0 %v580
      %869 = vmatpush1.msra.mxu0 %v579
      %870 = vmatprep.subr.mxu0 %v575
      %871 = vmatpush1.msra.mxu0 %v574
      %872 = vmatprep.subr.mxu0 %v546
      %873 = vmatpush1.msra.mxu0 %v545
      %874 = vmatprep.subr.mxu0 %v541
      %875 = vmatpush1.msra.mxu0 %v540
      %876 = vmatprep.subr.mxu0 %v512
      %877 = vmatpush1.msra.mxu0 %v511
      %878 = vmatprep.subr.mxu0 %v507
      %879 = vmatpush1.msra.mxu0 %v506
      %880 = vmatprep.subr.mxu0 %v478
      %881 = vmatpush1.msra.mxu0 %v477
      %882 = vmatprep.subr.mxu0 %v473
      %883 = vmatpush1.msra.mxu0 %v472
      %884 = vmatprep.subr.mxu0 %v444
      %885 = vmatpush1.msra.mxu0 %v443
      %886 = vmatprep.subr.mxu0 %v439
      %887 = vmatpush1.msra.mxu0 %v438
      %888 = vmatprep.subr.mxu0 %v410
      %889 = vmatpush1.msra.mxu0 %v409
      %890 = vmatprep.subr.mxu0 %v405
      %891 = vmatpush1.msra.mxu0 %v404
      %892 = vmatprep.subr.mxu0 %v376
      %893 = vmatpush1.msra.mxu0 %v375
      %894 = vmatprep.subr.mxu0 %v371
      %895 = vmatpush1.msra.mxu0 %v370
      %896 = vmatprep.subr.mxu0 0.0
      %897 = vmatpush2.msra.mxu0 0.0
      %898 = vmatprep.subr.mxu0 0.0
      %899 = vmatpush2.msra.mxu0 0.0
      %900 = vmatprep.subr.mxu0 0.0
      %901 = vmatpush2.msra.mxu0 0.0
      %902 = vmatprep.subr.mxu0 0.0
      %903 = vmatpush2.msra.mxu0 0.0
      %904 = vmatprep.subr.mxu0 0.0
      %905 = vmatpush2.msra.mxu0 0.0
      %906 = vmatprep.subr.mxu0 0.0
      %907 = vmatpush2.msra.mxu0 0.0
      %908 = vmatprep.subr.mxu0 0.0
      %909 = vmatpush2.msra.mxu0 0.0
      %910 = vmatprep.subr.mxu0 0.0
      %911 = vmatpush2.msra.mxu0 0.0
      %912 = vmatprep.subr.mxu0 0.0
      %913 = vmatpush2.msra.mxu0 0.0
      %914 = vmatprep.subr.mxu0 0.0
      %915 = vmatpush2.msra.mxu0 0.0
      %916 = vmatprep.subr.mxu0 0.0
      %917 = vmatpush2.msra.mxu0 0.0
      %918 = vmatprep.subr.mxu0 0.0
      %919 = vmatpush2.msra.mxu0 0.0
      %920 = vmatprep.subr.mxu0 0.0
      %921 = vmatpush2.msra.mxu0 0.0
      %922 = vmatprep.subr.mxu0 0.0
      %923 = vmatpush2.msra.mxu0 0.0
      %924 = vmatprep.subr.mxu0 0.0
      %925 = vmatpush2.msra.mxu0 0.0
      %926 = vmatprep.subr.mxu0 0.0
      %927 = vmatpush2.msra.mxu0 0.0
      %928 = vmatprep.mubr.f32.mxu0 0.0
      %929 = vmatmul.mubr.f32.gmra.mxu0 %v863
      %v930 = vpop.f32.mrf.mxu0
      %v931 = vadd.f32 0.0, %v930
      %v932 = vpop.f32.mrf.mxu0
      %v933 = vadd.f32 0.0, %v932
      %934 = vdwg.mxu0
      %935 = vmatprep.subr.mxu0 %v616
      %936 = vmatpush1.msra.mxu0 %v615
      %937 = vmatprep.subr.mxu0 %v611
      %938 = vmatpush1.msra.mxu0 %v610
      %939 = vmatprep.subr.mxu0 %v582
      %940 = vmatpush1.msra.mxu0 %v581
      %941 = vmatprep.subr.mxu0 %v577
      %942 = vmatpush1.msra.mxu0 %v576
      %943 = vmatprep.subr.mxu0 %v548
      %944 = vmatpush1.msra.mxu0 %v547
      %945 = vmatprep.subr.mxu0 %v543
      %946 = vmatpush1.msra.mxu0 %v542
      %947 = vmatprep.subr.mxu0 %v514
      %948 = vmatpush1.msra.mxu0 %v513
      %949 = vmatprep.subr.mxu0 %v509
      %950 = vmatpush1.msra.mxu0 %v508
      %951 = vmatprep.subr.mxu0 %v480
      %952 = vmatpush1.msra.mxu0 %v479
      %953 = vmatprep.subr.mxu0 %v475
      %954 = vmatpush1.msra.mxu0 %v474
      %955 = vmatprep.subr.mxu0 %v446
      %956 = vmatpush1.msra.mxu0 %v445
      %957 = vmatprep.subr.mxu0 %v441
      %958 = vmatpush1.msra.mxu0 %v440
      %959 = vmatprep.subr.mxu0 %v412
      %960 = vmatpush1.msra.mxu0 %v411
      %961 = vmatprep.subr.mxu0 %v407
      %962 = vmatpush1.msra.mxu0 %v406
      %963 = vmatprep.subr.mxu0 %v378
      %964 = vmatpush1.msra.mxu0 %v377
      %965 = vmatprep.subr.mxu0 %v373
      %966 = vmatpush1.msra.mxu0 %v372
      %967 = vmatprep.subr.mxu0 0.0
      %968 = vmatpush2.msra.mxu0 0.0
      %969 = vmatprep.subr.mxu0 0.0
      %970 = vmatpush2.msra.mxu0 0.0
      %971 = vmatprep.subr.mxu0 0.0
      %972 = vmatpush2.msra.mxu0 0.0
      %973 = vmatprep.subr.mxu0 0.0
      %974 = vmatpush2.msra.mxu0 0.0
      %975 = vmatprep.subr.mxu0 0.0
      %976 = vmatpush2.msra.mxu0 0.0
      %977 = vmatprep.subr.mxu0 0.0
      %978 = vmatpush2.msra.mxu0 0.0
      %979 = vmatprep.subr.mxu0 0.0
      %980 = vmatpush2.msra.mxu0 0.0
      %981 = vmatprep.subr.mxu0 0.0
      %982 = vmatpush2.msra.mxu0 0.0
      %983 = vmatprep.subr.mxu0 0.0
      %984 = vmatpush2.msra.mxu0 0.0
      %985 = vmatprep.subr.mxu0 0.0
      %986 = vmatpush2.msra.mxu0 0.0
      %987 = vmatprep.subr.mxu0 0.0
      %988 = vmatpush2.msra.mxu0 0.0
      %989 = vmatprep.subr.mxu0 0.0
      %990 = vmatpush2.msra.mxu0 0.0
      %991 = vmatprep.subr.mxu0 0.0
      %992 = vmatpush2.msra.mxu0 0.0
      %993 = vmatprep.subr.mxu0 0.0
      %994 = vmatpush2.msra.mxu0 0.0
      %995 = vmatprep.subr.mxu0 0.0
      %996 = vmatpush2.msra.mxu0 0.0
      %997 = vmatprep.subr.mxu0 0.0
      %998 = vmatpush2.msra.mxu0 0.0
      %999 = vmatprep.mubr.f32.mxu0 0.0
      %1000 = vmatmul.mubr.f32.gmra.mxu0 %v863
      %v1001 = vpop.f32.mrf.mxu0
      %v1002 = vadd.f32 0.0, %v1001
      %v1003 = vpop.f32.mrf.mxu0
      %v1004 = vadd.f32 0.0, %v1003
      %1005 = vdwg.mxu0
      %1006 = vmatprep.subr.mxu0 0.0
      %1007 = vmatpush1.msra.mxu0 %v617
      %1008 = vmatprep.subr.mxu0 0.0
      %1009 = vmatpush1.msra.mxu0 %v612
      %1010 = vmatprep.subr.mxu0 0.0
      %1011 = vmatpush1.msra.mxu0 %v583
      %1012 = vmatprep.subr.mxu0 0.0
      %1013 = vmatpush1.msra.mxu0 %v578
      %1014 = vmatprep.subr.mxu0 0.0
      %1015 = vmatpush1.msra.mxu0 %v549
      %1016 = vmatprep.subr.mxu0 0.0
      %1017 = vmatpush1.msra.mxu0 %v544
      %1018 = vmatprep.subr.mxu0 0.0
      %1019 = vmatpush1.msra.mxu0 %v515
      %1020 = vmatprep.subr.mxu0 0.0
      %1021 = vmatpush1.msra.mxu0 %v510
      %1022 = vmatprep.subr.mxu0 0.0
      %1023 = vmatpush1.msra.mxu0 %v481
      %1024 = vmatprep.subr.mxu0 0.0
      %1025 = vmatpush1.msra.mxu0 %v476
      %1026 = vmatprep.subr.mxu0 0.0
      %1027 = vmatpush1.msra.mxu0 %v447
      %1028 = vmatprep.subr.mxu0 0.0
      %1029 = vmatpush1.msra.mxu0 %v442
      %1030 = vmatprep.subr.mxu0 0.0
      %1031 = vmatpush1.msra.mxu0 %v413
      %1032 = vmatprep.subr.mxu0 0.0
      %1033 = vmatpush1.msra.mxu0 %v408
      %1034 = vmatprep.subr.mxu0 0.0
      %1035 = vmatpush1.msra.mxu0 %v379
      %1036 = vmatprep.subr.mxu0 0.0
      %1037 = vmatpush1.msra.mxu0 %v374
      %1038 = vmatprep.subr.mxu0 0.0
      %1039 = vmatpush2.msra.mxu0 0.0
      %1040 = vmatprep.subr.mxu0 0.0
      %1041 = vmatpush2.msra.mxu0 0.0
      %1042 = vmatprep.subr.mxu0 0.0
      %1043 = vmatpush2.msra.mxu0 0.0
      %1044 = vmatprep.subr.mxu0 0.0
      %1045 = vmatpush2.msra.mxu0 0.0
      %1046 = vmatprep.subr.mxu0 0.0
      %1047 = vmatpush2.msra.mxu0 0.0
      %1048 = vmatprep.subr.mxu0 0.0
      %1049 = vmatpush2.msra.mxu0 0.0
      %1050 = vmatprep.subr.mxu0 0.0
      %1051 = vmatpush2.msra.mxu0 0.0
      %1052 = vmatprep.subr.mxu0 0.0
      %1053 = vmatpush2.msra.mxu0 0.0
      %1054 = vmatprep.subr.mxu0 0.0
      %1055 = vmatpush2.msra.mxu0 0.0
      %1056 = vmatprep.subr.mxu0 0.0
      %1057 = vmatpush2.msra.mxu0 0.0
      %1058 = vmatprep.subr.mxu0 0.0
      %1059 = vmatpush2.msra.mxu0 0.0
      %1060 = vmatprep.subr.mxu0 0.0
      %1061 = vmatpush2.msra.mxu0 0.0
      %1062 = vmatprep.subr.mxu0 0.0
      %1063 = vmatpush2.msra.mxu0 0.0
      %1064 = vmatprep.subr.mxu0 0.0
      %1065 = vmatpush2.msra.mxu0 0.0
      %1066 = vmatprep.subr.mxu0 0.0
      %1067 = vmatpush2.msra.mxu0 0.0
      %1068 = vmatprep.subr.mxu0 0.0
      %1069 = vmatpush2.msra.mxu0 0.0
      %1070 = vmatprep.mubr.f32.mxu0 0.0
      %1071 = vmatmul.mubr.f32.gmra.mxu0 %v863
      %v1072 = vpop.f32.mrf.mxu0
      %v1073 = vadd.f32 0.0, %v1072
      %v1074 = vpop.f32.mrf.mxu0
      %1075 = vdwg.mxu0
      %1081 = vrot.lane.b32.xlu0 %v931, 66
      %v1082 = vpop.permute.xlu0 %1081
      %1083 = vrot.lane.b32.xlu0 %v933, 66
      %v1084 = vpop.permute.xlu0 %1083
      %1085 = vrot.lane.b32.xlu0 %v1002, 66
      %v1086 = vpop.permute.xlu0 %1085
      %1087 = vrot.lane.b32.xlu0 %v1004, 66
      %v1088 = vpop.permute.xlu0 %1087
      %1089 = vrot.lane.b32.xlu0 %v1073, 66
      %v1090 = vpop.permute.xlu0 %1089
      %vm1091 = vcmask 539648
      %v1092 = vsel %vm1091, %v1082, %v1084
      %v1093 = vsel %vm1091, %v1084, %v1086
      %v1094 = vsel %vm1091, %v1086, %v1088
      %v1095 = vsel %vm1091, %v1088, %v1090
      %vm1101 = vcmask 1043984
      %1102 = vst.msk [vmem:[#allocation2 + $0x20] sm:$0xf] %vm1101, %v1082
      %1103 = vst [vmem:[#allocation2 + $0x28] sm:$0xf] %v1092
      %1104 = vst [vmem:[#allocation2 + $0x30] sm:$0xf] %v1093
      %1105 = vst [vmem:[#allocation2 + $0x38] sm:$0xf] %v1094
      %vm1106 = vcmask 797696
      %1107 = vst.msk [vmem:[#allocation2 + $0x40] sm:$0xf] %vm1106, %v1095
      %v1108 = vld [vmem:[%s7] sm:$0xff]
      %v1109 = vld [vmem:[%s7 + $0x8] sm:$0x1]
      %v1110 = vld [vmem:[#allocation2] sm:$0xff]
      %v1111 = vld [vmem:[#allocation2 + $0x8] sm:$0xff]
      %v1112 = vld [vmem:[#allocation2 + $0x10] sm:$0xff]
      %v1113 = vld [vmem:[#allocation2 + $0x18] sm:$0xff]
      %v1114 = vld [vmem:[#allocation2 + $0x20] sm:$0xff]
      %v1115 = vld [vmem:[#allocation2 + $0x28] sm:$0xff]
      %v1116 = vld [vmem:[#allocation2 + $0x30] sm:$0xff]
      %v1117 = vld [vmem:[#allocation2 + $0x38] sm:$0xff]
      %v1118 = vld [vmem:[#allocation2 + $0x40] sm:$0xff]
      %v1119 = vld [vmem:[#allocation2 + $0x48] sm:$0xff]
      %1129 = vrot.lane.b32.xlu0 %v1110, 127
      %v1130 = vpop.permute.xlu0 %1129
      %1131 = vrot.lane.b32.xlu0 %v1111, 127
      %v1132 = vpop.permute.xlu0 %1131
      %1133 = vrot.lane.b32.xlu0 %v1112, 127
      %v1134 = vpop.permute.xlu0 %1133
      %1135 = vrot.lane.b32.xlu0 %v1113, 127
      %v1136 = vpop.permute.xlu0 %1135
      %1137 = vrot.lane.b32.xlu0 %v1114, 127
      %v1138 = vpop.permute.xlu0 %1137
      %1139 = vrot.lane.b32.xlu0 %v1115, 127
      %v1140 = vpop.permute.xlu0 %1139
      %1141 = vrot.lane.b32.xlu0 %v1116, 127
      %v1142 = vpop.permute.xlu0 %1141
      %1143 = vrot.lane.b32.xlu0 %v1117, 127
      %v1144 = vpop.permute.xlu0 %1143
      %1145 = vrot.lane.b32.xlu0 %v1118, 127
      %v1146 = vpop.permute.xlu0 %1145
      %vm1147 = vcmask 1039360
      %v1148 = vsel %vm1147, %v1130, %v1132
      %v1149 = vsel %vm1147, %v1132, %v1134
      %v1150 = vsel %vm1147, %v1134, %v1136
      %v1151 = vsel %vm1147, %v1136, %v1138
      %v1152 = vsel %vm1147, %v1138, %v1140
      %v1153 = vsel %vm1147, %v1140, %v1142
      %v1154 = vsel %vm1147, %v1142, %v1144
      %v1155 = vsel %vm1147, %v1144, %v1146
      %1165 = vrot.lane.b32.xlu0 %v1110, 126
      %v1166 = vpop.permute.xlu0 %1165
      %1167 = vrot.lane.b32.xlu0 %v1111, 126
      %v1168 = vpop.permute.xlu0 %1167
      %1169 = vrot.lane.b32.xlu0 %v1112, 126
      %v1170 = vpop.permute.xlu0 %1169
      %1171 = vrot.lane.b32.xlu0 %v1113, 126
      %v1172 = vpop.permute.xlu0 %1171
      %1173 = vrot.lane.b32.xlu0 %v1114, 126
      %v1174 = vpop.permute.xlu0 %1173
      %1175 = vrot.lane.b32.xlu0 %v1115, 126
      %v1176 = vpop.permute.xlu0 %1175
      %1177 = vrot.lane.b32.xlu0 %v1116, 126
      %v1178 = vpop.permute.xlu0 %1177
      %1179 = vrot.lane.b32.xlu0 %v1117, 126
      %v1180 = vpop.permute.xlu0 %1179
      %1181 = vrot.lane.b32.xlu0 %v1118, 126
      %v1182 = vpop.permute.xlu0 %1181
      %vm1183 = vcmask 1031168
      %v1184 = vsel %vm1183, %v1166, %v1168
      %v1185 = vsel %vm1183, %v1168, %v1170
      %v1186 = vsel %vm1183, %v1170, %v1172
      %v1187 = vsel %vm1183, %v1172, %v1174
      %v1188 = vsel %vm1183, %v1174, %v1176
      %v1189 = vsel %vm1183, %v1176, %v1178
      %v1190 = vsel %vm1183, %v1178, %v1180
      %v1191 = vsel %vm1183, %v1180, %v1182
      %1201 = vrot.lane.b32.xlu0 %v1110, 94
      %v1202 = vpop.permute.xlu0 %1201
      %1203 = vrot.lane.b32.xlu0 %v1111, 94
      %v1204 = vpop.permute.xlu0 %1203
      %1205 = vrot.lane.b32.xlu0 %v1112, 94
      %v1206 = vpop.permute.xlu0 %1205
      %1207 = vrot.lane.b32.xlu0 %v1113, 94
      %v1208 = vpop.permute.xlu0 %1207
      %1209 = vrot.lane.b32.xlu0 %v1114, 94
      %v1210 = vpop.permute.xlu0 %1209
      %1211 = vrot.lane.b32.xlu0 %v1115, 94
      %v1212 = vpop.permute.xlu0 %1211
      %1213 = vrot.lane.b32.xlu0 %v1116, 94
      %v1214 = vpop.permute.xlu0 %1213
      %1215 = vrot.lane.b32.xlu0 %v1117, 94
      %v1216 = vpop.permute.xlu0 %1215
      %1217 = vrot.lane.b32.xlu0 %v1118, 94
      %v1218 = vpop.permute.xlu0 %1217
      %vm1219 = vcmask 769024
      %v1220 = vsel %vm1219, %v1202, %v1204
      %v1221 = vsel %vm1219, %v1204, %v1206
      %v1222 = vsel %vm1219, %v1206, %v1208
      %v1223 = vsel %vm1219, %v1208, %v1210
      %v1224 = vsel %vm1219, %v1210, %v1212
      %v1225 = vsel %vm1219, %v1212, %v1214
      %v1226 = vsel %vm1219, %v1214, %v1216
      %v1227 = vsel %vm1219, %v1216, %v1218
      %1237 = vrot.lane.b32.xlu0 %v1110, 93
      %v1238 = vpop.permute.xlu0 %1237
      %1239 = vrot.lane.b32.xlu0 %v1111, 93
      %v1240 = vpop.permute.xlu0 %1239
      %1241 = vrot.lane.b32.xlu0 %v1112, 93
      %v1242 = vpop.permute.xlu0 %1241
      %1243 = vrot.lane.b32.xlu0 %v1113, 93
      %v1244 = vpop.permute.xlu0 %1243
      %1245 = vrot.lane.b32.xlu0 %v1114, 93
      %v1246 = vpop.permute.xlu0 %1245
      %1247 = vrot.lane.b32.xlu0 %v1115, 93
      %v1248 = vpop.permute.xlu0 %1247
      %1249 = vrot.lane.b32.xlu0 %v1116, 93
      %v1250 = vpop.permute.xlu0 %1249
      %1251 = vrot.lane.b32.xlu0 %v1117, 93
      %v1252 = vpop.permute.xlu0 %1251
      %1253 = vrot.lane.b32.xlu0 %v1118, 93
      %v1254 = vpop.permute.xlu0 %1253
      %vm1255 = vcmask 760832
      %v1256 = vsel %vm1255, %v1238, %v1240
      %v1257 = vsel %vm1255, %v1240, %v1242
      %v1258 = vsel %vm1255, %v1242, %v1244
      %v1259 = vsel %vm1255, %v1244, %v1246
      %v1260 = vsel %vm1255, %v1246, %v1248
      %v1261 = vsel %vm1255, %v1248, %v1250
      %v1262 = vsel %vm1255, %v1250, %v1252
      %v1263 = vsel %vm1255, %v1252, %v1254
      %1273 = vrot.lane.b32.xlu0 %v1110, 92
      %v1274 = vpop.permute.xlu0 %1273
      %1275 = vrot.lane.b32.xlu0 %v1111, 92
      %v1276 = vpop.permute.xlu0 %1275
      %1277 = vrot.lane.b32.xlu0 %v1112, 92
      %v1278 = vpop.permute.xlu0 %1277
      %1279 = vrot.lane.b32.xlu0 %v1113, 92
      %v1280 = vpop.permute.xlu0 %1279
      %1281 = vrot.lane.b32.xlu0 %v1114, 92
      %v1282 = vpop.permute.xlu0 %1281
      %1283 = vrot.lane.b32.xlu0 %v1115, 92
      %v1284 = vpop.permute.xlu0 %1283
      %1285 = vrot.lane.b32.xlu0 %v1116, 92
      %v1286 = vpop.permute.xlu0 %1285
      %1287 = vrot.lane.b32.xlu0 %v1117, 92
      %v1288 = vpop.permute.xlu0 %1287
      %1289 = vrot.lane.b32.xlu0 %v1118, 92
      %v1290 = vpop.permute.xlu0 %1289
      %vm1291 = vcmask 752640
      %v1292 = vsel %vm1291, %v1274, %v1276
      %v1293 = vsel %vm1291, %v1276, %v1278
      %v1294 = vsel %vm1291, %v1278, %v1280
      %v1295 = vsel %vm1291, %v1280, %v1282
      %v1296 = vsel %vm1291, %v1282, %v1284
      %v1297 = vsel %vm1291, %v1284, %v1286
      %v1298 = vsel %vm1291, %v1286, %v1288
      %v1299 = vsel %vm1291, %v1288, %v1290
      %1310 = vrot.lane.b32.xlu0 %v1110, 60
      %v1311 = vpop.permute.xlu0 %1310
      %1312 = vrot.lane.b32.xlu0 %v1111, 60
      %v1313 = vpop.permute.xlu0 %1312
      %1314 = vrot.lane.b32.xlu0 %v1112, 60
      %v1315 = vpop.permute.xlu0 %1314
      %1316 = vrot.lane.b32.xlu0 %v1113, 60
      %v1317 = vpop.permute.xlu0 %1316
      %1318 = vrot.lane.b32.xlu0 %v1114, 60
      %v1319 = vpop.permute.xlu0 %1318
      %1320 = vrot.lane.b32.xlu0 %v1115, 60
      %v1321 = vpop.permute.xlu0 %1320
      %1322 = vrot.lane.b32.xlu0 %v1116, 60
      %v1323 = vpop.permute.xlu0 %1322
      %1324 = vrot.lane.b32.xlu0 %v1117, 60
      %v1325 = vpop.permute.xlu0 %1324
      %1326 = vrot.lane.b32.xlu0 %v1118, 60
      %v1327 = vpop.permute.xlu0 %1326
      %1328 = vrot.lane.b32.xlu0 %v1119, 60
      %v1329 = vpop.permute.xlu0 %1328
      %vm1330 = vcmask 490496
      %v1331 = vsel %vm1330, %v1311, %v1313
      %v1332 = vsel %vm1330, %v1313, %v1315
      %v1333 = vsel %vm1330, %v1315, %v1317
      %v1334 = vsel %vm1330, %v1317, %v1319
      %v1335 = vsel %vm1330, %v1319, %v1321
      %v1336 = vsel %vm1330, %v1321, %v1323
      %v1337 = vsel %vm1330, %v1323, %v1325
      %v1338 = vsel %vm1330, %v1325, %v1327
      %v1339 = vsel %vm1330, %v1327, %v1329
      %1349 = vrot.lane.b32.xlu0 %v1110, 59
      %v1350 = vpop.permute.xlu0 %1349
      %1351 = vrot.lane.b32.xlu0 %v1111, 59
      %v1352 = vpop.permute.xlu0 %1351
      %1353 = vrot.lane.b32.xlu0 %v1112, 59
      %v1354 = vpop.permute.xlu0 %1353
      %1355 = vrot.lane.b32.xlu0 %v1113, 59
      %v1356 = vpop.permute.xlu0 %1355
      %1357 = vrot.lane.b32.xlu0 %v1114, 59
      %v1358 = vpop.permute.xlu0 %1357
      %1359 = vrot.lane.b32.xlu0 %v1115, 59
      %v1360 = vpop.permute.xlu0 %1359
      %1361 = vrot.lane.b32.xlu0 %v1116, 59
      %v1362 = vpop.permute.xlu0 %1361
      %1363 = vrot.lane.b32.xlu0 %v1117, 59
      %v1364 = vpop.permute.xlu0 %1363
      %1365 = vrot.lane.b32.xlu0 %v1118, 59
      %v1366 = vpop.permute.xlu0 %1365
      %1367 = vrot.lane.b32.xlu0 %v1119, 59
      %v1368 = vpop.permute.xlu0 %1367
      %vm1369 = vcmask 482304
      %v1370 = vsel %vm1369, %v1350, %v1352
      %v1371 = vsel %vm1369, %v1352, %v1354
      %v1372 = vsel %vm1369, %v1354, %v1356
      %v1373 = vsel %vm1369, %v1356, %v1358
      %v1374 = vsel %vm1369, %v1358, %v1360
      %v1375 = vsel %vm1369, %v1360, %v1362
      %v1376 = vsel %vm1369, %v1362, %v1364
      %v1377 = vsel %vm1369, %v1364, %v1366
      %v1378 = vsel %vm1369, %v1366, %v1368
      %1388 = vrot.lane.b32.xlu0 %v1110, 58
      %v1389 = vpop.permute.xlu0 %1388
      %1390 = vrot.lane.b32.xlu0 %v1111, 58
      %v1391 = vpop.permute.xlu0 %1390
      %1392 = vrot.lane.b32.xlu0 %v1112, 58
      %v1393 = vpop.permute.xlu0 %1392
      %1394 = vrot.lane.b32.xlu0 %v1113, 58
      %v1395 = vpop.permute.xlu0 %1394
      %1396 = vrot.lane.b32.xlu0 %v1114, 58
      %v1397 = vpop.permute.xlu0 %1396
      %1398 = vrot.lane.b32.xlu0 %v1115, 58
      %v1399 = vpop.permute.xlu0 %1398
      %1400 = vrot.lane.b32.xlu0 %v1116, 58
      %v1401 = vpop.permute.xlu0 %1400
      %1402 = vrot.lane.b32.xlu0 %v1117, 58
      %v1403 = vpop.permute.xlu0 %1402
      %1404 = vrot.lane.b32.xlu0 %v1118, 58
      %v1405 = vpop.permute.xlu0 %1404
      %1406 = vrot.lane.b32.xlu0 %v1119, 58
      %v1407 = vpop.permute.xlu0 %1406
      %vm1408 = vcmask 474112
      %v1409 = vsel %vm1408, %v1389, %v1391
      %v1410 = vsel %vm1408, %v1391, %v1393
      %v1411 = vsel %vm1408, %v1393, %v1395
      %v1412 = vsel %vm1408, %v1395, %v1397
      %v1413 = vsel %vm1408, %v1397, %v1399
      %v1414 = vsel %vm1408, %v1399, %v1401
      %v1415 = vsel %vm1408, %v1401, %v1403
      %v1416 = vsel %vm1408, %v1403, %v1405
      %v1417 = vsel %vm1408, %v1405, %v1407
      %v1427 = vld [vmem:[%s1] sm:$0xff]
      %v1428 = vld [vmem:[%s2] sm:$0xff]
      %1430 = vset.pattern.permute.xlu0 0
      %1431 = vperm.xlu0 %1430, %v1428
      %v1432 = vpop.permute.xlu0 %1431
      %vm1434 = vcmask 588800
      %v1436 = vsel %vm1434, %v1427, 0
      %1438 = vmatprep.subr.mxu0 0.0
      %1439 = vmatpush1.msra.mxu0 0.0
      %1440 = vmatprep.subr.mxu0 0.0
      %1441 = vmatpush1.msra.mxu0 0.0
      %1442 = vmatprep.subr.mxu0 0.0
      %1443 = vmatpush1.msra.mxu0 0.0
      %1444 = vmatprep.subr.mxu0 0.0
      %1445 = vmatpush1.msra.mxu0 0.0
      %1446 = vmatprep.subr.mxu0 0.0
      %1447 = vmatpush1.msra.mxu0 0.0
      %1448 = vmatprep.subr.mxu0 0.0
      %1449 = vmatpush1.msra.mxu0 0.0
      %1450 = vmatprep.subr.mxu0 0.0
      %1451 = vmatpush1.msra.mxu0 0.0
      %1452 = vmatprep.subr.mxu0 %v1410
      %1453 = vmatpush1.msra.mxu0 %v1409
      %1454 = vmatprep.subr.mxu0 %v1371
      %1455 = vmatpush1.msra.mxu0 %v1370
      %1456 = vmatprep.subr.mxu0 %v1332
      %1457 = vmatpush1.msra.mxu0 %v1331
      %1458 = vmatprep.subr.mxu0 %v1293
      %1459 = vmatpush1.msra.mxu0 %v1292
      %1460 = vmatprep.subr.mxu0 %v1257
      %1461 = vmatpush1.msra.mxu0 %v1256
      %1462 = vmatprep.subr.mxu0 %v1221
      %1463 = vmatpush1.msra.mxu0 %v1220
      %1464 = vmatprep.subr.mxu0 %v1185
      %1465 = vmatpush1.msra.mxu0 %v1184
      %1466 = vmatprep.subr.mxu0 %v1149
      %1467 = vmatpush1.msra.mxu0 %v1148
      %1468 = vmatprep.subr.mxu0 %v1111
      %1469 = vmatpush1.msra.mxu0 %v1110
      %1470 = vmatprep.subr.mxu0 0.0
      %1471 = vmatpush2.msra.mxu0 0.0
      %1472 = vmatprep.subr.mxu0 0.0
      %1473 = vmatpush2.msra.mxu0 0.0
      %1474 = vmatprep.subr.mxu0 0.0
      %1475 = vmatpush2.msra.mxu0 0.0
      %1476 = vmatprep.subr.mxu0 0.0
      %1477 = vmatpush2.msra.mxu0 0.0
      %1478 = vmatprep.subr.mxu0 0.0
      %1479 = vmatpush2.msra.mxu0 0.0
      %1480 = vmatprep.subr.mxu0 0.0
      %1481 = vmatpush2.msra.mxu0 0.0
      %1482 = vmatprep.subr.mxu0 0.0
      %1483 = vmatpush2.msra.mxu0 0.0
      %1484 = vmatprep.subr.mxu0 0.0
      %1485 = vmatpush2.msra.mxu0 0.0
      %1486 = vmatprep.subr.mxu0 0.0
      %1487 = vmatpush2.msra.mxu0 0.0
      %1488 = vmatprep.subr.mxu0 0.0
      %1489 = vmatpush2.msra.mxu0 0.0
      %1490 = vmatprep.subr.mxu0 0.0
      %1491 = vmatpush2.msra.mxu0 0.0
      %1492 = vmatprep.subr.mxu0 0.0
      %1493 = vmatpush2.msra.mxu0 0.0
      %1494 = vmatprep.subr.mxu0 0.0
      %1495 = vmatpush2.msra.mxu0 0.0
      %1496 = vmatprep.subr.mxu0 0.0
      %1497 = vmatpush2.msra.mxu0 0.0
      %1498 = vmatprep.subr.mxu0 0.0
      %1499 = vmatpush2.msra.mxu0 0.0
      %1500 = vmatprep.subr.mxu0 0.0
      %1501 = vmatpush2.msra.mxu0 0.0
      %1502 = vmatprep.mubr.f32.mxu0 0.0
      %1503 = vmatmul.mubr.f32.gmra.mxu0 %v1436
      %v1504 = vpop.f32.mrf.mxu0
      %v1505 = vadd.f32 %v1432, %v1504
      %v1506 = vpop.f32.mrf.mxu0
      %v1507 = vadd.f32 %v1432, %v1506
      %1508 = vdwg.mxu0
      %1509 = vmatprep.subr.mxu0 0.0
      %1510 = vmatpush1.msra.mxu0 0.0
      %1511 = vmatprep.subr.mxu0 0.0
      %1512 = vmatpush1.msra.mxu0 0.0
      %1513 = vmatprep.subr.mxu0 0.0
      %1514 = vmatpush1.msra.mxu0 0.0
      %1515 = vmatprep.subr.mxu0 0.0
      %1516 = vmatpush1.msra.mxu0 0.0
      %1517 = vmatprep.subr.mxu0 0.0
      %1518 = vmatpush1.msra.mxu0 0.0
      %1519 = vmatprep.subr.mxu0 0.0
      %1520 = vmatpush1.msra.mxu0 0.0
      %1521 = vmatprep.subr.mxu0 0.0
      %1522 = vmatpush1.msra.mxu0 0.0
      %1523 = vmatprep.subr.mxu0 %v1412
      %1524 = vmatpush1.msra.mxu0 %v1411
      %1525 = vmatprep.subr.mxu0 %v1373
      %1526 = vmatpush1.msra.mxu0 %v1372
      %1527 = vmatprep.subr.mxu0 %v1334
      %1528 = vmatpush1.msra.mxu0 %v1333
      %1529 = vmatprep.subr.mxu0 %v1295
      %1530 = vmatpush1.msra.mxu0 %v1294
      %1531 = vmatprep.subr.mxu0 %v1259
      %1532 = vmatpush1.msra.mxu0 %v1258
      %1533 = vmatprep.subr.mxu0 %v1223
      %1534 = vmatpush1.msra.mxu0 %v1222
      %1535 = vmatprep.subr.mxu0 %v1187
      %1536 = vmatpush1.msra.mxu0 %v1186
      %1537 = vmatprep.subr.mxu0 %v1151
      %1538 = vmatpush1.msra.mxu0 %v1150
      %1539 = vmatprep.subr.mxu0 %v1113
      %1540 = vmatpush1.msra.mxu0 %v1112
      %1541 = vmatprep.subr.mxu0 0.0
      %1542 = vmatpush2.msra.mxu0 0.0
      %1543 = vmatprep.subr.mxu0 0.0
      %1544 = vmatpush2.msra.mxu0 0.0
      %1545 = vmatprep.subr.mxu0 0.0
      %1546 = vmatpush2.msra.mxu0 0.0
      %1547 = vmatprep.subr.mxu0 0.0
      %1548 = vmatpush2.msra.mxu0 0.0
      %1549 = vmatprep.subr.mxu0 0.0
      %1550 = vmatpush2.msra.mxu0 0.0
      %1551 = vmatprep.subr.mxu0 0.0
      %1552 = vmatpush2.msra.mxu0 0.0
      %1553 = vmatprep.subr.mxu0 0.0
      %1554 = vmatpush2.msra.mxu0 0.0
      %1555 = vmatprep.subr.mxu0 0.0
      %1556 = vmatpush2.msra.mxu0 0.0
      %1557 = vmatprep.subr.mxu0 0.0
      %1558 = vmatpush2.msra.mxu0 0.0
      %1559 = vmatprep.subr.mxu0 0.0
      %1560 = vmatpush2.msra.mxu0 0.0
      %1561 = vmatprep.subr.mxu0 0.0
      %1562 = vmatpush2.msra.mxu0 0.0
      %1563 = vmatprep.subr.mxu0 0.0
      %1564 = vmatpush2.msra.mxu0 0.0
      %1565 = vmatprep.subr.mxu0 0.0
      %1566 = vmatpush2.msra.mxu0 0.0
      %1567 = vmatprep.subr.mxu0 0.0
      %1568 = vmatpush2.msra.mxu0 0.0
      %1569 = vmatprep.subr.mxu0 0.0
      %1570 = vmatpush2.msra.mxu0 0.0
      %1571 = vmatprep.subr.mxu0 0.0
      %1572 = vmatpush2.msra.mxu0 0.0
      %1573 = vmatprep.mubr.f32.mxu0 0.0
      %1574 = vmatmul.mubr.f32.gmra.mxu0 %v1436
      %v1575 = vpop.f32.mrf.mxu0
      %v1576 = vadd.f32 %v1432, %v1575
      %v1577 = vpop.f32.mrf.mxu0
      %v1578 = vadd.f32 %v1432, %v1577
      %1579 = vdwg.mxu0
      %1580 = vmatprep.subr.mxu0 0.0
      %1581 = vmatpush1.msra.mxu0 0.0
      %1582 = vmatprep.subr.mxu0 0.0
      %1583 = vmatpush1.msra.mxu0 0.0
      %1584 = vmatprep.subr.mxu0 0.0
      %1585 = vmatpush1.msra.mxu0 0.0
      %1586 = vmatprep.subr.mxu0 0.0
      %1587 = vmatpush1.msra.mxu0 0.0
      %1588 = vmatprep.subr.mxu0 0.0
      %1589 = vmatpush1.msra.mxu0 0.0
      %1590 = vmatprep.subr.mxu0 0.0
      %1591 = vmatpush1.msra.mxu0 0.0
      %1592 = vmatprep.subr.mxu0 0.0
      %1593 = vmatpush1.msra.mxu0 0.0
      %1594 = vmatprep.subr.mxu0 %v1414
      %1595 = vmatpush1.msra.mxu0 %v1413
      %1596 = vmatprep.subr.mxu0 %v1375
      %1597 = vmatpush1.msra.mxu0 %v1374
      %1598 = vmatprep.subr.mxu0 %v1336
      %1599 = vmatpush1.msra.mxu0 %v1335
      %1600 = vmatprep.subr.mxu0 %v1297
      %1601 = vmatpush1.msra.mxu0 %v1296
      %1602 = vmatprep.subr.mxu0 %v1261
      %1603 = vmatpush1.msra.mxu0 %v1260
      %1604 = vmatprep.subr.mxu0 %v1225
      %1605 = vmatpush1.msra.mxu0 %v1224
      %1606 = vmatprep.subr.mxu0 %v1189
      %1607 = vmatpush1.msra.mxu0 %v1188
      %1608 = vmatprep.subr.mxu0 %v1153
      %1609 = vmatpush1.msra.mxu0 %v1152
      %1610 = vmatprep.subr.mxu0 %v1115
      %1611 = vmatpush1.msra.mxu0 %v1114
      %1612 = vmatprep.subr.mxu0 0.0
      %1613 = vmatpush2.msra.mxu0 0.0
      %1614 = vmatprep.subr.mxu0 0.0
      %1615 = vmatpush2.msra.mxu0 0.0
      %1616 = vmatprep.subr.mxu0 0.0
      %1617 = vmatpush2.msra.mxu0 0.0
      %1618 = vmatprep.subr.mxu0 0.0
      %1619 = vmatpush2.msra.mxu0 0.0
      %1620 = vmatprep.subr.mxu0 0.0
      %1621 = vmatpush2.msra.mxu0 0.0
      %1622 = vmatprep.subr.mxu0 0.0
      %1623 = vmatpush2.msra.mxu0 0.0
      %1624 = vmatprep.subr.mxu0 0.0
      %1625 = vmatpush2.msra.mxu0 0.0
      %1626 = vmatprep.subr.mxu0 0.0
      %1627 = vmatpush2.msra.mxu0 0.0
      %1628 = vmatprep.subr.mxu0 0.0
      %1629 = vmatpush2.msra.mxu0 0.0
      %1630 = vmatprep.subr.mxu0 0.0
      %1631 = vmatpush2.msra.mxu0 0.0
      %1632 = vmatprep.subr.mxu0 0.0
      %1633 = vmatpush2.msra.mxu0 0.0
      %1634 = vmatprep.subr.mxu0 0.0
      %1635 = vmatpush2.msra.mxu0 0.0
      %1636 = vmatprep.subr.mxu0 0.0
      %1637 = vmatpush2.msra.mxu0 0.0
      %1638 = vmatprep.subr.mxu0 0.0
      %1639 = vmatpush2.msra.mxu0 0.0
      %1640 = vmatprep.subr.mxu0 0.0
      %1641 = vmatpush2.msra.mxu0 0.0
      %1642 = vmatprep.subr.mxu0 0.0
      %1643 = vmatpush2.msra.mxu0 0.0
      %1644 = vmatprep.mubr.f32.mxu0 0.0
      %1645 = vmatmul.mubr.f32.gmra.mxu0 %v1436
      %v1646 = vpop.f32.mrf.mxu0
      %v1647 = vadd.f32 %v1432, %v1646
      %v1648 = vpop.f32.mrf.mxu0
      %v1649 = vadd.f32 %v1432, %v1648
      %1650 = vdwg.mxu0
      %1651 = vmatprep.subr.mxu0 0.0
      %1652 = vmatpush1.msra.mxu0 0.0
      %1653 = vmatprep.subr.mxu0 0.0
      %1654 = vmatpush1.msra.mxu0 0.0
      %1655 = vmatprep.subr.mxu0 0.0
      %1656 = vmatpush1.msra.mxu0 0.0
      %1657 = vmatprep.subr.mxu0 0.0
      %1658 = vmatpush1.msra.mxu0 0.0
      %1659 = vmatprep.subr.mxu0 0.0
      %1660 = vmatpush1.msra.mxu0 0.0
      %1661 = vmatprep.subr.mxu0 0.0
      %1662 = vmatpush1.msra.mxu0 0.0
      %1663 = vmatprep.subr.mxu0 0.0
      %1664 = vmatpush1.msra.mxu0 0.0
      %1665 = vmatprep.subr.mxu0 %v1416
      %1666 = vmatpush1.msra.mxu0 %v1415
      %1667 = vmatprep.subr.mxu0 %v1377
      %1668 = vmatpush1.msra.mxu0 %v1376
      %1669 = vmatprep.subr.mxu0 %v1338
      %1670 = vmatpush1.msra.mxu0 %v1337
      %1671 = vmatprep.subr.mxu0 %v1299
      %1672 = vmatpush1.msra.mxu0 %v1298
      %1673 = vmatprep.subr.mxu0 %v1263
      %1674 = vmatpush1.msra.mxu0 %v1262
      %1675 = vmatprep.subr.mxu0 %v1227
      %1676 = vmatpush1.msra.mxu0 %v1226
      %1677 = vmatprep.subr.mxu0 %v1191
      %1678 = vmatpush1.msra.mxu0 %v1190
      %1679 = vmatprep.subr.mxu0 %v1155
      %1680 = vmatpush1.msra.mxu0 %v1154
      %1681 = vmatprep.subr.mxu0 %v1117
      %1682 = vmatpush1.msra.mxu0 %v1116
      %1683 = vmatprep.subr.mxu0 0.0
      %1684 = vmatpush2.msra.mxu0 0.0
      %1685 = vmatprep.subr.mxu0 0.0
      %1686 = vmatpush2.msra.mxu0 0.0
      %1687 = vmatprep.subr.mxu0 0.0
      %1688 = vmatpush2.msra.mxu0 0.0
      %1689 = vmatprep.subr.mxu0 0.0
      %1690 = vmatpush2.msra.mxu0 0.0
      %1691 = vmatprep.subr.mxu0 0.0
      %1692 = vmatpush2.msra.mxu0 0.0
      %1693 = vmatprep.subr.mxu0 0.0
      %1694 = vmatpush2.msra.mxu0 0.0
      %1695 = vmatprep.subr.mxu0 0.0
      %1696 = vmatpush2.msra.mxu0 0.0
      %1697 = vmatprep.subr.mxu0 0.0
      %1698 = vmatpush2.msra.mxu0 0.0
      %1699 = vmatprep.subr.mxu0 0.0
      %1700 = vmatpush2.msra.mxu0 0.0
      %1701 = vmatprep.subr.mxu0 0.0
      %1702 = vmatpush2.msra.mxu0 0.0
      %1703 = vmatprep.subr.mxu0 0.0
      %1704 = vmatpush2.msra.mxu0 0.0
      %1705 = vmatprep.subr.mxu0 0.0
      %1706 = vmatpush2.msra.mxu0 0.0
      %1707 = vmatprep.subr.mxu0 0.0
      %1708 = vmatpush2.msra.mxu0 0.0
      %1709 = vmatprep.subr.mxu0 0.0
      %1710 = vmatpush2.msra.mxu0 0.0
      %1711 = vmatprep.subr.mxu0 0.0
      %1712 = vmatpush2.msra.mxu0 0.0
      %1713 = vmatprep.subr.mxu0 0.0
      %1714 = vmatpush2.msra.mxu0 0.0
      %1715 = vmatprep.mubr.f32.mxu0 0.0
      %1716 = vmatmul.mubr.f32.gmra.mxu0 %v1436
      %v1717 = vpop.f32.mrf.mxu0
      %v1718 = vadd.f32 %v1432, %v1717
      %v1719 = vpop.f32.mrf.mxu0
      %v1720 = vadd.f32 %v1432, %v1719
      %1721 = vdwg.mxu0
      %1722 = vmatprep.subr.mxu0 0.0
      %1723 = vmatpush1.msra.mxu0 0.0
      %1724 = vmatprep.subr.mxu0 0.0
      %1725 = vmatpush1.msra.mxu0 0.0
      %1726 = vmatprep.subr.mxu0 0.0
      %1727 = vmatpush1.msra.mxu0 0.0
      %1728 = vmatprep.subr.mxu0 0.0
      %1729 = vmatpush1.msra.mxu0 0.0
      %1730 = vmatprep.subr.mxu0 0.0
      %1731 = vmatpush1.msra.mxu0 0.0
      %1732 = vmatprep.subr.mxu0 0.0
      %1733 = vmatpush1.msra.mxu0 0.0
      %1734 = vmatprep.subr.mxu0 0.0
      %1735 = vmatpush1.msra.mxu0 0.0
      %1736 = vmatprep.subr.mxu0 0.0
      %1737 = vmatpush1.msra.mxu0 %v1417
      %1738 = vmatprep.subr.mxu0 0.0
      %1739 = vmatpush1.msra.mxu0 %v1378
      %1740 = vmatprep.subr.mxu0 0.0
      %1741 = vmatpush1.msra.mxu0 %v1339
      %1742 = vmatprep.subr.mxu0 0.0
      %1743 = vmatpush1.msra.mxu0 %v1290
      %1744 = vmatprep.subr.mxu0 0.0
      %1745 = vmatpush1.msra.mxu0 %v1254
      %1746 = vmatprep.subr.mxu0 0.0
      %1747 = vmatpush1.msra.mxu0 %v1218
      %1748 = vmatprep.subr.mxu0 0.0
      %1749 = vmatpush1.msra.mxu0 %v1182
      %1750 = vmatprep.subr.mxu0 0.0
      %1751 = vmatpush1.msra.mxu0 %v1146
      %1752 = vmatprep.subr.mxu0 0.0
      %1753 = vmatpush1.msra.mxu0 %v1118
      %1754 = vmatprep.subr.mxu0 0.0
      %1755 = vmatpush2.msra.mxu0 0.0
      %1756 = vmatprep.subr.mxu0 0.0
      %1757 = vmatpush2.msra.mxu0 0.0
      %1758 = vmatprep.subr.mxu0 0.0
      %1759 = vmatpush2.msra.mxu0 0.0
      %1760 = vmatprep.subr.mxu0 0.0
      %1761 = vmatpush2.msra.mxu0 0.0
      %1762 = vmatprep.subr.mxu0 0.0
      %1763 = vmatpush2.msra.mxu0 0.0
      %1764 = vmatprep.subr.mxu0 0.0
      %1765 = vmatpush2.msra.mxu0 0.0
      %1766 = vmatprep.subr.mxu0 0.0
      %1767 = vmatpush2.msra.mxu0 0.0
      %1768 = vmatprep.subr.mxu0 0.0
      %1769 = vmatpush2.msra.mxu0 0.0
      %1770 = vmatprep.subr.mxu0 0.0
      %1771 = vmatpush2.msra.mxu0 0.0
      %1772 = vmatprep.subr.mxu0 0.0
      %1773 = vmatpush2.msra.mxu0 0.0
      %1774 = vmatprep.subr.mxu0 0.0
      %1775 = vmatpush2.msra.mxu0 0.0
      %1776 = vmatprep.subr.mxu0 0.0
      %1777 = vmatpush2.msra.mxu0 0.0
      %1778 = vmatprep.subr.mxu0 0.0
      %1779 = vmatpush2.msra.mxu0 0.0
      %1780 = vmatprep.subr.mxu0 0.0
      %1781 = vmatpush2.msra.mxu0 0.0
      %1782 = vmatprep.subr.mxu0 0.0
      %1783 = vmatpush2.msra.mxu0 0.0
      %1784 = vmatprep.subr.mxu0 0.0
      %1785 = vmatpush2.msra.mxu0 0.0
      %1786 = vmatprep.mubr.f32.mxu0 0.0
      %1787 = vmatmul.mubr.f32.gmra.mxu0 %v1436
      %v1788 = vpop.f32.mrf.mxu0
      %v1789 = vadd.f32 %v1432, %v1788
      %v1790 = vpop.f32.mrf.mxu0
      %1791 = vdwg.mxu0
      %v1792 = vmax.f32 %v1505, 0.0
      %v1793 = vmax.f32 %v1507, 0.0
      %v1794 = vmax.f32 %v1576, 0.0
      %v1795 = vmax.f32 %v1578, 0.0
      %v1796 = vmax.f32 %v1647, 0.0
      %v1797 = vmax.f32 %v1649, 0.0
      %v1798 = vmax.f32 %v1718, 0.0
      %v1799 = vmax.f32 %v1720, 0.0
      %v1800 = vmax.f32 %v1789, 0.0
      %v1803 = vlaneseq
      %v1804 = vshrl.u32 %v1803, 7
      %v1805 = vsub.s32 0, %v1804
      %v1806 = vrot.slane %v1108, %v1805
      %v1807 = vlaneseq
      %v1808 = vshrl.u32 %v1807, 7
      %v1809 = vsub.s32 1, %v1808
      %v1810 = vrot.slane %v1108, %v1809
      %v1811 = vlaneseq
      %v1812 = vshrl.u32 %v1811, 7
      %v1813 = vsub.s32 2, %v1812
      %v1814 = vrot.slane %v1108, %v1813
      %v1815 = vlaneseq
      %v1816 = vshrl.u32 %v1815, 7
      %v1817 = vsub.s32 3, %v1816
      %v1818 = vrot.slane %v1108, %v1817
      %v1819 = vlaneseq
      %v1820 = vshrl.u32 %v1819, 7
      %v1821 = vsub.s32 4, %v1820
      %v1822 = vrot.slane %v1108, %v1821
      %v1823 = vlaneseq
      %v1824 = vshrl.u32 %v1823, 7
      %v1825 = vsub.s32 5, %v1824
      %v1826 = vrot.slane %v1108, %v1825
      %v1827 = vlaneseq
      %v1828 = vshrl.u32 %v1827, 7
      %v1829 = vsub.s32 6, %v1828
      %v1830 = vrot.slane %v1108, %v1829
      %v1831 = vlaneseq
      %v1832 = vshrl.u32 %v1831, 7
      %v1833 = vsub.s32 7, %v1832
      %v1834 = vrot.slane %v1108, %v1833
      %v1835 = vlaneseq
      %v1836 = vshrl.u32 %v1835, 7
      %v1837 = vsub.s32 0, %v1836
      %v1838 = vrot.slane %v1109, %v1837
      %v1848 = vmul.f32 %v1792, %v1806
      %v1849 = vmul.f32 %v1793, %v1810
      %v1850 = vmul.f32 %v1794, %v1814
      %v1851 = vmul.f32 %v1795, %v1818
      %v1852 = vmul.f32 %v1796, %v1822
      %v1853 = vmul.f32 %v1797, %v1826
      %v1854 = vmul.f32 %v1798, %v1830
      %v1855 = vmul.f32 %v1799, %v1834
      %v1856 = vmul.f32 %v1800, %v1838
      %1866 = vrot.lane.b32.xlu0 %v1848, 35
      %v1867 = vpop.permute.xlu0 %1866
      %1868 = vrot.lane.b32.xlu0 %v1849, 35
      %v1869 = vpop.permute.xlu0 %1868
      %1870 = vrot.lane.b32.xlu0 %v1850, 35
      %v1871 = vpop.permute.xlu0 %1870
      %1872 = vrot.lane.b32.xlu0 %v1851, 35
      %v1873 = vpop.permute.xlu0 %1872
      %1874 = vrot.lane.b32.xlu0 %v1852, 35
      %v1875 = vpop.permute.xlu0 %1874
      %1876 = vrot.lane.b32.xlu0 %v1853, 35
      %v1877 = vpop.permute.xlu0 %1876
      %1878 = vrot.lane.b32.xlu0 %v1854, 35
      %v1879 = vpop.permute.xlu0 %1878
      %1880 = vrot.lane.b32.xlu0 %v1855, 35
      %v1881 = vpop.permute.xlu0 %1880
      %1882 = vrot.lane.b32.xlu0 %v1856, 35
      %v1883 = vpop.permute.xlu0 %1882
      %vm1884 = vcmask 285696
      %v1885 = vsel %vm1884, %v1867, %v1869
      %v1886 = vsel %vm1884, %v1869, %v1871
      %v1887 = vsel %vm1884, %v1871, %v1873
      %v1888 = vsel %vm1884, %v1873, %v1875
      %v1889 = vsel %vm1884, %v1875, %v1877
      %v1890 = vsel %vm1884, %v1877, %v1879
      %v1891 = vsel %vm1884, %v1879, %v1881
      %v1892 = vsel %vm1884, %v1881, %v1883
      %vm1902 = vcmask 1047832
      %1903 = vst.msk [vmem:[#allocation3] sm:$0xff] %vm1902, %v1867
      %1904 = vst [vmem:[#allocation3 + $0x8] sm:$0xff] %v1885
      %1905 = vst [vmem:[#allocation3 + $0x10] sm:$0xff] %v1886
      %1906 = vst [vmem:[#allocation3 + $0x18] sm:$0xff] %v1887
      %1907 = vst [vmem:[#allocation3 + $0x20] sm:$0xff] %v1888
      %1908 = vst [vmem:[#allocation3 + $0x28] sm:$0xff] %v1889
      %1909 = vst [vmem:[#allocation3 + $0x30] sm:$0xff] %v1890
      %1910 = vst [vmem:[#allocation3 + $0x38] sm:$0xff] %v1891
      %vm1911 = vcmask 809984
      %1912 = vst.msk [vmem:[#allocation3 + $0x40] sm:$0xff] %vm1911, %v1892
      %v1913 = vld [vmem:[#allocation3] sm:$0xff]
      %v1914 = vld [vmem:[#allocation3 + $0x8] sm:$0xff]
      %v1915 = vld [vmem:[#allocation3 + $0x10] sm:$0xff]
      %v1916 = vld [vmem:[#allocation3 + $0x18] sm:$0xff]
      %v1917 = vld [vmem:[#allocation3 + $0x20] sm:$0xff]
      %v1918 = vld [vmem:[#allocation3 + $0x28] sm:$0xff]
      %v1919 = vld [vmem:[#allocation3 + $0x30] sm:$0xff]
      %v1920 = vld [vmem:[#allocation3 + $0x38] sm:$0xff]
      %v1921 = vld [vmem:[#allocation3 + $0x40] sm:$0xff]
      %v1922 = vld [vmem:[#allocation3 + $0x48] sm:$0xff]
      %1932 = vrot.lane.b32.xlu0 %v1913, 127
      %v1933 = vpop.permute.xlu0 %1932
      %1934 = vrot.lane.b32.xlu0 %v1914, 127
      %v1935 = vpop.permute.xlu0 %1934
      %1936 = vrot.lane.b32.xlu0 %v1915, 127
      %v1937 = vpop.permute.xlu0 %1936
      %1938 = vrot.lane.b32.xlu0 %v1916, 127
      %v1939 = vpop.permute.xlu0 %1938
      %1940 = vrot.lane.b32.xlu0 %v1917, 127
      %v1941 = vpop.permute.xlu0 %1940
      %1942 = vrot.lane.b32.xlu0 %v1918, 127
      %v1943 = vpop.permute.xlu0 %1942
      %1944 = vrot.lane.b32.xlu0 %v1919, 127
      %v1945 = vpop.permute.xlu0 %1944
      %1946 = vrot.lane.b32.xlu0 %v1920, 127
      %v1947 = vpop.permute.xlu0 %1946
      %1948 = vrot.lane.b32.xlu0 %v1921, 127
      %v1949 = vpop.permute.xlu0 %1948
      %v1950 = vsel %vm1147, %v1933, %v1935
      %v1951 = vsel %vm1147, %v1935, %v1937
      %v1952 = vsel %vm1147, %v1937, %v1939
      %v1953 = vsel %vm1147, %v1939, %v1941
      %v1954 = vsel %vm1147, %v1941, %v1943
      %v1955 = vsel %vm1147, %v1943, %v1945
      %v1956 = vsel %vm1147, %v1945, %v1947
      %v1957 = vsel %vm1147, %v1947, %v1949
      %1967 = vrot.lane.b32.xlu0 %v1913, 126
      %v1968 = vpop.permute.xlu0 %1967
      %1969 = vrot.lane.b32.xlu0 %v1914, 126
      %v1970 = vpop.permute.xlu0 %1969
      %1971 = vrot.lane.b32.xlu0 %v1915, 126
      %v1972 = vpop.permute.xlu0 %1971
      %1973 = vrot.lane.b32.xlu0 %v1916, 126
      %v1974 = vpop.permute.xlu0 %1973
      %1975 = vrot.lane.b32.xlu0 %v1917, 126
      %v1976 = vpop.permute.xlu0 %1975
      %1977 = vrot.lane.b32.xlu0 %v1918, 126
      %v1978 = vpop.permute.xlu0 %1977
      %1979 = vrot.lane.b32.xlu0 %v1919, 126
      %v1980 = vpop.permute.xlu0 %1979
      %1981 = vrot.lane.b32.xlu0 %v1920, 126
      %v1982 = vpop.permute.xlu0 %1981
      %1983 = vrot.lane.b32.xlu0 %v1921, 126
      %v1984 = vpop.permute.xlu0 %1983
      %v1985 = vsel %vm1183, %v1968, %v1970
      %v1986 = vsel %vm1183, %v1970, %v1972
      %v1987 = vsel %vm1183, %v1972, %v1974
      %v1988 = vsel %vm1183, %v1974, %v1976
      %v1989 = vsel %vm1183, %v1976, %v1978
      %v1990 = vsel %vm1183, %v1978, %v1980
      %v1991 = vsel %vm1183, %v1980, %v1982
      %v1992 = vsel %vm1183, %v1982, %v1984
      %2002 = vrot.lane.b32.xlu0 %v1913, 94
      %v2003 = vpop.permute.xlu0 %2002
      %2004 = vrot.lane.b32.xlu0 %v1914, 94
      %v2005 = vpop.permute.xlu0 %2004
      %2006 = vrot.lane.b32.xlu0 %v1915, 94
      %v2007 = vpop.permute.xlu0 %2006
      %2008 = vrot.lane.b32.xlu0 %v1916, 94
      %v2009 = vpop.permute.xlu0 %2008
      %2010 = vrot.lane.b32.xlu0 %v1917, 94
      %v2011 = vpop.permute.xlu0 %2010
      %2012 = vrot.lane.b32.xlu0 %v1918, 94
      %v2013 = vpop.permute.xlu0 %2012
      %2014 = vrot.lane.b32.xlu0 %v1919, 94
      %v2015 = vpop.permute.xlu0 %2014
      %2016 = vrot.lane.b32.xlu0 %v1920, 94
      %v2017 = vpop.permute.xlu0 %2016
      %2018 = vrot.lane.b32.xlu0 %v1921, 94
      %v2019 = vpop.permute.xlu0 %2018
      %v2020 = vsel %vm1219, %v2003, %v2005
      %v2021 = vsel %vm1219, %v2005, %v2007
      %v2022 = vsel %vm1219, %v2007, %v2009
      %v2023 = vsel %vm1219, %v2009, %v2011
      %v2024 = vsel %vm1219, %v2011, %v2013
      %v2025 = vsel %vm1219, %v2013, %v2015
      %v2026 = vsel %vm1219, %v2015, %v2017
      %v2027 = vsel %vm1219, %v2017, %v2019
      %2037 = vrot.lane.b32.xlu0 %v1913, 93
      %v2038 = vpop.permute.xlu0 %2037
      %2039 = vrot.lane.b32.xlu0 %v1914, 93
      %v2040 = vpop.permute.xlu0 %2039
      %2041 = vrot.lane.b32.xlu0 %v1915, 93
      %v2042 = vpop.permute.xlu0 %2041
      %2043 = vrot.lane.b32.xlu0 %v1916, 93
      %v2044 = vpop.permute.xlu0 %2043
      %2045 = vrot.lane.b32.xlu0 %v1917, 93
      %v2046 = vpop.permute.xlu0 %2045
      %2047 = vrot.lane.b32.xlu0 %v1918, 93
      %v2048 = vpop.permute.xlu0 %2047
      %2049 = vrot.lane.b32.xlu0 %v1919, 93
      %v2050 = vpop.permute.xlu0 %2049
      %2051 = vrot.lane.b32.xlu0 %v1920, 93
      %v2052 = vpop.permute.xlu0 %2051
      %2053 = vrot.lane.b32.xlu0 %v1921, 93
      %v2054 = vpop.permute.xlu0 %2053
      %v2055 = vsel %vm1255, %v2038, %v2040
      %v2056 = vsel %vm1255, %v2040, %v2042
      %v2057 = vsel %vm1255, %v2042, %v2044
      %v2058 = vsel %vm1255, %v2044, %v2046
      %v2059 = vsel %vm1255, %v2046, %v2048
      %v2060 = vsel %vm1255, %v2048, %v2050
      %v2061 = vsel %vm1255, %v2050, %v2052
      %v2062 = vsel %vm1255, %v2052, %v2054
      %2072 = vrot.lane.b32.xlu0 %v1913, 92
      %v2073 = vpop.permute.xlu0 %2072
      %2074 = vrot.lane.b32.xlu0 %v1914, 92
      %v2075 = vpop.permute.xlu0 %2074
      %2076 = vrot.lane.b32.xlu0 %v1915, 92
      %v2077 = vpop.permute.xlu0 %2076
      %2078 = vrot.lane.b32.xlu0 %v1916, 92
      %v2079 = vpop.permute.xlu0 %2078
      %2080 = vrot.lane.b32.xlu0 %v1917, 92
      %v2081 = vpop.permute.xlu0 %2080
      %2082 = vrot.lane.b32.xlu0 %v1918, 92
      %v2083 = vpop.permute.xlu0 %2082
      %2084 = vrot.lane.b32.xlu0 %v1919, 92
      %v2085 = vpop.permute.xlu0 %2084
      %2086 = vrot.lane.b32.xlu0 %v1920, 92
      %v2087 = vpop.permute.xlu0 %2086
      %2088 = vrot.lane.b32.xlu0 %v1921, 92
      %v2089 = vpop.permute.xlu0 %2088
      %v2090 = vsel %vm1291, %v2073, %v2075
      %v2091 = vsel %vm1291, %v2075, %v2077
      %v2092 = vsel %vm1291, %v2077, %v2079
      %v2093 = vsel %vm1291, %v2079, %v2081
      %v2094 = vsel %vm1291, %v2081, %v2083
      %v2095 = vsel %vm1291, %v2083, %v2085
      %v2096 = vsel %vm1291, %v2085, %v2087
      %v2097 = vsel %vm1291, %v2087, %v2089
      %2108 = vrot.lane.b32.xlu0 %v1913, 60
      %v2109 = vpop.permute.xlu0 %2108
      %2110 = vrot.lane.b32.xlu0 %v1914, 60
      %v2111 = vpop.permute.xlu0 %2110
      %2112 = vrot.lane.b32.xlu0 %v1915, 60
      %v2113 = vpop.permute.xlu0 %2112
      %2114 = vrot.lane.b32.xlu0 %v1916, 60
      %v2115 = vpop.permute.xlu0 %2114
      %2116 = vrot.lane.b32.xlu0 %v1917, 60
      %v2117 = vpop.permute.xlu0 %2116
      %2118 = vrot.lane.b32.xlu0 %v1918, 60
      %v2119 = vpop.permute.xlu0 %2118
      %2120 = vrot.lane.b32.xlu0 %v1919, 60
      %v2121 = vpop.permute.xlu0 %2120
      %2122 = vrot.lane.b32.xlu0 %v1920, 60
      %v2123 = vpop.permute.xlu0 %2122
      %2124 = vrot.lane.b32.xlu0 %v1921, 60
      %v2125 = vpop.permute.xlu0 %2124
      %2126 = vrot.lane.b32.xlu0 %v1922, 60
      %v2127 = vpop.permute.xlu0 %2126
      %v2128 = vsel %vm1330, %v2109, %v2111
      %v2129 = vsel %vm1330, %v2111, %v2113
      %v2130 = vsel %vm1330, %v2113, %v2115
      %v2131 = vsel %vm1330, %v2115, %v2117
      %v2132 = vsel %vm1330, %v2117, %v2119
      %v2133 = vsel %vm1330, %v2119, %v2121
      %v2134 = vsel %vm1330, %v2121, %v2123
      %v2135 = vsel %vm1330, %v2123, %v2125
      %v2136 = vsel %vm1330, %v2125, %v2127
      %2146 = vrot.lane.b32.xlu0 %v1913, 59
      %v2147 = vpop.permute.xlu0 %2146
      %2148 = vrot.lane.b32.xlu0 %v1914, 59
      %v2149 = vpop.permute.xlu0 %2148
      %2150 = vrot.lane.b32.xlu0 %v1915, 59
      %v2151 = vpop.permute.xlu0 %2150
      %2152 = vrot.lane.b32.xlu0 %v1916, 59
      %v2153 = vpop.permute.xlu0 %2152
      %2154 = vrot.lane.b32.xlu0 %v1917, 59
      %v2155 = vpop.permute.xlu0 %2154
      %2156 = vrot.lane.b32.xlu0 %v1918, 59
      %v2157 = vpop.permute.xlu0 %2156
      %2158 = vrot.lane.b32.xlu0 %v1919, 59
      %v2159 = vpop.permute.xlu0 %2158
      %2160 = vrot.lane.b32.xlu0 %v1920, 59
      %v2161 = vpop.permute.xlu0 %2160
      %2162 = vrot.lane.b32.xlu0 %v1921, 59
      %v2163 = vpop.permute.xlu0 %2162
      %2164 = vrot.lane.b32.xlu0 %v1922, 59
      %v2165 = vpop.permute.xlu0 %2164
      %v2166 = vsel %vm1369, %v2147, %v2149
      %v2167 = vsel %vm1369, %v2149, %v2151
      %v2168 = vsel %vm1369, %v2151, %v2153
      %v2169 = vsel %vm1369, %v2153, %v2155
      %v2170 = vsel %vm1369, %v2155, %v2157
      %v2171 = vsel %vm1369, %v2157, %v2159
      %v2172 = vsel %vm1369, %v2159, %v2161
      %v2173 = vsel %vm1369, %v2161, %v2163
      %v2174 = vsel %vm1369, %v2163, %v2165
      %2184 = vrot.lane.b32.xlu0 %v1913, 58
      %v2185 = vpop.permute.xlu0 %2184
      %2186 = vrot.lane.b32.xlu0 %v1914, 58
      %v2187 = vpop.permute.xlu0 %2186
      %2188 = vrot.lane.b32.xlu0 %v1915, 58
      %v2189 = vpop.permute.xlu0 %2188
      %2190 = vrot.lane.b32.xlu0 %v1916, 58
      %v2191 = vpop.permute.xlu0 %2190
      %2192 = vrot.lane.b32.xlu0 %v1917, 58
      %v2193 = vpop.permute.xlu0 %2192
      %2194 = vrot.lane.b32.xlu0 %v1918, 58
      %v2195 = vpop.permute.xlu0 %2194
      %2196 = vrot.lane.b32.xlu0 %v1919, 58
      %v2197 = vpop.permute.xlu0 %2196
      %2198 = vrot.lane.b32.xlu0 %v1920, 58
      %v2199 = vpop.permute.xlu0 %2198
      %2200 = vrot.lane.b32.xlu0 %v1921, 58
      %v2201 = vpop.permute.xlu0 %2200
      %2202 = vrot.lane.b32.xlu0 %v1922, 58
      %v2203 = vpop.permute.xlu0 %2202
      %v2204 = vsel %vm1408, %v2185, %v2187
      %v2205 = vsel %vm1408, %v2187, %v2189
      %v2206 = vsel %vm1408, %v2189, %v2191
      %v2207 = vsel %vm1408, %v2191, %v2193
      %v2208 = vsel %vm1408, %v2193, %v2195
      %v2209 = vsel %vm1408, %v2195, %v2197
      %v2210 = vsel %vm1408, %v2197, %v2199
      %v2211 = vsel %vm1408, %v2199, %v2201
      %v2212 = vsel %vm1408, %v2201, %v2203
      %v2222 = vld [vmem:[%s3] sm:$0xff]
      %v2223 = vld [vmem:[%s4] sm:$0xff]
      %2225 = vset.pattern.permute.xlu0 0
      %2226 = vperm.xlu0 %2225, %v2223
      %v2227 = vpop.permute.xlu0 %2226
      %v2230 = vsel %vm1434, %v2222, 0
      %2232 = vmatprep.subr.mxu0 0.0
      %2233 = vmatpush1.msra.mxu0 0.0
      %2234 = vmatprep.subr.mxu0 0.0
      %2235 = vmatpush1.msra.mxu0 0.0
      %2236 = vmatprep.subr.mxu0 0.0
      %2237 = vmatpush1.msra.mxu0 0.0
      %2238 = vmatprep.subr.mxu0 0.0
      %2239 = vmatpush1.msra.mxu0 0.0
      %2240 = vmatprep.subr.mxu0 0.0
      %2241 = vmatpush1.msra.mxu0 0.0
      %2242 = vmatprep.subr.mxu0 0.0
      %2243 = vmatpush1.msra.mxu0 0.0
      %2244 = vmatprep.subr.mxu0 0.0
      %2245 = vmatpush1.msra.mxu0 0.0
      %2246 = vmatprep.subr.mxu0 %v2205
      %2247 = vmatpush1.msra.mxu0 %v2204
      %2248 = vmatprep.subr.mxu0 %v2167
      %2249 = vmatpush1.msra.mxu0 %v2166
      %2250 = vmatprep.subr.mxu0 %v2129
      %2251 = vmatpush1.msra.mxu0 %v2128
      %2252 = vmatprep.subr.mxu0 %v2091
      %2253 = vmatpush1.msra.mxu0 %v2090
      %2254 = vmatprep.subr.mxu0 %v2056
      %2255 = vmatpush1.msra.mxu0 %v2055
      %2256 = vmatprep.subr.mxu0 %v2021
      %2257 = vmatpush1.msra.mxu0 %v2020
      %2258 = vmatprep.subr.mxu0 %v1986
      %2259 = vmatpush1.msra.mxu0 %v1985
      %2260 = vmatprep.subr.mxu0 %v1951
      %2261 = vmatpush1.msra.mxu0 %v1950
      %2262 = vmatprep.subr.mxu0 %v1914
      %2263 = vmatpush1.msra.mxu0 %v1913
      %2264 = vmatprep.subr.mxu0 0.0
      %2265 = vmatpush2.msra.mxu0 0.0
      %2266 = vmatprep.subr.mxu0 0.0
      %2267 = vmatpush2.msra.mxu0 0.0
      %2268 = vmatprep.subr.mxu0 0.0
      %2269 = vmatpush2.msra.mxu0 0.0
      %2270 = vmatprep.subr.mxu0 0.0
      %2271 = vmatpush2.msra.mxu0 0.0
      %2272 = vmatprep.subr.mxu0 0.0
      %2273 = vmatpush2.msra.mxu0 0.0
      %2274 = vmatprep.subr.mxu0 0.0
      %2275 = vmatpush2.msra.mxu0 0.0
      %2276 = vmatprep.subr.mxu0 0.0
      %2277 = vmatpush2.msra.mxu0 0.0
      %2278 = vmatprep.subr.mxu0 0.0
      %2279 = vmatpush2.msra.mxu0 0.0
      %2280 = vmatprep.subr.mxu0 0.0
      %2281 = vmatpush2.msra.mxu0 0.0
      %2282 = vmatprep.subr.mxu0 0.0
      %2283 = vmatpush2.msra.mxu0 0.0
      %2284 = vmatprep.subr.mxu0 0.0
      %2285 = vmatpush2.msra.mxu0 0.0
      %2286 = vmatprep.subr.mxu0 0.0
      %2287 = vmatpush2.msra.mxu0 0.0
      %2288 = vmatprep.subr.mxu0 0.0
      %2289 = vmatpush2.msra.mxu0 0.0
      %2290 = vmatprep.subr.mxu0 0.0
      %2291 = vmatpush2.msra.mxu0 0.0
      %2292 = vmatprep.subr.mxu0 0.0
      %2293 = vmatpush2.msra.mxu0 0.0
      %2294 = vmatprep.subr.mxu0 0.0
      %2295 = vmatpush2.msra.mxu0 0.0
      %2296 = vmatprep.mubr.f32.mxu0 0.0
      %2297 = vmatmul.mubr.f32.gmra.mxu0 %v2230
      %v2298 = vpop.f32.mrf.mxu0
      %v2299 = vadd.f32 %v2227, %v2298
      %v2300 = vpop.f32.mrf.mxu0
      %v2301 = vadd.f32 %v2227, %v2300
      %2302 = vdwg.mxu0
      %2303 = vmatprep.subr.mxu0 0.0
      %2304 = vmatpush1.msra.mxu0 0.0
      %2305 = vmatprep.subr.mxu0 0.0
      %2306 = vmatpush1.msra.mxu0 0.0
      %2307 = vmatprep.subr.mxu0 0.0
      %2308 = vmatpush1.msra.mxu0 0.0
      %2309 = vmatprep.subr.mxu0 0.0
      %2310 = vmatpush1.msra.mxu0 0.0
      %2311 = vmatprep.subr.mxu0 0.0
      %2312 = vmatpush1.msra.mxu0 0.0
      %2313 = vmatprep.subr.mxu0 0.0
      %2314 = vmatpush1.msra.mxu0 0.0
      %2315 = vmatprep.subr.mxu0 0.0
      %2316 = vmatpush1.msra.mxu0 0.0
      %2317 = vmatprep.subr.mxu0 %v2207
      %2318 = vmatpush1.msra.mxu0 %v2206
      %2319 = vmatprep.subr.mxu0 %v2169
      %2320 = vmatpush1.msra.mxu0 %v2168
      %2321 = vmatprep.subr.mxu0 %v2131
      %2322 = vmatpush1.msra.mxu0 %v2130
      %2323 = vmatprep.subr.mxu0 %v2093
      %2324 = vmatpush1.msra.mxu0 %v2092
      %2325 = vmatprep.subr.mxu0 %v2058
      %2326 = vmatpush1.msra.mxu0 %v2057
      %2327 = vmatprep.subr.mxu0 %v2023
      %2328 = vmatpush1.msra.mxu0 %v2022
      %2329 = vmatprep.subr.mxu0 %v1988
      %2330 = vmatpush1.msra.mxu0 %v1987
      %2331 = vmatprep.subr.mxu0 %v1953
      %2332 = vmatpush1.msra.mxu0 %v1952
      %2333 = vmatprep.subr.mxu0 %v1916
      %2334 = vmatpush1.msra.mxu0 %v1915
      %2335 = vmatprep.subr.mxu0 0.0
      %2336 = vmatpush2.msra.mxu0 0.0
      %2337 = vmatprep.subr.mxu0 0.0
      %2338 = vmatpush2.msra.mxu0 0.0
      %2339 = vmatprep.subr.mxu0 0.0
      %2340 = vmatpush2.msra.mxu0 0.0
      %2341 = vmatprep.subr.mxu0 0.0
      %2342 = vmatpush2.msra.mxu0 0.0
      %2343 = vmatprep.subr.mxu0 0.0
      %2344 = vmatpush2.msra.mxu0 0.0
      %2345 = vmatprep.subr.mxu0 0.0
      %2346 = vmatpush2.msra.mxu0 0.0
      %2347 = vmatprep.subr.mxu0 0.0
      %2348 = vmatpush2.msra.mxu0 0.0
      %2349 = vmatprep.subr.mxu0 0.0
      %2350 = vmatpush2.msra.mxu0 0.0
      %2351 = vmatprep.subr.mxu0 0.0
      %2352 = vmatpush2.msra.mxu0 0.0
      %2353 = vmatprep.subr.mxu0 0.0
      %2354 = vmatpush2.msra.mxu0 0.0
      %2355 = vmatprep.subr.mxu0 0.0
      %2356 = vmatpush2.msra.mxu0 0.0
      %2357 = vmatprep.subr.mxu0 0.0
      %2358 = vmatpush2.msra.mxu0 0.0
      %2359 = vmatprep.subr.mxu0 0.0
      %2360 = vmatpush2.msra.mxu0 0.0
      %2361 = vmatprep.subr.mxu0 0.0
      %2362 = vmatpush2.msra.mxu0 0.0
      %2363 = vmatprep.subr.mxu0 0.0
      %2364 = vmatpush2.msra.mxu0 0.0
      %2365 = vmatprep.subr.mxu0 0.0
      %2366 = vmatpush2.msra.mxu0 0.0
      %2367 = vmatprep.mubr.f32.mxu0 0.0
      %2368 = vmatmul.mubr.f32.gmra.mxu0 %v2230
      %v2369 = vpop.f32.mrf.mxu0
      %v2370 = vadd.f32 %v2227, %v2369
      %v2371 = vpop.f32.mrf.mxu0
      %v2372 = vadd.f32 %v2227, %v2371
      %2373 = vdwg.mxu0
      %2374 = vmatprep.subr.mxu0 0.0
      %2375 = vmatpush1.msra.mxu0 0.0
      %2376 = vmatprep.subr.mxu0 0.0
      %2377 = vmatpush1.msra.mxu0 0.0
      %2378 = vmatprep.subr.mxu0 0.0
      %2379 = vmatpush1.msra.mxu0 0.0
      %2380 = vmatprep.subr.mxu0 0.0
      %2381 = vmatpush1.msra.mxu0 0.0
      %2382 = vmatprep.subr.mxu0 0.0
      %2383 = vmatpush1.msra.mxu0 0.0
      %2384 = vmatprep.subr.mxu0 0.0
      %2385 = vmatpush1.msra.mxu0 0.0
      %2386 = vmatprep.subr.mxu0 0.0
      %2387 = vmatpush1.msra.mxu0 0.0
      %2388 = vmatprep.subr.mxu0 %v2209
      %2389 = vmatpush1.msra.mxu0 %v2208
      %2390 = vmatprep.subr.mxu0 %v2171
      %2391 = vmatpush1.msra.mxu0 %v2170
      %2392 = vmatprep.subr.mxu0 %v2133
      %2393 = vmatpush1.msra.mxu0 %v2132
      %2394 = vmatprep.subr.mxu0 %v2095
      %2395 = vmatpush1.msra.mxu0 %v2094
      %2396 = vmatprep.subr.mxu0 %v2060
      %2397 = vmatpush1.msra.mxu0 %v2059
      %2398 = vmatprep.subr.mxu0 %v2025
      %2399 = vmatpush1.msra.mxu0 %v2024
      %2400 = vmatprep.subr.mxu0 %v1990
      %2401 = vmatpush1.msra.mxu0 %v1989
      %2402 = vmatprep.subr.mxu0 %v1955
      %2403 = vmatpush1.msra.mxu0 %v1954
      %2404 = vmatprep.subr.mxu0 %v1918
      %2405 = vmatpush1.msra.mxu0 %v1917
      %2406 = vmatprep.subr.mxu0 0.0
      %2407 = vmatpush2.msra.mxu0 0.0
      %2408 = vmatprep.subr.mxu0 0.0
      %2409 = vmatpush2.msra.mxu0 0.0
      %2410 = vmatprep.subr.mxu0 0.0
      %2411 = vmatpush2.msra.mxu0 0.0
      %2412 = vmatprep.subr.mxu0 0.0
      %2413 = vmatpush2.msra.mxu0 0.0
      %2414 = vmatprep.subr.mxu0 0.0
      %2415 = vmatpush2.msra.mxu0 0.0
      %2416 = vmatprep.subr.mxu0 0.0
      %2417 = vmatpush2.msra.mxu0 0.0
      %2418 = vmatprep.subr.mxu0 0.0
      %2419 = vmatpush2.msra.mxu0 0.0
      %2420 = vmatprep.subr.mxu0 0.0
      %2421 = vmatpush2.msra.mxu0 0.0
      %2422 = vmatprep.subr.mxu0 0.0
      %2423 = vmatpush2.msra.mxu0 0.0
      %2424 = vmatprep.subr.mxu0 0.0
      %2425 = vmatpush2.msra.mxu0 0.0
      %2426 = vmatprep.subr.mxu0 0.0
      %2427 = vmatpush2.msra.mxu0 0.0
      %2428 = vmatprep.subr.mxu0 0.0
      %2429 = vmatpush2.msra.mxu0 0.0
      %2430 = vmatprep.subr.mxu0 0.0
      %2431 = vmatpush2.msra.mxu0 0.0
      %2432 = vmatprep.subr.mxu0 0.0
      %2433 = vmatpush2.msra.mxu0 0.0
      %2434 = vmatprep.subr.mxu0 0.0
      %2435 = vmatpush2.msra.mxu0 0.0
      %2436 = vmatprep.subr.mxu0 0.0
      %2437 = vmatpush2.msra.mxu0 0.0
      %2438 = vmatprep.mubr.f32.mxu0 0.0
      %2439 = vmatmul.mubr.f32.gmra.mxu0 %v2230
      %v2440 = vpop.f32.mrf.mxu0
      %v2441 = vadd.f32 %v2227, %v2440
      %v2442 = vpop.f32.mrf.mxu0
      %v2443 = vadd.f32 %v2227, %v2442
      %2444 = vdwg.mxu0
      %2445 = vmatprep.subr.mxu0 0.0
      %2446 = vmatpush1.msra.mxu0 0.0
      %2447 = vmatprep.subr.mxu0 0.0
      %2448 = vmatpush1.msra.mxu0 0.0
      %2449 = vmatprep.subr.mxu0 0.0
      %2450 = vmatpush1.msra.mxu0 0.0
      %2451 = vmatprep.subr.mxu0 0.0
      %2452 = vmatpush1.msra.mxu0 0.0
      %2453 = vmatprep.subr.mxu0 0.0
      %2454 = vmatpush1.msra.mxu0 0.0
      %2455 = vmatprep.subr.mxu0 0.0
      %2456 = vmatpush1.msra.mxu0 0.0
      %2457 = vmatprep.subr.mxu0 0.0
      %2458 = vmatpush1.msra.mxu0 0.0
      %2459 = vmatprep.subr.mxu0 %v2211
      %2460 = vmatpush1.msra.mxu0 %v2210
      %2461 = vmatprep.subr.mxu0 %v2173
      %2462 = vmatpush1.msra.mxu0 %v2172
      %2463 = vmatprep.subr.mxu0 %v2135
      %2464 = vmatpush1.msra.mxu0 %v2134
      %2465 = vmatprep.subr.mxu0 %v2097
      %2466 = vmatpush1.msra.mxu0 %v2096
      %2467 = vmatprep.subr.mxu0 %v2062
      %2468 = vmatpush1.msra.mxu0 %v2061
      %2469 = vmatprep.subr.mxu0 %v2027
      %2470 = vmatpush1.msra.mxu0 %v2026
      %2471 = vmatprep.subr.mxu0 %v1992
      %2472 = vmatpush1.msra.mxu0 %v1991
      %2473 = vmatprep.subr.mxu0 %v1957
      %2474 = vmatpush1.msra.mxu0 %v1956
      %2475 = vmatprep.subr.mxu0 %v1920
      %2476 = vmatpush1.msra.mxu0 %v1919
      %2477 = vmatprep.subr.mxu0 0.0
      %2478 = vmatpush2.msra.mxu0 0.0
      %2479 = vmatprep.subr.mxu0 0.0
      %2480 = vmatpush2.msra.mxu0 0.0
      %2481 = vmatprep.subr.mxu0 0.0
      %2482 = vmatpush2.msra.mxu0 0.0
      %2483 = vmatprep.subr.mxu0 0.0
      %2484 = vmatpush2.msra.mxu0 0.0
      %2485 = vmatprep.subr.mxu0 0.0
      %2486 = vmatpush2.msra.mxu0 0.0
      %2487 = vmatprep.subr.mxu0 0.0
      %2488 = vmatpush2.msra.mxu0 0.0
      %2489 = vmatprep.subr.mxu0 0.0
      %2490 = vmatpush2.msra.mxu0 0.0
      %2491 = vmatprep.subr.mxu0 0.0
      %2492 = vmatpush2.msra.mxu0 0.0
      %2493 = vmatprep.subr.mxu0 0.0
      %2494 = vmatpush2.msra.mxu0 0.0
      %2495 = vmatprep.subr.mxu0 0.0
      %2496 = vmatpush2.msra.mxu0 0.0
      %2497 = vmatprep.subr.mxu0 0.0
      %2498 = vmatpush2.msra.mxu0 0.0
      %2499 = vmatprep.subr.mxu0 0.0
      %2500 = vmatpush2.msra.mxu0 0.0
      %2501 = vmatprep.subr.mxu0 0.0
      %2502 = vmatpush2.msra.mxu0 0.0
      %2503 = vmatprep.subr.mxu0 0.0
      %2504 = vmatpush2.msra.mxu0 0.0
      %2505 = vmatprep.subr.mxu0 0.0
      %2506 = vmatpush2.msra.mxu0 0.0
      %2507 = vmatprep.subr.mxu0 0.0
      %2508 = vmatpush2.msra.mxu0 0.0
      %2509 = vmatprep.mubr.f32.mxu0 0.0
      %2510 = vmatmul.mubr.f32.gmra.mxu0 %v2230
      %v2511 = vpop.f32.mrf.mxu0
      %v2512 = vadd.f32 %v2227, %v2511
      %v2513 = vpop.f32.mrf.mxu0
      %v2514 = vadd.f32 %v2227, %v2513
      %2515 = vdwg.mxu0
      %2516 = vmatprep.subr.mxu0 0.0
      %2517 = vmatpush1.msra.mxu0 0.0
      %2518 = vmatprep.subr.mxu0 0.0
      %2519 = vmatpush1.msra.mxu0 0.0
      %2520 = vmatprep.subr.mxu0 0.0
      %2521 = vmatpush1.msra.mxu0 0.0
      %2522 = vmatprep.subr.mxu0 0.0
      %2523 = vmatpush1.msra.mxu0 0.0
      %2524 = vmatprep.subr.mxu0 0.0
      %2525 = vmatpush1.msra.mxu0 0.0
      %2526 = vmatprep.subr.mxu0 0.0
      %2527 = vmatpush1.msra.mxu0 0.0
      %2528 = vmatprep.subr.mxu0 0.0
      %2529 = vmatpush1.msra.mxu0 0.0
      %2530 = vmatprep.subr.mxu0 0.0
      %2531 = vmatpush1.msra.mxu0 %v2212
      %2532 = vmatprep.subr.mxu0 0.0
      %2533 = vmatpush1.msra.mxu0 %v2174
      %2534 = vmatprep.subr.mxu0 0.0
      %2535 = vmatpush1.msra.mxu0 %v2136
      %2536 = vmatprep.subr.mxu0 0.0
      %2537 = vmatpush1.msra.mxu0 %v2089
      %2538 = vmatprep.subr.mxu0 0.0
      %2539 = vmatpush1.msra.mxu0 %v2054
      %2540 = vmatprep.subr.mxu0 0.0
      %2541 = vmatpush1.msra.mxu0 %v2019
      %2542 = vmatprep.subr.mxu0 0.0
      %2543 = vmatpush1.msra.mxu0 %v1984
      %2544 = vmatprep.subr.mxu0 0.0
      %2545 = vmatpush1.msra.mxu0 %v1949
      %2546 = vmatprep.subr.mxu0 0.0
      %2547 = vmatpush1.msra.mxu0 %v1921
      %2548 = vmatprep.subr.mxu0 0.0
      %2549 = vmatpush2.msra.mxu0 0.0
      %2550 = vmatprep.subr.mxu0 0.0
      %2551 = vmatpush2.msra.mxu0 0.0
      %2552 = vmatprep.subr.mxu0 0.0
      %2553 = vmatpush2.msra.mxu0 0.0
      %2554 = vmatprep.subr.mxu0 0.0
      %2555 = vmatpush2.msra.mxu0 0.0
      %2556 = vmatprep.subr.mxu0 0.0
      %2557 = vmatpush2.msra.mxu0 0.0
      %2558 = vmatprep.subr.mxu0 0.0
      %2559 = vmatpush2.msra.mxu0 0.0
      %2560 = vmatprep.subr.mxu0 0.0
      %2561 = vmatpush2.msra.mxu0 0.0
      %2562 = vmatprep.subr.mxu0 0.0
      %2563 = vmatpush2.msra.mxu0 0.0
      %2564 = vmatprep.subr.mxu0 0.0
      %2565 = vmatpush2.msra.mxu0 0.0
      %2566 = vmatprep.subr.mxu0 0.0
      %2567 = vmatpush2.msra.mxu0 0.0
      %2568 = vmatprep.subr.mxu0 0.0
      %2569 = vmatpush2.msra.mxu0 0.0
      %2570 = vmatprep.subr.mxu0 0.0
      %2571 = vmatpush2.msra.mxu0 0.0
      %2572 = vmatprep.subr.mxu0 0.0
      %2573 = vmatpush2.msra.mxu0 0.0
      %2574 = vmatprep.subr.mxu0 0.0
      %2575 = vmatpush2.msra.mxu0 0.0
      %2576 = vmatprep.subr.mxu0 0.0
      %2577 = vmatpush2.msra.mxu0 0.0
      %2578 = vmatprep.subr.mxu0 0.0
      %2579 = vmatpush2.msra.mxu0 0.0
      %2580 = vmatprep.mubr.f32.mxu0 0.0
      %2581 = vmatmul.mubr.f32.gmra.mxu0 %v2230
      %v2582 = vpop.f32.mrf.mxu0
      %v2583 = vadd.f32 %v2227, %v2582
      %v2584 = vpop.f32.mrf.mxu0
      %2585 = vdwg.mxu0
      %v2586 = vmax.f32 %v2299, 0.0
      %v2587 = vmax.f32 %v2301, 0.0
      %v2588 = vmax.f32 %v2370, 0.0
      %v2589 = vmax.f32 %v2372, 0.0
      %v2590 = vmax.f32 %v2441, 0.0
      %v2591 = vmax.f32 %v2443, 0.0
      %v2592 = vmax.f32 %v2512, 0.0
      %v2593 = vmax.f32 %v2514, 0.0
      %v2594 = vmax.f32 %v2583, 0.0
      %v2595 = vmul.f32 %v2586, %v1806
      %v2596 = vmul.f32 %v2587, %v1810
      %v2597 = vmul.f32 %v2588, %v1814
      %v2598 = vmul.f32 %v2589, %v1818
      %v2599 = vmul.f32 %v2590, %v1822
      %v2600 = vmul.f32 %v2591, %v1826
      %v2601 = vmul.f32 %v2592, %v1830
      %v2602 = vmul.f32 %v2593, %v1834
      %v2603 = vmul.f32 %v2594, %v1838
      %2613 = vrot.lane.b32.xlu0 %v2595, 35
      %v2614 = vpop.permute.xlu0 %2613
      %2615 = vrot.lane.b32.xlu0 %v2596, 35
      %v2616 = vpop.permute.xlu0 %2615
      %2617 = vrot.lane.b32.xlu0 %v2597, 35
      %v2618 = vpop.permute.xlu0 %2617
      %2619 = vrot.lane.b32.xlu0 %v2598, 35
      %v2620 = vpop.permute.xlu0 %2619
      %2621 = vrot.lane.b32.xlu0 %v2599, 35
      %v2622 = vpop.permute.xlu0 %2621
      %2623 = vrot.lane.b32.xlu0 %v2600, 35
      %v2624 = vpop.permute.xlu0 %2623
      %2625 = vrot.lane.b32.xlu0 %v2601, 35
      %v2626 = vpop.permute.xlu0 %2625
      %2627 = vrot.lane.b32.xlu0 %v2602, 35
      %v2628 = vpop.permute.xlu0 %2627
      %2629 = vrot.lane.b32.xlu0 %v2603, 35
      %v2630 = vpop.permute.xlu0 %2629
      %v2631 = vsel %vm1884, %v2614, %v2616
      %v2632 = vsel %vm1884, %v2616, %v2618
      %v2633 = vsel %vm1884, %v2618, %v2620
      %v2634 = vsel %vm1884, %v2620, %v2622
      %v2635 = vsel %vm1884, %v2622, %v2624
      %v2636 = vsel %vm1884, %v2624, %v2626
      %v2637 = vsel %vm1884, %v2626, %v2628
      %v2638 = vsel %vm1884, %v2628, %v2630
      %2648 = vst.msk [vmem:[#allocation4] sm:$0xff] %vm1902, %v2614
      %2649 = vst [vmem:[#allocation4 + $0x8] sm:$0xff] %v2631
      %2650 = vst [vmem:[#allocation4 + $0x10] sm:$0xff] %v2632
      %2651 = vst [vmem:[#allocation4 + $0x18] sm:$0xff] %v2633
      %2652 = vst [vmem:[#allocation4 + $0x20] sm:$0xff] %v2634
      %2653 = vst [vmem:[#allocation4 + $0x28] sm:$0xff] %v2635
      %2654 = vst [vmem:[#allocation4 + $0x30] sm:$0xff] %v2636
      %2655 = vst [vmem:[#allocation4 + $0x38] sm:$0xff] %v2637
      %2656 = vst.msk [vmem:[#allocation4 + $0x40] sm:$0xff] %vm1911, %v2638
      %v2657 = vld [vmem:[#allocation4] sm:$0xff]
      %v2658 = vld [vmem:[#allocation4 + $0x8] sm:$0xff]
      %v2659 = vld [vmem:[#allocation4 + $0x10] sm:$0xff]
      %v2660 = vld [vmem:[#allocation4 + $0x18] sm:$0xff]
      %v2661 = vld [vmem:[#allocation4 + $0x20] sm:$0xff]
      %v2662 = vld [vmem:[#allocation4 + $0x28] sm:$0xff]
      %v2663 = vld [vmem:[#allocation4 + $0x30] sm:$0xff]
      %v2664 = vld [vmem:[#allocation4 + $0x38] sm:$0xff]
      %v2665 = vld [vmem:[#allocation4 + $0x40] sm:$0xff]
      %v2666 = vld [vmem:[#allocation4 + $0x48] sm:$0xff]
      %2676 = vrot.lane.b32.xlu0 %v2657, 127
      %v2677 = vpop.permute.xlu0 %2676
      %2678 = vrot.lane.b32.xlu0 %v2658, 127
      %v2679 = vpop.permute.xlu0 %2678
      %2680 = vrot.lane.b32.xlu0 %v2659, 127
      %v2681 = vpop.permute.xlu0 %2680
      %2682 = vrot.lane.b32.xlu0 %v2660, 127
      %v2683 = vpop.permute.xlu0 %2682
      %2684 = vrot.lane.b32.xlu0 %v2661, 127
      %v2685 = vpop.permute.xlu0 %2684
      %2686 = vrot.lane.b32.xlu0 %v2662, 127
      %v2687 = vpop.permute.xlu0 %2686
      %2688 = vrot.lane.b32.xlu0 %v2663, 127
      %v2689 = vpop.permute.xlu0 %2688
      %2690 = vrot.lane.b32.xlu0 %v2664, 127
      %v2691 = vpop.permute.xlu0 %2690
      %2692 = vrot.lane.b32.xlu0 %v2665, 127
      %v2693 = vpop.permute.xlu0 %2692
      %v2694 = vsel %vm1147, %v2677, %v2679
      %v2695 = vsel %vm1147, %v2679, %v2681
      %v2696 = vsel %vm1147, %v2681, %v2683
      %v2697 = vsel %vm1147, %v2683, %v2685
      %v2698 = vsel %vm1147, %v2685, %v2687
      %v2699 = vsel %vm1147, %v2687, %v2689
      %v2700 = vsel %vm1147, %v2689, %v2691
      %v2701 = vsel %vm1147, %v2691, %v2693
      %2711 = vrot.lane.b32.xlu0 %v2657, 126
      %v2712 = vpop.permute.xlu0 %2711
      %2713 = vrot.lane.b32.xlu0 %v2658, 126
      %v2714 = vpop.permute.xlu0 %2713
      %2715 = vrot.lane.b32.xlu0 %v2659, 126
      %v2716 = vpop.permute.xlu0 %2715
      %2717 = vrot.lane.b32.xlu0 %v2660, 126
      %v2718 = vpop.permute.xlu0 %2717
      %2719 = vrot.lane.b32.xlu0 %v2661, 126
      %v2720 = vpop.permute.xlu0 %2719
      %2721 = vrot.lane.b32.xlu0 %v2662, 126
      %v2722 = vpop.permute.xlu0 %2721
      %2723 = vrot.lane.b32.xlu0 %v2663, 126
      %v2724 = vpop.permute.xlu0 %2723
      %2725 = vrot.lane.b32.xlu0 %v2664, 126
      %v2726 = vpop.permute.xlu0 %2725
      %2727 = vrot.lane.b32.xlu0 %v2665, 126
      %v2728 = vpop.permute.xlu0 %2727
      %v2729 = vsel %vm1183, %v2712, %v2714
      %v2730 = vsel %vm1183, %v2714, %v2716
      %v2731 = vsel %vm1183, %v2716, %v2718
      %v2732 = vsel %vm1183, %v2718, %v2720
      %v2733 = vsel %vm1183, %v2720, %v2722
      %v2734 = vsel %vm1183, %v2722, %v2724
      %v2735 = vsel %vm1183, %v2724, %v2726
      %v2736 = vsel %vm1183, %v2726, %v2728
      %2746 = vrot.lane.b32.xlu0 %v2657, 94
      %v2747 = vpop.permute.xlu0 %2746
      %2748 = vrot.lane.b32.xlu0 %v2658, 94
      %v2749 = vpop.permute.xlu0 %2748
      %2750 = vrot.lane.b32.xlu0 %v2659, 94
      %v2751 = vpop.permute.xlu0 %2750
      %2752 = vrot.lane.b32.xlu0 %v2660, 94
      %v2753 = vpop.permute.xlu0 %2752
      %2754 = vrot.lane.b32.xlu0 %v2661, 94
      %v2755 = vpop.permute.xlu0 %2754
      %2756 = vrot.lane.b32.xlu0 %v2662, 94
      %v2757 = vpop.permute.xlu0 %2756
      %2758 = vrot.lane.b32.xlu0 %v2663, 94
      %v2759 = vpop.permute.xlu0 %2758
      %2760 = vrot.lane.b32.xlu0 %v2664, 94
      %v2761 = vpop.permute.xlu0 %2760
      %2762 = vrot.lane.b32.xlu0 %v2665, 94
      %v2763 = vpop.permute.xlu0 %2762
      %v2764 = vsel %vm1219, %v2747, %v2749
      %v2765 = vsel %vm1219, %v2749, %v2751
      %v2766 = vsel %vm1219, %v2751, %v2753
      %v2767 = vsel %vm1219, %v2753, %v2755
      %v2768 = vsel %vm1219, %v2755, %v2757
      %v2769 = vsel %vm1219, %v2757, %v2759
      %v2770 = vsel %vm1219, %v2759, %v2761
      %v2771 = vsel %vm1219, %v2761, %v2763
      %2781 = vrot.lane.b32.xlu0 %v2657, 93
      %v2782 = vpop.permute.xlu0 %2781
      %2783 = vrot.lane.b32.xlu0 %v2658, 93
      %v2784 = vpop.permute.xlu0 %2783
      %2785 = vrot.lane.b32.xlu0 %v2659, 93
      %v2786 = vpop.permute.xlu0 %2785
      %2787 = vrot.lane.b32.xlu0 %v2660, 93
      %v2788 = vpop.permute.xlu0 %2787
      %2789 = vrot.lane.b32.xlu0 %v2661, 93
      %v2790 = vpop.permute.xlu0 %2789
      %2791 = vrot.lane.b32.xlu0 %v2662, 93
      %v2792 = vpop.permute.xlu0 %2791
      %2793 = vrot.lane.b32.xlu0 %v2663, 93
      %v2794 = vpop.permute.xlu0 %2793
      %2795 = vrot.lane.b32.xlu0 %v2664, 93
      %v2796 = vpop.permute.xlu0 %2795
      %2797 = vrot.lane.b32.xlu0 %v2665, 93
      %v2798 = vpop.permute.xlu0 %2797
      %v2799 = vsel %vm1255, %v2782, %v2784
      %v2800 = vsel %vm1255, %v2784, %v2786
      %v2801 = vsel %vm1255, %v2786, %v2788
      %v2802 = vsel %vm1255, %v2788, %v2790
      %v2803 = vsel %vm1255, %v2790, %v2792
      %v2804 = vsel %vm1255, %v2792, %v2794
      %v2805 = vsel %vm1255, %v2794, %v2796
      %v2806 = vsel %vm1255, %v2796, %v2798
      %2816 = vrot.lane.b32.xlu0 %v2657, 92
      %v2817 = vpop.permute.xlu0 %2816
      %2818 = vrot.lane.b32.xlu0 %v2658, 92
      %v2819 = vpop.permute.xlu0 %2818
      %2820 = vrot.lane.b32.xlu0 %v2659, 92
      %v2821 = vpop.permute.xlu0 %2820
      %2822 = vrot.lane.b32.xlu0 %v2660, 92
      %v2823 = vpop.permute.xlu0 %2822
      %2824 = vrot.lane.b32.xlu0 %v2661, 92
      %v2825 = vpop.permute.xlu0 %2824
      %2826 = vrot.lane.b32.xlu0 %v2662, 92
      %v2827 = vpop.permute.xlu0 %2826
      %2828 = vrot.lane.b32.xlu0 %v2663, 92
      %v2829 = vpop.permute.xlu0 %2828
      %2830 = vrot.lane.b32.xlu0 %v2664, 92
      %v2831 = vpop.permute.xlu0 %2830
      %2832 = vrot.lane.b32.xlu0 %v2665, 92
      %v2833 = vpop.permute.xlu0 %2832
      %v2834 = vsel %vm1291, %v2817, %v2819
      %v2835 = vsel %vm1291, %v2819, %v2821
      %v2836 = vsel %vm1291, %v2821, %v2823
      %v2837 = vsel %vm1291, %v2823, %v2825
      %v2838 = vsel %vm1291, %v2825, %v2827
      %v2839 = vsel %vm1291, %v2827, %v2829
      %v2840 = vsel %vm1291, %v2829, %v2831
      %v2841 = vsel %vm1291, %v2831, %v2833
      %2852 = vrot.lane.b32.xlu0 %v2657, 60
      %v2853 = vpop.permute.xlu0 %2852
      %2854 = vrot.lane.b32.xlu0 %v2658, 60
      %v2855 = vpop.permute.xlu0 %2854
      %2856 = vrot.lane.b32.xlu0 %v2659, 60
      %v2857 = vpop.permute.xlu0 %2856
      %2858 = vrot.lane.b32.xlu0 %v2660, 60
      %v2859 = vpop.permute.xlu0 %2858
      %2860 = vrot.lane.b32.xlu0 %v2661, 60
      %v2861 = vpop.permute.xlu0 %2860
      %2862 = vrot.lane.b32.xlu0 %v2662, 60
      %v2863 = vpop.permute.xlu0 %2862
      %2864 = vrot.lane.b32.xlu0 %v2663, 60
      %v2865 = vpop.permute.xlu0 %2864
      %2866 = vrot.lane.b32.xlu0 %v2664, 60
      %v2867 = vpop.permute.xlu0 %2866
      %2868 = vrot.lane.b32.xlu0 %v2665, 60
      %v2869 = vpop.permute.xlu0 %2868
      %2870 = vrot.lane.b32.xlu0 %v2666, 60
      %v2871 = vpop.permute.xlu0 %2870
      %v2872 = vsel %vm1330, %v2853, %v2855
      %v2873 = vsel %vm1330, %v2855, %v2857
      %v2874 = vsel %vm1330, %v2857, %v2859
      %v2875 = vsel %vm1330, %v2859, %v2861
      %v2876 = vsel %vm1330, %v2861, %v2863
      %v2877 = vsel %vm1330, %v2863, %v2865
      %v2878 = vsel %vm1330, %v2865, %v2867
      %v2879 = vsel %vm1330, %v2867, %v2869
      %v2880 = vsel %vm1330, %v2869, %v2871
      %2890 = vrot.lane.b32.xlu0 %v2657, 59
      %v2891 = vpop.permute.xlu0 %2890
      %2892 = vrot.lane.b32.xlu0 %v2658, 59
      %v2893 = vpop.permute.xlu0 %2892
      %2894 = vrot.lane.b32.xlu0 %v2659, 59
      %v2895 = vpop.permute.xlu0 %2894
      %2896 = vrot.lane.b32.xlu0 %v2660, 59
      %v2897 = vpop.permute.xlu0 %2896
      %2898 = vrot.lane.b32.xlu0 %v2661, 59
      %v2899 = vpop.permute.xlu0 %2898
      %2900 = vrot.lane.b32.xlu0 %v2662, 59
      %v2901 = vpop.permute.xlu0 %2900
      %2902 = vrot.lane.b32.xlu0 %v2663, 59
      %v2903 = vpop.permute.xlu0 %2902
      %2904 = vrot.lane.b32.xlu0 %v2664, 59
      %v2905 = vpop.permute.xlu0 %2904
      %2906 = vrot.lane.b32.xlu0 %v2665, 59
      %v2907 = vpop.permute.xlu0 %2906
      %2908 = vrot.lane.b32.xlu0 %v2666, 59
      %v2909 = vpop.permute.xlu0 %2908
      %v2910 = vsel %vm1369, %v2891, %v2893
      %v2911 = vsel %vm1369, %v2893, %v2895
      %v2912 = vsel %vm1369, %v2895, %v2897
      %v2913 = vsel %vm1369, %v2897, %v2899
      %v2914 = vsel %vm1369, %v2899, %v2901
      %v2915 = vsel %vm1369, %v2901, %v2903
      %v2916 = vsel %vm1369, %v2903, %v2905
      %v2917 = vsel %vm1369, %v2905, %v2907
      %v2918 = vsel %vm1369, %v2907, %v2909
      %2928 = vrot.lane.b32.xlu0 %v2657, 58
      %v2929 = vpop.permute.xlu0 %2928
      %2930 = vrot.lane.b32.xlu0 %v2658, 58
      %v2931 = vpop.permute.xlu0 %2930
      %2932 = vrot.lane.b32.xlu0 %v2659, 58
      %v2933 = vpop.permute.xlu0 %2932
      %2934 = vrot.lane.b32.xlu0 %v2660, 58
      %v2935 = vpop.permute.xlu0 %2934
      %2936 = vrot.lane.b32.xlu0 %v2661, 58
      %v2937 = vpop.permute.xlu0 %2936
      %2938 = vrot.lane.b32.xlu0 %v2662, 58
      %v2939 = vpop.permute.xlu0 %2938
      %2940 = vrot.lane.b32.xlu0 %v2663, 58
      %v2941 = vpop.permute.xlu0 %2940
      %2942 = vrot.lane.b32.xlu0 %v2664, 58
      %v2943 = vpop.permute.xlu0 %2942
      %2944 = vrot.lane.b32.xlu0 %v2665, 58
      %v2945 = vpop.permute.xlu0 %2944
      %2946 = vrot.lane.b32.xlu0 %v2666, 58
      %v2947 = vpop.permute.xlu0 %2946
      %v2948 = vsel %vm1408, %v2929, %v2931
      %v2949 = vsel %vm1408, %v2931, %v2933
      %v2950 = vsel %vm1408, %v2933, %v2935
      %v2951 = vsel %vm1408, %v2935, %v2937
      %v2952 = vsel %vm1408, %v2937, %v2939
      %v2953 = vsel %vm1408, %v2939, %v2941
      %v2954 = vsel %vm1408, %v2941, %v2943
      %v2955 = vsel %vm1408, %v2943, %v2945
      %v2956 = vsel %vm1408, %v2945, %v2947
      %v2966 = vld [vmem:[%s5] sm:$0xff]
      %v2967 = vld [vmem:[%s6] sm:$0xff]
      %2969 = vset.pattern.permute.xlu0 0
      %2970 = vperm.xlu0 %2969, %v2967
      %v2971 = vpop.permute.xlu0 %2970
      %v2974 = vsel %vm1434, %v2966, 0
      %2976 = vmatprep.subr.mxu0 0.0
      %2977 = vmatpush1.msra.mxu0 0.0
      %2978 = vmatprep.subr.mxu0 0.0
      %2979 = vmatpush1.msra.mxu0 0.0
      %2980 = vmatprep.subr.mxu0 0.0
      %2981 = vmatpush1.msra.mxu0 0.0
      %2982 = vmatprep.subr.mxu0 0.0
      %2983 = vmatpush1.msra.mxu0 0.0
      %2984 = vmatprep.subr.mxu0 0.0
      %2985 = vmatpush1.msra.mxu0 0.0
      %2986 = vmatprep.subr.mxu0 0.0
      %2987 = vmatpush1.msra.mxu0 0.0
      %2988 = vmatprep.subr.mxu0 0.0
      %2989 = vmatpush1.msra.mxu0 0.0
      %2990 = vmatprep.subr.mxu0 %v2949
      %2991 = vmatpush1.msra.mxu0 %v2948
      %2992 = vmatprep.subr.mxu0 %v2911
      %2993 = vmatpush1.msra.mxu0 %v2910
      %2994 = vmatprep.subr.mxu0 %v2873
      %2995 = vmatpush1.msra.mxu0 %v2872
      %2996 = vmatprep.subr.mxu0 %v2835
      %2997 = vmatpush1.msra.mxu0 %v2834
      %2998 = vmatprep.subr.mxu0 %v2800
      %2999 = vmatpush1.msra.mxu0 %v2799
      %3000 = vmatprep.subr.mxu0 %v2765
      %3001 = vmatpush1.msra.mxu0 %v2764
      %3002 = vmatprep.subr.mxu0 %v2730
      %3003 = vmatpush1.msra.mxu0 %v2729
      %3004 = vmatprep.subr.mxu0 %v2695
      %3005 = vmatpush1.msra.mxu0 %v2694
      %3006 = vmatprep.subr.mxu0 %v2658
      %3007 = vmatpush1.msra.mxu0 %v2657
      %3008 = vmatprep.subr.mxu0 0.0
      %3009 = vmatpush2.msra.mxu0 0.0
      %3010 = vmatprep.subr.mxu0 0.0
      %3011 = vmatpush2.msra.mxu0 0.0
      %3012 = vmatprep.subr.mxu0 0.0
      %3013 = vmatpush2.msra.mxu0 0.0
      %3014 = vmatprep.subr.mxu0 0.0
      %3015 = vmatpush2.msra.mxu0 0.0
      %3016 = vmatprep.subr.mxu0 0.0
      %3017 = vmatpush2.msra.mxu0 0.0
      %3018 = vmatprep.subr.mxu0 0.0
      %3019 = vmatpush2.msra.mxu0 0.0
      %3020 = vmatprep.subr.mxu0 0.0
      %3021 = vmatpush2.msra.mxu0 0.0
      %3022 = vmatprep.subr.mxu0 0.0
      %3023 = vmatpush2.msra.mxu0 0.0
      %3024 = vmatprep.subr.mxu0 0.0
      %3025 = vmatpush2.msra.mxu0 0.0
      %3026 = vmatprep.subr.mxu0 0.0
      %3027 = vmatpush2.msra.mxu0 0.0
      %3028 = vmatprep.subr.mxu0 0.0
      %3029 = vmatpush2.msra.mxu0 0.0
      %3030 = vmatprep.subr.mxu0 0.0
      %3031 = vmatpush2.msra.mxu0 0.0
      %3032 = vmatprep.subr.mxu0 0.0
      %3033 = vmatpush2.msra.mxu0 0.0
      %3034 = vmatprep.subr.mxu0 0.0
      %3035 = vmatpush2.msra.mxu0 0.0
      %3036 = vmatprep.subr.mxu0 0.0
      %3037 = vmatpush2.msra.mxu0 0.0
      %3038 = vmatprep.subr.mxu0 0.0
      %3039 = vmatpush2.msra.mxu0 0.0
      %3040 = vmatprep.mubr.f32.mxu0 0.0
      %3041 = vmatmul.mubr.f32.gmra.mxu0 %v2974
      %v3042 = vpop.f32.mrf.mxu0
      %v3043 = vadd.f32 %v2971, %v3042
      %v3044 = vpop.f32.mrf.mxu0
      %v3045 = vadd.f32 %v2971, %v3044
      %3046 = vdwg.mxu0
      %3047 = vmatprep.subr.mxu0 0.0
      %3048 = vmatpush1.msra.mxu0 0.0
      %3049 = vmatprep.subr.mxu0 0.0
      %3050 = vmatpush1.msra.mxu0 0.0
      %3051 = vmatprep.subr.mxu0 0.0
      %3052 = vmatpush1.msra.mxu0 0.0
      %3053 = vmatprep.subr.mxu0 0.0
      %3054 = vmatpush1.msra.mxu0 0.0
      %3055 = vmatprep.subr.mxu0 0.0
      %3056 = vmatpush1.msra.mxu0 0.0
      %3057 = vmatprep.subr.mxu0 0.0
      %3058 = vmatpush1.msra.mxu0 0.0
      %3059 = vmatprep.subr.mxu0 0.0
      %3060 = vmatpush1.msra.mxu0 0.0
      %3061 = vmatprep.subr.mxu0 %v2951
      %3062 = vmatpush1.msra.mxu0 %v2950
      %3063 = vmatprep.subr.mxu0 %v2913
      %3064 = vmatpush1.msra.mxu0 %v2912
      %3065 = vmatprep.subr.mxu0 %v2875
      %3066 = vmatpush1.msra.mxu0 %v2874
      %3067 = vmatprep.subr.mxu0 %v2837
      %3068 = vmatpush1.msra.mxu0 %v2836
      %3069 = vmatprep.subr.mxu0 %v2802
      %3070 = vmatpush1.msra.mxu0 %v2801
      %3071 = vmatprep.subr.mxu0 %v2767
      %3072 = vmatpush1.msra.mxu0 %v2766
      %3073 = vmatprep.subr.mxu0 %v2732
      %3074 = vmatpush1.msra.mxu0 %v2731
      %3075 = vmatprep.subr.mxu0 %v2697
      %3076 = vmatpush1.msra.mxu0 %v2696
      %3077 = vmatprep.subr.mxu0 %v2660
      %3078 = vmatpush1.msra.mxu0 %v2659
      %3079 = vmatprep.subr.mxu0 0.0
      %3080 = vmatpush2.msra.mxu0 0.0
      %3081 = vmatprep.subr.mxu0 0.0
      %3082 = vmatpush2.msra.mxu0 0.0
      %3083 = vmatprep.subr.mxu0 0.0
      %3084 = vmatpush2.msra.mxu0 0.0
      %3085 = vmatprep.subr.mxu0 0.0
      %3086 = vmatpush2.msra.mxu0 0.0
      %3087 = vmatprep.subr.mxu0 0.0
      %3088 = vmatpush2.msra.mxu0 0.0
      %3089 = vmatprep.subr.mxu0 0.0
      %3090 = vmatpush2.msra.mxu0 0.0
      %3091 = vmatprep.subr.mxu0 0.0
      %3092 = vmatpush2.msra.mxu0 0.0
      %3093 = vmatprep.subr.mxu0 0.0
      %3094 = vmatpush2.msra.mxu0 0.0
      %3095 = vmatprep.subr.mxu0 0.0
      %3096 = vmatpush2.msra.mxu0 0.0
      %3097 = vmatprep.subr.mxu0 0.0
      %3098 = vmatpush2.msra.mxu0 0.0
      %3099 = vmatprep.subr.mxu0 0.0
      %3100 = vmatpush2.msra.mxu0 0.0
      %3101 = vmatprep.subr.mxu0 0.0
      %3102 = vmatpush2.msra.mxu0 0.0
      %3103 = vmatprep.subr.mxu0 0.0
      %3104 = vmatpush2.msra.mxu0 0.0
      %3105 = vmatprep.subr.mxu0 0.0
      %3106 = vmatpush2.msra.mxu0 0.0
      %3107 = vmatprep.subr.mxu0 0.0
      %3108 = vmatpush2.msra.mxu0 0.0
      %3109 = vmatprep.subr.mxu0 0.0
      %3110 = vmatpush2.msra.mxu0 0.0
      %3111 = vmatprep.mubr.f32.mxu0 0.0
      %3112 = vmatmul.mubr.f32.gmra.mxu0 %v2974
      %v3113 = vpop.f32.mrf.mxu0
      %v3114 = vadd.f32 %v2971, %v3113
      %v3115 = vpop.f32.mrf.mxu0
      %v3116 = vadd.f32 %v2971, %v3115
      %3117 = vdwg.mxu0
      %3118 = vmatprep.subr.mxu0 0.0
      %3119 = vmatpush1.msra.mxu0 0.0
      %3120 = vmatprep.subr.mxu0 0.0
      %3121 = vmatpush1.msra.mxu0 0.0
      %3122 = vmatprep.subr.mxu0 0.0
      %3123 = vmatpush1.msra.mxu0 0.0
      %3124 = vmatprep.subr.mxu0 0.0
      %3125 = vmatpush1.msra.mxu0 0.0
      %3126 = vmatprep.subr.mxu0 0.0
      %3127 = vmatpush1.msra.mxu0 0.0
      %3128 = vmatprep.subr.mxu0 0.0
      %3129 = vmatpush1.msra.mxu0 0.0
      %3130 = vmatprep.subr.mxu0 0.0
      %3131 = vmatpush1.msra.mxu0 0.0
      %3132 = vmatprep.subr.mxu0 %v2953
      %3133 = vmatpush1.msra.mxu0 %v2952
      %3134 = vmatprep.subr.mxu0 %v2915
      %3135 = vmatpush1.msra.mxu0 %v2914
      %3136 = vmatprep.subr.mxu0 %v2877
      %3137 = vmatpush1.msra.mxu0 %v2876
      %3138 = vmatprep.subr.mxu0 %v2839
      %3139 = vmatpush1.msra.mxu0 %v2838
      %3140 = vmatprep.subr.mxu0 %v2804
      %3141 = vmatpush1.msra.mxu0 %v2803
      %3142 = vmatprep.subr.mxu0 %v2769
      %3143 = vmatpush1.msra.mxu0 %v2768
      %3144 = vmatprep.subr.mxu0 %v2734
      %3145 = vmatpush1.msra.mxu0 %v2733
      %3146 = vmatprep.subr.mxu0 %v2699
      %3147 = vmatpush1.msra.mxu0 %v2698
      %3148 = vmatprep.subr.mxu0 %v2662
      %3149 = vmatpush1.msra.mxu0 %v2661
      %3150 = vmatprep.subr.mxu0 0.0
      %3151 = vmatpush2.msra.mxu0 0.0
      %3152 = vmatprep.subr.mxu0 0.0
      %3153 = vmatpush2.msra.mxu0 0.0
      %3154 = vmatprep.subr.mxu0 0.0
      %3155 = vmatpush2.msra.mxu0 0.0
      %3156 = vmatprep.subr.mxu0 0.0
      %3157 = vmatpush2.msra.mxu0 0.0
      %3158 = vmatprep.subr.mxu0 0.0
      %3159 = vmatpush2.msra.mxu0 0.0
      %3160 = vmatprep.subr.mxu0 0.0
      %3161 = vmatpush2.msra.mxu0 0.0
      %3162 = vmatprep.subr.mxu0 0.0
      %3163 = vmatpush2.msra.mxu0 0.0
      %3164 = vmatprep.subr.mxu0 0.0
      %3165 = vmatpush2.msra.mxu0 0.0
      %3166 = vmatprep.subr.mxu0 0.0
      %3167 = vmatpush2.msra.mxu0 0.0
      %3168 = vmatprep.subr.mxu0 0.0
      %3169 = vmatpush2.msra.mxu0 0.0
      %3170 = vmatprep.subr.mxu0 0.0
      %3171 = vmatpush2.msra.mxu0 0.0
      %3172 = vmatprep.subr.mxu0 0.0
      %3173 = vmatpush2.msra.mxu0 0.0
      %3174 = vmatprep.subr.mxu0 0.0
      %3175 = vmatpush2.msra.mxu0 0.0
      %3176 = vmatprep.subr.mxu0 0.0
      %3177 = vmatpush2.msra.mxu0 0.0
      %3178 = vmatprep.subr.mxu0 0.0
      %3179 = vmatpush2.msra.mxu0 0.0
      %3180 = vmatprep.subr.mxu0 0.0
      %3181 = vmatpush2.msra.mxu0 0.0
      %3182 = vmatprep.mubr.f32.mxu0 0.0
      %3183 = vmatmul.mubr.f32.gmra.mxu0 %v2974
      %v3184 = vpop.f32.mrf.mxu0
      %v3185 = vadd.f32 %v2971, %v3184
      %v3186 = vpop.f32.mrf.mxu0
      %v3187 = vadd.f32 %v2971, %v3186
      %3188 = vdwg.mxu0
      %3189 = vmatprep.subr.mxu0 0.0
      %3190 = vmatpush1.msra.mxu0 0.0
      %3191 = vmatprep.subr.mxu0 0.0
      %3192 = vmatpush1.msra.mxu0 0.0
      %3193 = vmatprep.subr.mxu0 0.0
      %3194 = vmatpush1.msra.mxu0 0.0
      %3195 = vmatprep.subr.mxu0 0.0
      %3196 = vmatpush1.msra.mxu0 0.0
      %3197 = vmatprep.subr.mxu0 0.0
      %3198 = vmatpush1.msra.mxu0 0.0
      %3199 = vmatprep.subr.mxu0 0.0
      %3200 = vmatpush1.msra.mxu0 0.0
      %3201 = vmatprep.subr.mxu0 0.0
      %3202 = vmatpush1.msra.mxu0 0.0
      %3203 = vmatprep.subr.mxu0 %v2955
      %3204 = vmatpush1.msra.mxu0 %v2954
      %3205 = vmatprep.subr.mxu0 %v2917
      %3206 = vmatpush1.msra.mxu0 %v2916
      %3207 = vmatprep.subr.mxu0 %v2879
      %3208 = vmatpush1.msra.mxu0 %v2878
      %3209 = vmatprep.subr.mxu0 %v2841
      %3210 = vmatpush1.msra.mxu0 %v2840
      %3211 = vmatprep.subr.mxu0 %v2806
      %3212 = vmatpush1.msra.mxu0 %v2805
      %3213 = vmatprep.subr.mxu0 %v2771
      %3214 = vmatpush1.msra.mxu0 %v2770
      %3215 = vmatprep.subr.mxu0 %v2736
      %3216 = vmatpush1.msra.mxu0 %v2735
      %3217 = vmatprep.subr.mxu0 %v2701
      %3218 = vmatpush1.msra.mxu0 %v2700
      %3219 = vmatprep.subr.mxu0 %v2664
      %3220 = vmatpush1.msra.mxu0 %v2663
      %3221 = vmatprep.subr.mxu0 0.0
      %3222 = vmatpush2.msra.mxu0 0.0
      %3223 = vmatprep.subr.mxu0 0.0
      %3224 = vmatpush2.msra.mxu0 0.0
      %3225 = vmatprep.subr.mxu0 0.0
      %3226 = vmatpush2.msra.mxu0 0.0
      %3227 = vmatprep.subr.mxu0 0.0
      %3228 = vmatpush2.msra.mxu0 0.0
      %3229 = vmatprep.subr.mxu0 0.0
      %3230 = vmatpush2.msra.mxu0 0.0
      %3231 = vmatprep.subr.mxu0 0.0
      %3232 = vmatpush2.msra.mxu0 0.0
      %3233 = vmatprep.subr.mxu0 0.0
      %3234 = vmatpush2.msra.mxu0 0.0
      %3235 = vmatprep.subr.mxu0 0.0
      %3236 = vmatpush2.msra.mxu0 0.0
      %3237 = vmatprep.subr.mxu0 0.0
      %3238 = vmatpush2.msra.mxu0 0.0
      %3239 = vmatprep.subr.mxu0 0.0
      %3240 = vmatpush2.msra.mxu0 0.0
      %3241 = vmatprep.subr.mxu0 0.0
      %3242 = vmatpush2.msra.mxu0 0.0
      %3243 = vmatprep.subr.mxu0 0.0
      %3244 = vmatpush2.msra.mxu0 0.0
      %3245 = vmatprep.subr.mxu0 0.0
      %3246 = vmatpush2.msra.mxu0 0.0
      %3247 = vmatprep.subr.mxu0 0.0
      %3248 = vmatpush2.msra.mxu0 0.0
      %3249 = vmatprep.subr.mxu0 0.0
      %3250 = vmatpush2.msra.mxu0 0.0
      %3251 = vmatprep.subr.mxu0 0.0
      %3252 = vmatpush2.msra.mxu0 0.0
      %3253 = vmatprep.mubr.f32.mxu0 0.0
      %3254 = vmatmul.mubr.f32.gmra.mxu0 %v2974
      %v3255 = vpop.f32.mrf.mxu0
      %v3256 = vadd.f32 %v2971, %v3255
      %v3257 = vpop.f32.mrf.mxu0
      %v3258 = vadd.f32 %v2971, %v3257
      %3259 = vdwg.mxu0
      %3260 = vmatprep.subr.mxu0 0.0
      %3261 = vmatpush1.msra.mxu0 0.0
      %3262 = vmatprep.subr.mxu0 0.0
      %3263 = vmatpush1.msra.mxu0 0.0
      %3264 = vmatprep.subr.mxu0 0.0
      %3265 = vmatpush1.msra.mxu0 0.0
      %3266 = vmatprep.subr.mxu0 0.0
      %3267 = vmatpush1.msra.mxu0 0.0
      %3268 = vmatprep.subr.mxu0 0.0
      %3269 = vmatpush1.msra.mxu0 0.0
      %3270 = vmatprep.subr.mxu0 0.0
      %3271 = vmatpush1.msra.mxu0 0.0
      %3272 = vmatprep.subr.mxu0 0.0
      %3273 = vmatpush1.msra.mxu0 0.0
      %3274 = vmatprep.subr.mxu0 0.0
      %3275 = vmatpush1.msra.mxu0 %v2956
      %3276 = vmatprep.subr.mxu0 0.0
      %3277 = vmatpush1.msra.mxu0 %v2918
      %3278 = vmatprep.subr.mxu0 0.0
      %3279 = vmatpush1.msra.mxu0 %v2880
      %3280 = vmatprep.subr.mxu0 0.0
      %3281 = vmatpush1.msra.mxu0 %v2833
      %3282 = vmatprep.subr.mxu0 0.0
      %3283 = vmatpush1.msra.mxu0 %v2798
      %3284 = vmatprep.subr.mxu0 0.0
      %3285 = vmatpush1.msra.mxu0 %v2763
      %3286 = vmatprep.subr.mxu0 0.0
      %3287 = vmatpush1.msra.mxu0 %v2728
      %3288 = vmatprep.subr.mxu0 0.0
      %3289 = vmatpush1.msra.mxu0 %v2693
      %3290 = vmatprep.subr.mxu0 0.0
      %3291 = vmatpush1.msra.mxu0 %v2665
      %3292 = vmatprep.subr.mxu0 0.0
      %3293 = vmatpush2.msra.mxu0 0.0
      %3294 = vmatprep.subr.mxu0 0.0
      %3295 = vmatpush2.msra.mxu0 0.0
      %3296 = vmatprep.subr.mxu0 0.0
      %3297 = vmatpush2.msra.mxu0 0.0
      %3298 = vmatprep.subr.mxu0 0.0
      %3299 = vmatpush2.msra.mxu0 0.0
      %3300 = vmatprep.subr.mxu0 0.0
      %3301 = vmatpush2.msra.mxu0 0.0
      %3302 = vmatprep.subr.mxu0 0.0
      %3303 = vmatpush2.msra.mxu0 0.0
      %3304 = vmatprep.subr.mxu0 0.0
      %3305 = vmatpush2.msra.mxu0 0.0
      %3306 = vmatprep.subr.mxu0 0.0
      %3307 = vmatpush2.msra.mxu0 0.0
      %3308 = vmatprep.subr.mxu0 0.0
      %3309 = vmatpush2.msra.mxu0 0.0
      %3310 = vmatprep.subr.mxu0 0.0
      %3311 = vmatpush2.msra.mxu0 0.0
      %3312 = vmatprep.subr.mxu0 0.0
      %3313 = vmatpush2.msra.mxu0 0.0
      %3314 = vmatprep.subr.mxu0 0.0
      %3315 = vmatpush2.msra.mxu0 0.0
      %3316 = vmatprep.subr.mxu0 0.0
      %3317 = vmatpush2.msra.mxu0 0.0
      %3318 = vmatprep.subr.mxu0 0.0
      %3319 = vmatpush2.msra.mxu0 0.0
      %3320 = vmatprep.subr.mxu0 0.0
      %3321 = vmatpush2.msra.mxu0 0.0
      %3322 = vmatprep.subr.mxu0 0.0
      %3323 = vmatpush2.msra.mxu0 0.0
      %3324 = vmatprep.mubr.f32.mxu0 0.0
      %3325 = vmatmul.mubr.f32.gmra.mxu0 %v2974
      %v3326 = vpop.f32.mrf.mxu0
      %v3327 = vadd.f32 %v2971, %v3326
      %v3328 = vpop.f32.mrf.mxu0
      %3329 = vdwg.mxu0
      %v3330 = vmax.f32 %v3043, 0.0
      %v3331 = vmax.f32 %v3045, 0.0
      %v3332 = vmax.f32 %v3114, 0.0
      %v3333 = vmax.f32 %v3116, 0.0
      %v3334 = vmax.f32 %v3185, 0.0
      %v3335 = vmax.f32 %v3187, 0.0
      %v3336 = vmax.f32 %v3256, 0.0
      %v3337 = vmax.f32 %v3258, 0.0
      %v3338 = vmax.f32 %v3327, 0.0
      %3339 = vst [vmem:[%s305] sm:$0xff] %v3330
      %3340 = vst [vmem:[%s305 + $0x8] sm:$0xff] %v3331
      %3341 = vst [vmem:[%s305 + $0x10] sm:$0xff] %v3332
      %3342 = vst [vmem:[%s305 + $0x18] sm:$0xff] %v3333
      %3343 = vst [vmem:[%s305 + $0x20] sm:$0xff] %v3334
      %3344 = vst [vmem:[%s305 + $0x28] sm:$0xff] %v3335
      %3345 = vst [vmem:[%s305 + $0x30] sm:$0xff] %v3336
      %3346 = vst [vmem:[%s305 + $0x38] sm:$0xff] %v3337
      %vm3347 = vcmask 523264
      %3348 = vst.msk [vmem:[%s305 + $0x40] sm:$0xff] %vm3347, %v3338
      %p3349 = scmp.lt.s32.totalorder %s19, 1
      %s3350 = scalar_select %p3349, %s19, 1
      %s3351 = smul.addr %s3350, 9
      %s3352 = smul.addr %s3351, 8
      %s3353 = scalar_lea.vmem %s8, %s3352
      // Predicated region
      $region53: #{decode_forward.1} parent=51 // pred_check
        %p3354 = pneg %p210
      $region54: #{decode_forward.1} parent=51 // pred_check_branch
        %3356 = sbr.rel (%p3354) target = $region56
      $region55: #{decode_forward.1} parent=51 // pred_region
        _
      $region56: #{decode_forward.1} parent=51 // pred_fallthru
        _
    $region52: #{decode_forward.1} parent=5 // pred_fallthru
      _
    %p3357 = scmp.le.s32.totalorder 2, %s14
    // Predicated region
    $region57: #{decode_forward.1} parent=5 // pred_check
      %p3358 = pneg %p3357
    $region58: #{decode_forward.1} parent=5 // pred_check_branch
      %3360 = sbr.rel (%p3358) target = $region60
    $region59: #{decode_forward.1} parent=5 // pred_region
      %s3361 = ssub.s32 %s14, 2
      // Predicated region
      $region61: #{decode_forward.1} parent=59 // pred_check
        %p3362 = pneg %p216
      $region62: #{decode_forward.1} parent=59 // pred_check_branch
        %3364 = sbr.rel (%p3362) target = $region64
      $region63: #{decode_forward.1} parent=59 // pred_region
        %p3365 = scmp.lt.s32.totalorder %s20, 1
        %s3366 = scalar_select %p3365, %s20, 1
        %s3367 = smul.addr %s3366, 9
        %s3368 = smul.addr %s3367, 8
        %s3369 = scalar_lea.vmem %s8, %s3368
      $region64: #{decode_forward.1} parent=59 // pred_fallthru
        _
    $region60: #{decode_forward.1} parent=5 // pred_fallthru
      _
  $region6: #{decode_forward.1} parent=0 // loop_footer
    %s18 = sadd.s32 1, %s14
  $region7: #{decode_forward.1} parent=0 // loop_footer_branch
    %13 = sbr.rel target = $region3
  $region8: #{decode_forward.1} parent=0 // loop_exit
    _

</llo_original>
